<compile_context>
chip_gen: v5e
topology: v5e:2x2
jax: 0.10.0
libtpu: 0.0.40
codegen_flags: <defaults>
</compile_context>

<pallas_src>
import numpy as np
import jax
import jax.numpy as jnp
from jax.experimental import pallas as pl
from jax.experimental.pallas import tpu as pltpu

F_SIZE = 5          # f_size = (5, 1): conv over the time axis only
CIN_PAD = 8         # pad depth=1 input channels of conv11 up to 8 lanes (zeros)
FC_HIDDEN = 512

CONFIG = dict(depth=1, n_filters=8, f_size=F_SIZE, win_len=32, channels=4, n_classes=8)
BATCH = 2


# ------------------------------- fused kernel ------------------------------- #

def _cnn_imu_kernel(x_ref, wc_ref, bc_ref, w1_ref, b1_ref, w2_ref, b2_ref, o_ref):
    """x_ref: (H, N*W, CIN_PAD); wc_ref: (4, 5, CIN_PAD, nf); bc_ref: (4, 1, nf);
    w1_ref: (W, H2, nf, 512);  b1_ref: (1, 512);  w2_ref: (512, n_classes);
    b2_ref: (1, n_classes);    o_ref: (N, n_classes)."""
    nf = wc_ref.shape[-1]

    def conv5x1_relu(h, layer):
        # Valid 5x1 conv over the time axis + bias + ReLU, as 5 flat 2-D matmuls.
        Hh, B, Cin = h.shape
        Hout = Hh - (F_SIZE - 1)
        w_l = wc_ref[layer]                               # (5, Cin, nf) value
        acc = jnp.zeros((Hout * B, nf), jnp.float32)
        for kh in range(F_SIZE):
            # leading-dim slice + 8-aligned sublane merge: free, no retiling
            xs = h[kh:kh + Hout].reshape(Hout * B, Cin)
            acc = acc + jnp.dot(xs, w_l[kh], preferred_element_type=jnp.float32)
        acc = acc + bc_ref[layer]                         # (1, nf) broadcast
        return jnp.maximum(acc, 0.0).reshape(Hout, B, nf)

    def maxpool2x1(h):
        # F.max_pool2d(..., (2, 1)) over time: leading-dim-only reshape (free).
        Hh, B, C = h.shape
        hr = h.reshape(Hh // 2, 2, B, C)
        return jnp.maximum(hr[:, 0], hr[:, 1])

    x = x_ref[...]                                        # (H, N*W, CIN_PAD)
    h = conv5x1_relu(x, 0)                                # conv11 + relu
    h = conv5x1_relu(h, 1)                                # conv12 + relu
    h = maxpool2x1(h)                                     # max_pool2d (2,1)
    h = conv5x1_relu(h, 2)                                # conv21 + relu
    h = conv5x1_relu(h, 3)                                # conv22 + relu
    feat = maxpool2x1(h)                                  # (H2, N*W, nf)

    H2, NW, _ = feat.shape
    N = o_ref.shape[0]
    Ws = NW // N                                          # sensor channels per sample
    fc1_dim = w1_ref.shape[-1]

    # FC1: torch flatten order is pre-folded into w1 (rows ordered (w, h, c)).
    # Rows of feat belonging to sample n / sensor w are gathered with a tiny
    # 0/1 selection matmul (MXU), avoiding any tiled-dim reshape in-kernel.
    n_ids = jax.lax.broadcasted_iota(jnp.int32, (N, NW), 0)
    b_ids = jax.lax.broadcasted_iota(jnp.int32, (N, NW), 1)

    acc1 = jnp.zeros((N, fc1_dim), jnp.float32)
    for w in range(Ws):
        sel = (b_ids == n_ids * Ws + w).astype(jnp.float32)   # (N, N*W)
        w1_w = w1_ref[w]                                      # (H2, nf, 512)
        for hh in range(H2):
            xw = jnp.dot(sel, feat[hh], preferred_element_type=jnp.float32)  # (N, nf)
            acc1 = acc1 + jnp.dot(xw, w1_w[hh], preferred_element_type=jnp.float32)

    # TODO(synk): nn.Dropout is identity in eval mode; train-mode dropout would use pltpu.prng_*.
    h1 = jnp.maximum(acc1 + b1_ref[...], 0.0)             # relu(fc1)
    o_ref[...] = jnp.dot(h1, w2_ref[...], preferred_element_type=jnp.float32) + b2_ref[...]


# ----------------------- one-time parameter repacking ----------------------- #

def pack_params(params, cfg=CONFIG):
    """Hoisted out of the hot path: conv-weight layout, channel padding, and the
    torch flatten-order permutation of fc1's weight are all done once here."""
    nf, d, W = cfg['n_filters'], cfg['depth'], cfg['channels']
    H2 = ((cfg['win_len'] - 2 * (F_SIZE - 1)) // 2 - 2 * (F_SIZE - 1)) // 2

    def conv_w(w, cin):
        wk = jnp.transpose(w[:, :, :, 0], (2, 1, 0))            # (5, cin, nf)
        return jnp.pad(wk, ((0, 0), (0, CIN_PAD - cin), (0, 0)))

    wconv = jnp.stack([conv_w(params['w11'], d),
                       conv_w(params['w12'], nf),
                       conv_w(params['w21'], nf),
                       conv_w(params['w22'], nf)], axis=0)      # (4, 5, CIN_PAD, nf)
    bconv = jnp.stack([params['b11'], params['b12'],
                       params['b21'], params['b22']], axis=0).reshape(4, 1, nf)

    # fc1_w: (512, flat) with flat index c*(H2*W) + h*W + w  ->  (w, h, c, 512)
    w1r = params['fc1_w'].reshape(FC_HIDDEN, nf, H2, W)
    w1p = jnp.transpose(w1r, (3, 2, 1, 0))                      # (W, H2, nf, 512)

    return dict(wconv=wconv, bconv=bconv,
                w1=w1p, b1=params['fc1_b'].reshape(1, -1),
                w2=params['fc2_w'].T, b2=params['fc2_b'].reshape(1, -1))


# ------------------------------ forward wrapper ------------------------------ #

@jax.jit
def cnn_imu_forward(x, packed):
    """x: (N, depth, win_len, channels) float32 (NCHW, same as the PyTorch module)."""
    N, Cin, H, W = x.shape
    n_classes = packed['w2'].shape[1]

    # glue: NCHW -> (H, N*W, Cin), zero-pad Cin up to CIN_PAD (sublane axis = N*W)
    xk = jnp.transpose(x.astype(jnp.float32), (2, 0, 3, 1)).reshape(H, N * W, Cin)
    xk = jnp.pad(xk, ((0, 0), (0, 0), (0, CIN_PAD - Cin)))

    vmem = pl.BlockSpec(memory_space=pltpu.MemorySpace.VMEM)
    return pl.pallas_call(
        _cnn_imu_kernel,
        out_shape=jax.ShapeDtypeStruct((N, n_classes), jnp.float32),
        in_specs=[vmem] * 7,
        out_specs=vmem,
    )(xk, packed['wconv'], packed['bconv'], packed['w1'], packed['b1'],
      packed['w2'], packed['b2'])


# --------------------------- deterministic params --------------------------- #

def orthogonal_init(key, shape, gain):
    """Mimics torch.nn.init.orthogonal_: flatten to (shape[0], prod(rest)), QR."""
    rows = shape[0]
    cols = int(np.prod(shape[1:]))
    n, m = max(rows, cols), min(rows, cols)
    a = jax.random.normal(key, (n, m), jnp.float32)
    q, r = jnp.linalg.qr(a)
    q = q * jnp.sign(jnp.diagonal(r))[None, :]
    if rows < cols:
        q = q.T
    return (gain * q).reshape(shape)


def init_params(key, cfg=CONFIG):
    gain = float(np.sqrt(2.0))             # init.calculate_gain('relu')
    ks = jax.random.split(key, 12)
    nf, d, fs = cfg['n_filters'], cfg['depth'], cfg['f_size']
    out2 = ((cfg['win_len'] - 2 * (fs - 1)) // 2 - 2 * (fs - 1)) // 2
    flat = out2 * nf * cfg['channels']

    def bias(k, fan_in, n):
        bound = 1.0 / float(np.sqrt(fan_in))
        return jax.random.uniform(k, (n,), jnp.float32, -bound, bound)

    return dict(
        w11=orthogonal_init(ks[0], (nf, d, fs, 1), gain),  b11=bias(ks[1], d * fs, nf),
        w12=orthogonal_init(ks[2], (nf, nf, fs, 1), gain), b12=bias(ks[3], nf * fs, nf),
        w21=orthogonal_init(ks[4], (nf, nf, fs, 1), gain), b21=bias(ks[5], nf * fs, nf),
        w22=orthogonal_init(ks[6], (nf, nf, fs, 1), gain), b22=bias(ks[7], nf * fs, nf),
        fc1_w=orthogonal_init(ks[8], (FC_HIDDEN, flat), gain), fc1_b=bias(ks[9], flat, FC_HIDDEN),
        fc2_w=orthogonal_init(ks[10], (cfg['n_classes'], FC_HIDDEN), gain),
        fc2_b=bias(ks[11], FC_HIDDEN, cfg['n_classes']),
    )


# ------------------------------ pure-JAX reference --------------------------- #

def reference_forward(x, p):
    def conv_relu(h, w, b):
        y = jax.lax.conv_general_dilated(h, w, (1, 1), 'VALID',
                                         dimension_numbers=('NCHW', 'OIHW', 'NCHW'))
        return jax.nn.relu(y + b.reshape(1, -1, 1, 1))

    def pool(h):
        return jax.lax.reduce_window(h, -jnp.inf, jax.lax.max,
                                     (1, 1, 2, 1), (1, 1, 2, 1), 'VALID')

    h = x.astype(jnp.float32)
    h = conv_relu(h, p['w11'], p['b11'])
    h = pool(conv_relu(h, p['w12'], p['b12']))
    h = conv_relu(h, p['w21'], p['b21'])
    h = pool(conv_relu(h, p['w22'], p['b22']))
    h = h.reshape(h.shape[0], -1)
    h = jax.nn.relu(h @ p['fc1_w'].T + p['fc1_b'])
    return h @ p['fc2_w'].T + p['fc2_b']


if __name__ == "__main__":
    key = jax.random.PRNGKey(0)
    pkey, xkey = jax.random.split(key)
    params = init_params(pkey, CONFIG)
    packed = pack_params(params, CONFIG)       # one-time packing, outside the hot path
    x = jax.random.normal(
        xkey, (BATCH, CONFIG['depth'], CONFIG['win_len'], CONFIG['channels']), jnp.float32)

    out = jax.block_until_ready(cnn_imu_forward(x, packed))
    ref = jax.block_until_ready(reference_forward(x, params))

    assert out.shape == (BATCH, CONFIG['n_classes'])
    np.testing.assert_allclose(np.asarray(out), np.asarray(ref), rtol=1e-3, atol=1e-3)
    print("KERNEL_OK")
</pallas_src>

<mosaic_0001>
module attributes {stable_mosaic.version = 11 : i64} {
  func.func @_cnn_imu_kernel(%arg0: memref<32x8x8xf32, #tpu.memory_space<vmem>>, %arg1: memref<4x5x8x8xf32, #tpu.memory_space<vmem>>, %arg2: memref<4x1x8xf32, #tpu.memory_space<vmem>>, %arg3: memref<4x2x8x512xf32, #tpu.memory_space<vmem>>, %arg4: memref<1x512xf32, #tpu.memory_space<vmem>>, %arg5: memref<512x8xf32, #tpu.memory_space<vmem>>, %arg6: memref<1x8xf32, #tpu.memory_space<vmem>>, %arg7: memref<2x8xf32, #tpu.memory_space<vmem>>) attributes {dimension_semantics = [], scalar_prefetch = 0 : i64, scratch_operands = 0 : i64, tpu.core_type = #tpu.core_type<tc>} {
    %c0 = arith.constant 0 : index
    %c0_0 = arith.constant 0 : index
    %c0_1 = arith.constant 0 : index
    %0 = vector.load %arg0[%c0, %c0_0, %c0_1] : memref<32x8x8xf32, #tpu.memory_space<vmem>>, vector<32x8x8xf32>
    %c0_2 = arith.constant 0 : index
    %c0_3 = arith.constant 0 : index
    %c0_4 = arith.constant 0 : index
    %c0_5 = arith.constant 0 : index
    %1 = vector.load %arg1[%c0_2, %c0_3, %c0_4, %c0_5] : memref<4x5x8x8xf32, #tpu.memory_space<vmem>>, vector<1x5x8x8xf32>
    %2 = vector.shape_cast %1 : vector<1x5x8x8xf32> to vector<5x8x8xf32>
    %cst = arith.constant 0.000000e+00 : f32
    %3 = vector.broadcast %cst : f32 to vector<224x8xf32>
    %4 = vector.extract_strided_slice %0 {offsets = [0, 0, 0], sizes = [28, 8, 8], strides = [1, 1, 1]} : vector<32x8x8xf32> to vector<28x8x8xf32>
    %5 = vector.shape_cast %4 : vector<28x8x8xf32> to vector<224x8xf32>
    %6 = vector.extract_strided_slice %2 {offsets = [0, 0, 0], sizes = [1, 8, 8], strides = [1, 1, 1]} : vector<5x8x8xf32> to vector<1x8x8xf32>
    %7 = vector.shape_cast %6 : vector<1x8x8xf32> to vector<8x8xf32>
    %cst_6 = arith.constant dense<0.000000e+00> : vector<224x8xf32>
    %8 = tpu.matmul %5, %7, %cst_6 {dimension_numbers = #tpu.dot_dimension_numbers<[1], [0], [0], [1], [0, 0, 1, 1], [], []>} : vector<224x8xf32>, vector<8x8xf32>, vector<224x8xf32> -> vector<224x8xf32>
    %9 = arith.addf %3, %8 : vector<224x8xf32>
    %10 = vector.extract_strided_slice %0 {offsets = [1, 0, 0], sizes = [28, 8, 8], strides = [1, 1, 1]} : vector<32x8x8xf32> to vector<28x8x8xf32>
    %11 = vector.shape_cast %10 : vector<28x8x8xf32> to vector<224x8xf32>
    %12 = vector.extract_strided_slice %2 {offsets = [1, 0, 0], sizes = [1, 8, 8], strides = [1, 1, 1]} : vector<5x8x8xf32> to vector<1x8x8xf32>
    %13 = vector.shape_cast %12 : vector<1x8x8xf32> to vector<8x8xf32>
    %cst_7 = arith.constant dense<0.000000e+00> : vector<224x8xf32>
    %14 = tpu.matmul %11, %13, %cst_7 {dimension_numbers = #tpu.dot_dimension_numbers<[1], [0], [0], [1], [0, 0, 1, 1], [], []>} : vector<224x8xf32>, vector<8x8xf32>, vector<224x8xf32> -> vector<224x8xf32>
    %15 = arith.addf %9, %14 : vector<224x8xf32>
    %16 = vector.extract_strided_slice %0 {offsets = [2, 0, 0], sizes = [28, 8, 8], strides = [1, 1, 1]} : vector<32x8x8xf32> to vector<28x8x8xf32>
    %17 = vector.shape_cast %16 : vector<28x8x8xf32> to vector<224x8xf32>
    %18 = vector.extract_strided_slice %2 {offsets = [2, 0, 0], sizes = [1, 8, 8], strides = [1, 1, 1]} : vector<5x8x8xf32> to vector<1x8x8xf32>
    %19 = vector.shape_cast %18 : vector<1x8x8xf32> to vector<8x8xf32>
    %cst_8 = arith.constant dense<0.000000e+00> : vector<224x8xf32>
    %20 = tpu.matmul %17, %19, %cst_8 {dimension_numbers = #tpu.dot_dimension_numbers<[1], [0], [0], [1], [0, 0, 1, 1], [], []>} : vector<224x8xf32>, vector<8x8xf32>, vector<224x8xf32> -> vector<224x8xf32>
    %21 = arith.addf %15, %20 : vector<224x8xf32>
    %22 = vector.extract_strided_slice %0 {offsets = [3, 0, 0], sizes = [28, 8, 8], strides = [1, 1, 1]} : vector<32x8x8xf32> to vector<28x8x8xf32>
    %23 = vector.shape_cast %22 : vector<28x8x8xf32> to vector<224x8xf32>
    %24 = vector.extract_strided_slice %2 {offsets = [3, 0, 0], sizes = [1, 8, 8], strides = [1, 1, 1]} : vector<5x8x8xf32> to vector<1x8x8xf32>
    %25 = vector.shape_cast %24 : vector<1x8x8xf32> to vector<8x8xf32>
    %cst_9 = arith.constant dense<0.000000e+00> : vector<224x8xf32>
    %26 = tpu.matmul %23, %25, %cst_9 {dimension_numbers = #tpu.dot_dimension_numbers<[1], [0], [0], [1], [0, 0, 1, 1], [], []>} : vector<224x8xf32>, vector<8x8xf32>, vector<224x8xf32> -> vector<224x8xf32>
    %27 = arith.addf %21, %26 : vector<224x8xf32>
    %28 = vector.extract_strided_slice %0 {offsets = [4, 0, 0], sizes = [28, 8, 8], strides = [1, 1, 1]} : vector<32x8x8xf32> to vector<28x8x8xf32>
    %29 = vector.shape_cast %28 : vector<28x8x8xf32> to vector<224x8xf32>
    %30 = vector.extract_strided_slice %2 {offsets = [4, 0, 0], sizes = [1, 8, 8], strides = [1, 1, 1]} : vector<5x8x8xf32> to vector<1x8x8xf32>
    %31 = vector.shape_cast %30 : vector<1x8x8xf32> to vector<8x8xf32>
    %cst_10 = arith.constant dense<0.000000e+00> : vector<224x8xf32>
    %32 = tpu.matmul %29, %31, %cst_10 {dimension_numbers = #tpu.dot_dimension_numbers<[1], [0], [0], [1], [0, 0, 1, 1], [], []>} : vector<224x8xf32>, vector<8x8xf32>, vector<224x8xf32> -> vector<224x8xf32>
    %33 = arith.addf %27, %32 : vector<224x8xf32>
    %c0_11 = arith.constant 0 : index
    %c0_12 = arith.constant 0 : index
    %c0_13 = arith.constant 0 : index
    %34 = vector.load %arg2[%c0_11, %c0_12, %c0_13] : memref<4x1x8xf32, #tpu.memory_space<vmem>>, vector<1x1x8xf32>
    %35 = vector.shape_cast %34 : vector<1x1x8xf32> to vector<1x8xf32>
    %36 = vector.broadcast %35 : vector<1x8xf32> to vector<224x8xf32>
    %37 = arith.addf %33, %36 : vector<224x8xf32>
    %cst_14 = arith.constant 0.000000e+00 : f32
    %38 = vector.broadcast %cst_14 : f32 to vector<224x8xf32>
    %39 = arith.maximumf %37, %38 : vector<224x8xf32>
    %40 = vector.shape_cast %39 : vector<224x8xf32> to vector<28x8x8xf32>
    %c1 = arith.constant 1 : index
    %c0_15 = arith.constant 0 : index
    %c0_16 = arith.constant 0 : index
    %c0_17 = arith.constant 0 : index
    %41 = vector.load %arg1[%c1, %c0_15, %c0_16, %c0_17] : memref<4x5x8x8xf32, #tpu.memory_space<vmem>>, vector<1x5x8x8xf32>
    %42 = vector.shape_cast %41 : vector<1x5x8x8xf32> to vector<5x8x8xf32>
    %cst_18 = arith.constant 0.000000e+00 : f32
    %43 = vector.broadcast %cst_18 : f32 to vector<192x8xf32>
    %44 = vector.extract_strided_slice %40 {offsets = [0, 0, 0], sizes = [24, 8, 8], strides = [1, 1, 1]} : vector<28x8x8xf32> to vector<24x8x8xf32>
    %45 = vector.shape_cast %44 : vector<24x8x8xf32> to vector<192x8xf32>
    %46 = vector.extract_strided_slice %42 {offsets = [0, 0, 0], sizes = [1, 8, 8], strides = [1, 1, 1]} : vector<5x8x8xf32> to vector<1x8x8xf32>
    %47 = vector.shape_cast %46 : vector<1x8x8xf32> to vector<8x8xf32>
    %cst_19 = arith.constant dense<0.000000e+00> : vector<192x8xf32>
    %48 = tpu.matmul %45, %47, %cst_19 {dimension_numbers = #tpu.dot_dimension_numbers<[1], [0], [0], [1], [0, 0, 1, 1], [], []>} : vector<192x8xf32>, vector<8x8xf32>, vector<192x8xf32> -> vector<192x8xf32>
    %49 = arith.addf %43, %48 : vector<192x8xf32>
    %50 = vector.extract_strided_slice %40 {offsets = [1, 0, 0], sizes = [24, 8, 8], strides = [1, 1, 1]} : vector<28x8x8xf32> to vector<24x8x8xf32>
    %51 = vector.shape_cast %50 : vector<24x8x8xf32> to vector<192x8xf32>
    %52 = vector.extract_strided_slice %42 {offsets = [1, 0, 0], sizes = [1, 8, 8], strides = [1, 1, 1]} : vector<5x8x8xf32> to vector<1x8x8xf32>
    %53 = vector.shape_cast %52 : vector<1x8x8xf32> to vector<8x8xf32>
    %cst_20 = arith.constant dense<0.000000e+00> : vector<192x8xf32>
    %54 = tpu.matmul %51, %53, %cst_20 {dimension_numbers = #tpu.dot_dimension_numbers<[1], [0], [0], [1], [0, 0, 1, 1], [], []>} : vector<192x8xf32>, vector<8x8xf32>, vector<192x8xf32> -> vector<192x8xf32>
    %55 = arith.addf %49, %54 : vector<192x8xf32>
    %56 = vector.extract_strided_slice %40 {offsets = [2, 0, 0], sizes = [24, 8, 8], strides = [1, 1, 1]} : vector<28x8x8xf32> to vector<24x8x8xf32>
    %57 = vector.shape_cast %56 : vector<24x8x8xf32> to vector<192x8xf32>
    %58 = vector.extract_strided_slice %42 {offsets = [2, 0, 0], sizes = [1, 8, 8], strides = [1, 1, 1]} : vector<5x8x8xf32> to vector<1x8x8xf32>
    %59 = vector.shape_cast %58 : vector<1x8x8xf32> to vector<8x8xf32>
    %cst_21 = arith.constant dense<0.000000e+00> : vector<192x8xf32>
    %60 = tpu.matmul %57, %59, %cst_21 {dimension_numbers = #tpu.dot_dimension_numbers<[1], [0], [0], [1], [0, 0, 1, 1], [], []>} : vector<192x8xf32>, vector<8x8xf32>, vector<192x8xf32> -> vector<192x8xf32>
    %61 = arith.addf %55, %60 : vector<192x8xf32>
    %62 = vector.extract_strided_slice %40 {offsets = [3, 0, 0], sizes = [24, 8, 8], strides = [1, 1, 1]} : vector<28x8x8xf32> to vector<24x8x8xf32>
    %63 = vector.shape_cast %62 : vector<24x8x8xf32> to vector<192x8xf32>
    %64 = vector.extract_strided_slice %42 {offsets = [3, 0, 0], sizes = [1, 8, 8], strides = [1, 1, 1]} : vector<5x8x8xf32> to vector<1x8x8xf32>
    %65 = vector.shape_cast %64 : vector<1x8x8xf32> to vector<8x8xf32>
    %cst_22 = arith.constant dense<0.000000e+00> : vector<192x8xf32>
    %66 = tpu.matmul %63, %65, %cst_22 {dimension_numbers = #tpu.dot_dimension_numbers<[1], [0], [0], [1], [0, 0, 1, 1], [], []>} : vector<192x8xf32>, vector<8x8xf32>, vector<192x8xf32> -> vector<192x8xf32>
    %67 = arith.addf %61, %66 : vector<192x8xf32>
    %68 = vector.extract_strided_slice %40 {offsets = [4, 0, 0], sizes = [24, 8, 8], strides = [1, 1, 1]} : vector<28x8x8xf32> to vector<24x8x8xf32>
    %69 = vector.shape_cast %68 : vector<24x8x8xf32> to vector<192x8xf32>
    %70 = vector.extract_strided_slice %42 {offsets = [4, 0, 0], sizes = [1, 8, 8], strides = [1, 1, 1]} : vector<5x8x8xf32> to vector<1x8x8xf32>
    %71 = vector.shape_cast %70 : vector<1x8x8xf32> to vector<8x8xf32>
    %cst_23 = arith.constant dense<0.000000e+00> : vector<192x8xf32>
    %72 = tpu.matmul %69, %71, %cst_23 {dimension_numbers = #tpu.dot_dimension_numbers<[1], [0], [0], [1], [0, 0, 1, 1], [], []>} : vector<192x8xf32>, vector<8x8xf32>, vector<192x8xf32> -> vector<192x8xf32>
    %73 = arith.addf %67, %72 : vector<192x8xf32>
    %c1_24 = arith.constant 1 : index
    %c0_25 = arith.constant 0 : index
    %c0_26 = arith.constant 0 : index
    %74 = vector.load %arg2[%c1_24, %c0_25, %c0_26] : memref<4x1x8xf32, #tpu.memory_space<vmem>>, vector<1x1x8xf32>
    %75 = vector.shape_cast %74 : vector<1x1x8xf32> to vector<1x8xf32>
    %76 = vector.broadcast %75 : vector<1x8xf32> to vector<192x8xf32>
    %77 = arith.addf %73, %76 : vector<192x8xf32>
    %cst_27 = arith.constant 0.000000e+00 : f32
    %78 = vector.broadcast %cst_27 : f32 to vector<192x8xf32>
    %79 = arith.maximumf %77, %78 : vector<192x8xf32>
    %80 = vector.shape_cast %79 : vector<192x8xf32> to vector<24x8x8xf32>
    %81 = vector.shape_cast %80 : vector<24x8x8xf32> to vector<12x2x8x8xf32>
    %82 = vector.extract_strided_slice %81 {offsets = [0, 0, 0, 0], sizes = [12, 1, 8, 8], strides = [1, 1, 1, 1]} : vector<12x2x8x8xf32> to vector<12x1x8x8xf32>
    %83 = vector.shape_cast %82 : vector<12x1x8x8xf32> to vector<12x8x8xf32>
    %84 = vector.extract_strided_slice %81 {offsets = [0, 1, 0, 0], sizes = [12, 1, 8, 8], strides = [1, 1, 1, 1]} : vector<12x2x8x8xf32> to vector<12x1x8x8xf32>
    %85 = vector.shape_cast %84 : vector<12x1x8x8xf32> to vector<12x8x8xf32>
    %86 = arith.maximumf %83, %85 : vector<12x8x8xf32>
    %c2 = arith.constant 2 : index
    %c0_28 = arith.constant 0 : index
    %c0_29 = arith.constant 0 : index
    %c0_30 = arith.constant 0 : index
    %87 = vector.load %arg1[%c2, %c0_28, %c0_29, %c0_30] : memref<4x5x8x8xf32, #tpu.memory_space<vmem>>, vector<1x5x8x8xf32>
    %88 = vector.shape_cast %87 : vector<1x5x8x8xf32> to vector<5x8x8xf32>
    %cst_31 = arith.constant 0.000000e+00 : f32
    %89 = vector.broadcast %cst_31 : f32 to vector<64x8xf32>
    %90 = vector.extract_strided_slice %86 {offsets = [0, 0, 0], sizes = [8, 8, 8], strides = [1, 1, 1]} : vector<12x8x8xf32> to vector<8x8x8xf32>
    %91 = vector.shape_cast %90 : vector<8x8x8xf32> to vector<64x8xf32>
    %92 = vector.extract_strided_slice %88 {offsets = [0, 0, 0], sizes = [1, 8, 8], strides = [1, 1, 1]} : vector<5x8x8xf32> to vector<1x8x8xf32>
    %93 = vector.shape_cast %92 : vector<1x8x8xf32> to vector<8x8xf32>
    %cst_32 = arith.constant dense<0.000000e+00> : vector<64x8xf32>
    %94 = tpu.matmul %91, %93, %cst_32 {dimension_numbers = #tpu.dot_dimension_numbers<[1], [0], [0], [1], [0, 0, 1, 1], [], []>} : vector<64x8xf32>, vector<8x8xf32>, vector<64x8xf32> -> vector<64x8xf32>
    %95 = arith.addf %89, %94 : vector<64x8xf32>
    %96 = vector.extract_strided_slice %86 {offsets = [1, 0, 0], sizes = [8, 8, 8], strides = [1, 1, 1]} : vector<12x8x8xf32> to vector<8x8x8xf32>
    %97 = vector.shape_cast %96 : vector<8x8x8xf32> to vector<64x8xf32>
    %98 = vector.extract_strided_slice %88 {offsets = [1, 0, 0], sizes = [1, 8, 8], strides = [1, 1, 1]} : vector<5x8x8xf32> to vector<1x8x8xf32>
    %99 = vector.shape_cast %98 : vector<1x8x8xf32> to vector<8x8xf32>
    %cst_33 = arith.constant dense<0.000000e+00> : vector<64x8xf32>
    %100 = tpu.matmul %97, %99, %cst_33 {dimension_numbers = #tpu.dot_dimension_numbers<[1], [0], [0], [1], [0, 0, 1, 1], [], []>} : vector<64x8xf32>, vector<8x8xf32>, vector<64x8xf32> -> vector<64x8xf32>
    %101 = arith.addf %95, %100 : vector<64x8xf32>
    %102 = vector.extract_strided_slice %86 {offsets = [2, 0, 0], sizes = [8, 8, 8], strides = [1, 1, 1]} : vector<12x8x8xf32> to vector<8x8x8xf32>
    %103 = vector.shape_cast %102 : vector<8x8x8xf32> to vector<64x8xf32>
    %104 = vector.extract_strided_slice %88 {offsets = [2, 0, 0], sizes = [1, 8, 8], strides = [1, 1, 1]} : vector<5x8x8xf32> to vector<1x8x8xf32>
    %105 = vector.shape_cast %104 : vector<1x8x8xf32> to vector<8x8xf32>
    %cst_34 = arith.constant dense<0.000000e+00> : vector<64x8xf32>
    %106 = tpu.matmul %103, %105, %cst_34 {dimension_numbers = #tpu.dot_dimension_numbers<[1], [0], [0], [1], [0, 0, 1, 1], [], []>} : vector<64x8xf32>, vector<8x8xf32>, vector<64x8xf32> -> vector<64x8xf32>
    %107 = arith.addf %101, %106 : vector<64x8xf32>
    %108 = vector.extract_strided_slice %86 {offsets = [3, 0, 0], sizes = [8, 8, 8], strides = [1, 1, 1]} : vector<12x8x8xf32> to vector<8x8x8xf32>
    %109 = vector.shape_cast %108 : vector<8x8x8xf32> to vector<64x8xf32>
    %110 = vector.extract_strided_slice %88 {offsets = [3, 0, 0], sizes = [1, 8, 8], strides = [1, 1, 1]} : vector<5x8x8xf32> to vector<1x8x8xf32>
    %111 = vector.shape_cast %110 : vector<1x8x8xf32> to vector<8x8xf32>
    %cst_35 = arith.constant dense<0.000000e+00> : vector<64x8xf32>
    %112 = tpu.matmul %109, %111, %cst_35 {dimension_numbers = #tpu.dot_dimension_numbers<[1], [0], [0], [1], [0, 0, 1, 1], [], []>} : vector<64x8xf32>, vector<8x8xf32>, vector<64x8xf32> -> vector<64x8xf32>
    %113 = arith.addf %107, %112 : vector<64x8xf32>
    %114 = vector.extract_strided_slice %86 {offsets = [4, 0, 0], sizes = [8, 8, 8], strides = [1, 1, 1]} : vector<12x8x8xf32> to vector<8x8x8xf32>
    %115 = vector.shape_cast %114 : vector<8x8x8xf32> to vector<64x8xf32>
    %116 = vector.extract_strided_slice %88 {offsets = [4, 0, 0], sizes = [1, 8, 8], strides = [1, 1, 1]} : vector<5x8x8xf32> to vector<1x8x8xf32>
    %117 = vector.shape_cast %116 : vector<1x8x8xf32> to vector<8x8xf32>
    %cst_36 = arith.constant dense<0.000000e+00> : vector<64x8xf32>
    %118 = tpu.matmul %115, %117, %cst_36 {dimension_numbers = #tpu.dot_dimension_numbers<[1], [0], [0], [1], [0, 0, 1, 1], [], []>} : vector<64x8xf32>, vector<8x8xf32>, vector<64x8xf32> -> vector<64x8xf32>
    %119 = arith.addf %113, %118 : vector<64x8xf32>
    %c2_37 = arith.constant 2 : index
    %c0_38 = arith.constant 0 : index
    %c0_39 = arith.constant 0 : index
    %120 = vector.load %arg2[%c2_37, %c0_38, %c0_39] : memref<4x1x8xf32, #tpu.memory_space<vmem>>, vector<1x1x8xf32>
    %121 = vector.shape_cast %120 : vector<1x1x8xf32> to vector<1x8xf32>
    %122 = vector.broadcast %121 : vector<1x8xf32> to vector<64x8xf32>
    %123 = arith.addf %119, %122 : vector<64x8xf32>
    %cst_40 = arith.constant 0.000000e+00 : f32
    %124 = vector.broadcast %cst_40 : f32 to vector<64x8xf32>
    %125 = arith.maximumf %123, %124 : vector<64x8xf32>
    %126 = vector.shape_cast %125 : vector<64x8xf32> to vector<8x8x8xf32>
    %c3 = arith.constant 3 : index
    %c0_41 = arith.constant 0 : index
    %c0_42 = arith.constant 0 : index
    %c0_43 = arith.constant 0 : index
    %127 = vector.load %arg1[%c3, %c0_41, %c0_42, %c0_43] : memref<4x5x8x8xf32, #tpu.memory_space<vmem>>, vector<1x5x8x8xf32>
    %128 = vector.shape_cast %127 : vector<1x5x8x8xf32> to vector<5x8x8xf32>
    %cst_44 = arith.constant 0.000000e+00 : f32
    %129 = vector.broadcast %cst_44 : f32 to vector<32x8xf32>
    %130 = vector.extract_strided_slice %126 {offsets = [0, 0, 0], sizes = [4, 8, 8], strides = [1, 1, 1]} : vector<8x8x8xf32> to vector<4x8x8xf32>
    %131 = vector.shape_cast %130 : vector<4x8x8xf32> to vector<32x8xf32>
    %132 = vector.extract_strided_slice %128 {offsets = [0, 0, 0], sizes = [1, 8, 8], strides = [1, 1, 1]} : vector<5x8x8xf32> to vector<1x8x8xf32>
    %133 = vector.shape_cast %132 : vector<1x8x8xf32> to vector<8x8xf32>
    %cst_45 = arith.constant dense<0.000000e+00> : vector<32x8xf32>
    %134 = tpu.matmul %131, %133, %cst_45 {dimension_numbers = #tpu.dot_dimension_numbers<[1], [0], [0], [1], [0, 0, 1, 1], [], []>} : vector<32x8xf32>, vector<8x8xf32>, vector<32x8xf32> -> vector<32x8xf32>
    %135 = arith.addf %129, %134 : vector<32x8xf32>
    %136 = vector.extract_strided_slice %126 {offsets = [1, 0, 0], sizes = [4, 8, 8], strides = [1, 1, 1]} : vector<8x8x8xf32> to vector<4x8x8xf32>
    %137 = vector.shape_cast %136 : vector<4x8x8xf32> to vector<32x8xf32>
    %138 = vector.extract_strided_slice %128 {offsets = [1, 0, 0], sizes = [1, 8, 8], strides = [1, 1, 1]} : vector<5x8x8xf32> to vector<1x8x8xf32>
    %139 = vector.shape_cast %138 : vector<1x8x8xf32> to vector<8x8xf32>
    %cst_46 = arith.constant dense<0.000000e+00> : vector<32x8xf32>
    %140 = tpu.matmul %137, %139, %cst_46 {dimension_numbers = #tpu.dot_dimension_numbers<[1], [0], [0], [1], [0, 0, 1, 1], [], []>} : vector<32x8xf32>, vector<8x8xf32>, vector<32x8xf32> -> vector<32x8xf32>
    %141 = arith.addf %135, %140 : vector<32x8xf32>
    %142 = vector.extract_strided_slice %126 {offsets = [2, 0, 0], sizes = [4, 8, 8], strides = [1, 1, 1]} : vector<8x8x8xf32> to vector<4x8x8xf32>
    %143 = vector.shape_cast %142 : vector<4x8x8xf32> to vector<32x8xf32>
    %144 = vector.extract_strided_slice %128 {offsets = [2, 0, 0], sizes = [1, 8, 8], strides = [1, 1, 1]} : vector<5x8x8xf32> to vector<1x8x8xf32>
    %145 = vector.shape_cast %144 : vector<1x8x8xf32> to vector<8x8xf32>
    %cst_47 = arith.constant dense<0.000000e+00> : vector<32x8xf32>
    %146 = tpu.matmul %143, %145, %cst_47 {dimension_numbers = #tpu.dot_dimension_numbers<[1], [0], [0], [1], [0, 0, 1, 1], [], []>} : vector<32x8xf32>, vector<8x8xf32>, vector<32x8xf32> -> vector<32x8xf32>
    %147 = arith.addf %141, %146 : vector<32x8xf32>
    %148 = vector.extract_strided_slice %126 {offsets = [3, 0, 0], sizes = [4, 8, 8], strides = [1, 1, 1]} : vector<8x8x8xf32> to vector<4x8x8xf32>
    %149 = vector.shape_cast %148 : vector<4x8x8xf32> to vector<32x8xf32>
    %150 = vector.extract_strided_slice %128 {offsets = [3, 0, 0], sizes = [1, 8, 8], strides = [1, 1, 1]} : vector<5x8x8xf32> to vector<1x8x8xf32>
    %151 = vector.shape_cast %150 : vector<1x8x8xf32> to vector<8x8xf32>
    %cst_48 = arith.constant dense<0.000000e+00> : vector<32x8xf32>
    %152 = tpu.matmul %149, %151, %cst_48 {dimension_numbers = #tpu.dot_dimension_numbers<[1], [0], [0], [1], [0, 0, 1, 1], [], []>} : vector<32x8xf32>, vector<8x8xf32>, vector<32x8xf32> -> vector<32x8xf32>
    %153 = arith.addf %147, %152 : vector<32x8xf32>
    %154 = vector.extract_strided_slice %126 {offsets = [4, 0, 0], sizes = [4, 8, 8], strides = [1, 1, 1]} : vector<8x8x8xf32> to vector<4x8x8xf32>
    %155 = vector.shape_cast %154 : vector<4x8x8xf32> to vector<32x8xf32>
    %156 = vector.extract_strided_slice %128 {offsets = [4, 0, 0], sizes = [1, 8, 8], strides = [1, 1, 1]} : vector<5x8x8xf32> to vector<1x8x8xf32>
    %157 = vector.shape_cast %156 : vector<1x8x8xf32> to vector<8x8xf32>
    %cst_49 = arith.constant dense<0.000000e+00> : vector<32x8xf32>
    %158 = tpu.matmul %155, %157, %cst_49 {dimension_numbers = #tpu.dot_dimension_numbers<[1], [0], [0], [1], [0, 0, 1, 1], [], []>} : vector<32x8xf32>, vector<8x8xf32>, vector<32x8xf32> -> vector<32x8xf32>
    %159 = arith.addf %153, %158 : vector<32x8xf32>
    %c3_50 = arith.constant 3 : index
    %c0_51 = arith.constant 0 : index
    %c0_52 = arith.constant 0 : index
    %160 = vector.load %arg2[%c3_50, %c0_51, %c0_52] : memref<4x1x8xf32, #tpu.memory_space<vmem>>, vector<1x1x8xf32>
    %161 = vector.shape_cast %160 : vector<1x1x8xf32> to vector<1x8xf32>
    %162 = vector.broadcast %161 : vector<1x8xf32> to vector<32x8xf32>
    %163 = arith.addf %159, %162 : vector<32x8xf32>
    %cst_53 = arith.constant 0.000000e+00 : f32
    %164 = vector.broadcast %cst_53 : f32 to vector<32x8xf32>
    %165 = arith.maximumf %163, %164 : vector<32x8xf32>
    %166 = vector.shape_cast %165 : vector<32x8xf32> to vector<4x8x8xf32>
    %167 = vector.shape_cast %166 : vector<4x8x8xf32> to vector<2x2x8x8xf32>
    %168 = vector.extract_strided_slice %167 {offsets = [0, 0, 0, 0], sizes = [2, 1, 8, 8], strides = [1, 1, 1, 1]} : vector<2x2x8x8xf32> to vector<2x1x8x8xf32>
    %169 = vector.shape_cast %168 : vector<2x1x8x8xf32> to vector<2x8x8xf32>
    %170 = vector.extract_strided_slice %167 {offsets = [0, 1, 0, 0], sizes = [2, 1, 8, 8], strides = [1, 1, 1, 1]} : vector<2x2x8x8xf32> to vector<2x1x8x8xf32>
    %171 = vector.shape_cast %170 : vector<2x1x8x8xf32> to vector<2x8x8xf32>
    %172 = arith.maximumf %169, %171 : vector<2x8x8xf32>
    %173 = tpu.iota {dimensions = array<i32: 0>} : vector<2x8xi32>
    %174 = tpu.iota {dimensions = array<i32: 1>} : vector<2x8xi32>
    %cst_54 = arith.constant 0.000000e+00 : f32
    %175 = vector.broadcast %cst_54 : f32 to vector<2x512xf32>
    %c4_i32 = arith.constant 4 : i32
    %176 = vector.broadcast %c4_i32 : i32 to vector<2x8xi32>
    %177 = arith.muli %173, %176 : vector<2x8xi32>
    %c0_i32 = arith.constant 0 : i32
    %178 = vector.broadcast %c0_i32 : i32 to vector<2x8xi32>
    %179 = arith.addi %177, %178 : vector<2x8xi32>
    %180 = arith.cmpi eq, %174, %179 : vector<2x8xi32>
    %181 = arith.extui %180 : vector<2x8xi1> to vector<2x8xi32>
    %182 = arith.sitofp %181 : vector<2x8xi32> to vector<2x8xf32>
    %c0_55 = arith.constant 0 : index
    %c0_56 = arith.constant 0 : index
    %c0_57 = arith.constant 0 : index
    %c0_58 = arith.constant 0 : index
    %183 = vector.load %arg3[%c0_55, %c0_56, %c0_57, %c0_58] : memref<4x2x8x512xf32, #tpu.memory_space<vmem>>, vector<1x2x8x512xf32>
    %184 = vector.shape_cast %183 : vector<1x2x8x512xf32> to vector<2x8x512xf32>
    %185 = vector.extract_strided_slice %172 {offsets = [0, 0, 0], sizes = [1, 8, 8], strides = [1, 1, 1]} : vector<2x8x8xf32> to vector<1x8x8xf32>
    %186 = vector.shape_cast %185 : vector<1x8x8xf32> to vector<8x8xf32>
    %cst_59 = arith.constant dense<0.000000e+00> : vector<2x8xf32>
    %187 = tpu.matmul %182, %186, %cst_59 {dimension_numbers = #tpu.dot_dimension_numbers<[1], [0], [0], [1], [0, 0, 1, 1], [], []>} : vector<2x8xf32>, vector<8x8xf32>, vector<2x8xf32> -> vector<2x8xf32>
    %188 = vector.extract_strided_slice %184 {offsets = [0, 0, 0], sizes = [1, 8, 512], strides = [1, 1, 1]} : vector<2x8x512xf32> to vector<1x8x512xf32>
    %189 = vector.shape_cast %188 : vector<1x8x512xf32> to vector<8x512xf32>
    %cst_60 = arith.constant dense<0.000000e+00> : vector<2x512xf32>
    %190 = tpu.matmul %187, %189, %cst_60 {dimension_numbers = #tpu.dot_dimension_numbers<[1], [0], [0], [1], [0, 0, 1, 1], [], []>} : vector<2x8xf32>, vector<8x512xf32>, vector<2x512xf32> -> vector<2x512xf32>
    %191 = arith.addf %175, %190 : vector<2x512xf32>
    %192 = vector.extract_strided_slice %172 {offsets = [1, 0, 0], sizes = [1, 8, 8], strides = [1, 1, 1]} : vector<2x8x8xf32> to vector<1x8x8xf32>
    %193 = vector.shape_cast %192 : vector<1x8x8xf32> to vector<8x8xf32>
    %cst_61 = arith.constant dense<0.000000e+00> : vector<2x8xf32>
    %194 = tpu.matmul %182, %193, %cst_61 {dimension_numbers = #tpu.dot_dimension_numbers<[1], [0], [0], [1], [0, 0, 1, 1], [], []>} : vector<2x8xf32>, vector<8x8xf32>, vector<2x8xf32> -> vector<2x8xf32>
    %195 = vector.extract_strided_slice %184 {offsets = [1, 0, 0], sizes = [1, 8, 512], strides = [1, 1, 1]} : vector<2x8x512xf32> to vector<1x8x512xf32>
    %196 = vector.shape_cast %195 : vector<1x8x512xf32> to vector<8x512xf32>
    %cst_62 = arith.constant dense<0.000000e+00> : vector<2x512xf32>
    %197 = tpu.matmul %194, %196, %cst_62 {dimension_numbers = #tpu.dot_dimension_numbers<[1], [0], [0], [1], [0, 0, 1, 1], [], []>} : vector<2x8xf32>, vector<8x512xf32>, vector<2x512xf32> -> vector<2x512xf32>
    %198 = arith.addf %191, %197 : vector<2x512xf32>
    %c4_i32_63 = arith.constant 4 : i32
    %199 = vector.broadcast %c4_i32_63 : i32 to vector<2x8xi32>
    %200 = arith.muli %173, %199 : vector<2x8xi32>
    %c1_i32 = arith.constant 1 : i32
    %201 = vector.broadcast %c1_i32 : i32 to vector<2x8xi32>
    %202 = arith.addi %200, %201 : vector<2x8xi32>
    %203 = arith.cmpi eq, %174, %202 : vector<2x8xi32>
    %204 = arith.extui %203 : vector<2x8xi1> to vector<2x8xi32>
    %205 = arith.sitofp %204 : vector<2x8xi32> to vector<2x8xf32>
    %c1_64 = arith.constant 1 : index
    %c0_65 = arith.constant 0 : index
    %c0_66 = arith.constant 0 : index
    %c0_67 = arith.constant 0 : index
    %206 = vector.load %arg3[%c1_64, %c0_65, %c0_66, %c0_67] : memref<4x2x8x512xf32, #tpu.memory_space<vmem>>, vector<1x2x8x512xf32>
    %207 = vector.shape_cast %206 : vector<1x2x8x512xf32> to vector<2x8x512xf32>
    %208 = vector.extract_strided_slice %172 {offsets = [0, 0, 0], sizes = [1, 8, 8], strides = [1, 1, 1]} : vector<2x8x8xf32> to vector<1x8x8xf32>
    %209 = vector.shape_cast %208 : vector<1x8x8xf32> to vector<8x8xf32>
    %cst_68 = arith.constant dense<0.000000e+00> : vector<2x8xf32>
    %210 = tpu.matmul %205, %209, %cst_68 {dimension_numbers = #tpu.dot_dimension_numbers<[1], [0], [0], [1], [0, 0, 1, 1], [], []>} : vector<2x8xf32>, vector<8x8xf32>, vector<2x8xf32> -> vector<2x8xf32>
    %211 = vector.extract_strided_slice %207 {offsets = [0, 0, 0], sizes = [1, 8, 512], strides = [1, 1, 1]} : vector<2x8x512xf32> to vector<1x8x512xf32>
    %212 = vector.shape_cast %211 : vector<1x8x512xf32> to vector<8x512xf32>
    %cst_69 = arith.constant dense<0.000000e+00> : vector<2x512xf32>
    %213 = tpu.matmul %210, %212, %cst_69 {dimension_numbers = #tpu.dot_dimension_numbers<[1], [0], [0], [1], [0, 0, 1, 1], [], []>} : vector<2x8xf32>, vector<8x512xf32>, vector<2x512xf32> -> vector<2x512xf32>
    %214 = arith.addf %198, %213 : vector<2x512xf32>
    %215 = vector.extract_strided_slice %172 {offsets = [1, 0, 0], sizes = [1, 8, 8], strides = [1, 1, 1]} : vector<2x8x8xf32> to vector<1x8x8xf32>
    %216 = vector.shape_cast %215 : vector<1x8x8xf32> to vector<8x8xf32>
    %cst_70 = arith.constant dense<0.000000e+00> : vector<2x8xf32>
    %217 = tpu.matmul %205, %216, %cst_70 {dimension_numbers = #tpu.dot_dimension_numbers<[1], [0], [0], [1], [0, 0, 1, 1], [], []>} : vector<2x8xf32>, vector<8x8xf32>, vector<2x8xf32> -> vector<2x8xf32>
    %218 = vector.extract_strided_slice %207 {offsets = [1, 0, 0], sizes = [1, 8, 512], strides = [1, 1, 1]} : vector<2x8x512xf32> to vector<1x8x512xf32>
    %219 = vector.shape_cast %218 : vector<1x8x512xf32> to vector<8x512xf32>
    %cst_71 = arith.constant dense<0.000000e+00> : vector<2x512xf32>
    %220 = tpu.matmul %217, %219, %cst_71 {dimension_numbers = #tpu.dot_dimension_numbers<[1], [0], [0], [1], [0, 0, 1, 1], [], []>} : vector<2x8xf32>, vector<8x512xf32>, vector<2x512xf32> -> vector<2x512xf32>
    %221 = arith.addf %214, %220 : vector<2x512xf32>
    %c4_i32_72 = arith.constant 4 : i32
    %222 = vector.broadcast %c4_i32_72 : i32 to vector<2x8xi32>
    %223 = arith.muli %173, %222 : vector<2x8xi32>
    %c2_i32 = arith.constant 2 : i32
    %224 = vector.broadcast %c2_i32 : i32 to vector<2x8xi32>
    %225 = arith.addi %223, %224 : vector<2x8xi32>
    %226 = arith.cmpi eq, %174, %225 : vector<2x8xi32>
    %227 = arith.extui %226 : vector<2x8xi1> to vector<2x8xi32>
    %228 = arith.sitofp %227 : vector<2x8xi32> to vector<2x8xf32>
    %c2_73 = arith.constant 2 : index
    %c0_74 = arith.constant 0 : index
    %c0_75 = arith.constant 0 : index
    %c0_76 = arith.constant 0 : index
    %229 = vector.load %arg3[%c2_73, %c0_74, %c0_75, %c0_76] : memref<4x2x8x512xf32, #tpu.memory_space<vmem>>, vector<1x2x8x512xf32>
    %230 = vector.shape_cast %229 : vector<1x2x8x512xf32> to vector<2x8x512xf32>
    %231 = vector.extract_strided_slice %172 {offsets = [0, 0, 0], sizes = [1, 8, 8], strides = [1, 1, 1]} : vector<2x8x8xf32> to vector<1x8x8xf32>
    %232 = vector.shape_cast %231 : vector<1x8x8xf32> to vector<8x8xf32>
    %cst_77 = arith.constant dense<0.000000e+00> : vector<2x8xf32>
    %233 = tpu.matmul %228, %232, %cst_77 {dimension_numbers = #tpu.dot_dimension_numbers<[1], [0], [0], [1], [0, 0, 1, 1], [], []>} : vector<2x8xf32>, vector<8x8xf32>, vector<2x8xf32> -> vector<2x8xf32>
    %234 = vector.extract_strided_slice %230 {offsets = [0, 0, 0], sizes = [1, 8, 512], strides = [1, 1, 1]} : vector<2x8x512xf32> to vector<1x8x512xf32>
    %235 = vector.shape_cast %234 : vector<1x8x512xf32> to vector<8x512xf32>
    %cst_78 = arith.constant dense<0.000000e+00> : vector<2x512xf32>
    %236 = tpu.matmul %233, %235, %cst_78 {dimension_numbers = #tpu.dot_dimension_numbers<[1], [0], [0], [1], [0, 0, 1, 1], [], []>} : vector<2x8xf32>, vector<8x512xf32>, vector<2x512xf32> -> vector<2x512xf32>
    %237 = arith.addf %221, %236 : vector<2x512xf32>
    %238 = vector.extract_strided_slice %172 {offsets = [1, 0, 0], sizes = [1, 8, 8], strides = [1, 1, 1]} : vector<2x8x8xf32> to vector<1x8x8xf32>
    %239 = vector.shape_cast %238 : vector<1x8x8xf32> to vector<8x8xf32>
    %cst_79 = arith.constant dense<0.000000e+00> : vector<2x8xf32>
    %240 = tpu.matmul %228, %239, %cst_79 {dimension_numbers = #tpu.dot_dimension_numbers<[1], [0], [0], [1], [0, 0, 1, 1], [], []>} : vector<2x8xf32>, vector<8x8xf32>, vector<2x8xf32> -> vector<2x8xf32>
    %241 = vector.extract_strided_slice %230 {offsets = [1, 0, 0], sizes = [1, 8, 512], strides = [1, 1, 1]} : vector<2x8x512xf32> to vector<1x8x512xf32>
    %242 = vector.shape_cast %241 : vector<1x8x512xf32> to vector<8x512xf32>
    %cst_80 = arith.constant dense<0.000000e+00> : vector<2x512xf32>
    %243 = tpu.matmul %240, %242, %cst_80 {dimension_numbers = #tpu.dot_dimension_numbers<[1], [0], [0], [1], [0, 0, 1, 1], [], []>} : vector<2x8xf32>, vector<8x512xf32>, vector<2x512xf32> -> vector<2x512xf32>
    %244 = arith.addf %237, %243 : vector<2x512xf32>
    %c4_i32_81 = arith.constant 4 : i32
    %245 = vector.broadcast %c4_i32_81 : i32 to vector<2x8xi32>
    %246 = arith.muli %173, %245 : vector<2x8xi32>
    %c3_i32 = arith.constant 3 : i32
    %247 = vector.broadcast %c3_i32 : i32 to vector<2x8xi32>
    %248 = arith.addi %246, %247 : vector<2x8xi32>
    %249 = arith.cmpi eq, %174, %248 : vector<2x8xi32>
    %250 = arith.extui %249 : vector<2x8xi1> to vector<2x8xi32>
    %251 = arith.sitofp %250 : vector<2x8xi32> to vector<2x8xf32>
    %c3_82 = arith.constant 3 : index
    %c0_83 = arith.constant 0 : index
    %c0_84 = arith.constant 0 : index
    %c0_85 = arith.constant 0 : index
    %252 = vector.load %arg3[%c3_82, %c0_83, %c0_84, %c0_85] : memref<4x2x8x512xf32, #tpu.memory_space<vmem>>, vector<1x2x8x512xf32>
    %253 = vector.shape_cast %252 : vector<1x2x8x512xf32> to vector<2x8x512xf32>
    %254 = vector.extract_strided_slice %172 {offsets = [0, 0, 0], sizes = [1, 8, 8], strides = [1, 1, 1]} : vector<2x8x8xf32> to vector<1x8x8xf32>
    %255 = vector.shape_cast %254 : vector<1x8x8xf32> to vector<8x8xf32>
    %cst_86 = arith.constant dense<0.000000e+00> : vector<2x8xf32>
    %256 = tpu.matmul %251, %255, %cst_86 {dimension_numbers = #tpu.dot_dimension_numbers<[1], [0], [0], [1], [0, 0, 1, 1], [], []>} : vector<2x8xf32>, vector<8x8xf32>, vector<2x8xf32> -> vector<2x8xf32>
    %257 = vector.extract_strided_slice %253 {offsets = [0, 0, 0], sizes = [1, 8, 512], strides = [1, 1, 1]} : vector<2x8x512xf32> to vector<1x8x512xf32>
    %258 = vector.shape_cast %257 : vector<1x8x512xf32> to vector<8x512xf32>
    %cst_87 = arith.constant dense<0.000000e+00> : vector<2x512xf32>
    %259 = tpu.matmul %256, %258, %cst_87 {dimension_numbers = #tpu.dot_dimension_numbers<[1], [0], [0], [1], [0, 0, 1, 1], [], []>} : vector<2x8xf32>, vector<8x512xf32>, vector<2x512xf32> -> vector<2x512xf32>
    %260 = arith.addf %244, %259 : vector<2x512xf32>
    %261 = vector.extract_strided_slice %172 {offsets = [1, 0, 0], sizes = [1, 8, 8], strides = [1, 1, 1]} : vector<2x8x8xf32> to vector<1x8x8xf32>
    %262 = vector.shape_cast %261 : vector<1x8x8xf32> to vector<8x8xf32>
    %cst_88 = arith.constant dense<0.000000e+00> : vector<2x8xf32>
    %263 = tpu.matmul %251, %262, %cst_88 {dimension_numbers = #tpu.dot_dimension_numbers<[1], [0], [0], [1], [0, 0, 1, 1], [], []>} : vector<2x8xf32>, vector<8x8xf32>, vector<2x8xf32> -> vector<2x8xf32>
    %264 = vector.extract_strided_slice %253 {offsets = [1, 0, 0], sizes = [1, 8, 512], strides = [1, 1, 1]} : vector<2x8x512xf32> to vector<1x8x512xf32>
    %265 = vector.shape_cast %264 : vector<1x8x512xf32> to vector<8x512xf32>
    %cst_89 = arith.constant dense<0.000000e+00> : vector<2x512xf32>
    %266 = tpu.matmul %263, %265, %cst_89 {dimension_numbers = #tpu.dot_dimension_numbers<[1], [0], [0], [1], [0, 0, 1, 1], [], []>} : vector<2x8xf32>, vector<8x512xf32>, vector<2x512xf32> -> vector<2x512xf32>
    %267 = arith.addf %260, %266 : vector<2x512xf32>
    %c0_90 = arith.constant 0 : index
    %c0_91 = arith.constant 0 : index
    %268 = vector.load %arg4[%c0_90, %c0_91] : memref<1x512xf32, #tpu.memory_space<vmem>>, vector<1x512xf32>
    %269 = vector.broadcast %268 : vector<1x512xf32> to vector<2x512xf32>
    %270 = arith.addf %267, %269 : vector<2x512xf32>
    %cst_92 = arith.constant 0.000000e+00 : f32
    %271 = vector.broadcast %cst_92 : f32 to vector<2x512xf32>
    %272 = arith.maximumf %270, %271 : vector<2x512xf32>
    %c0_93 = arith.constant 0 : index
    %c0_94 = arith.constant 0 : index
    %273 = vector.load %arg5[%c0_93, %c0_94] : memref<512x8xf32, #tpu.memory_space<vmem>>, vector<512x8xf32>
    %cst_95 = arith.constant dense<0.000000e+00> : vector<2x8xf32>
    %274 = tpu.matmul %272, %273, %cst_95 {dimension_numbers = #tpu.dot_dimension_numbers<[1], [0], [0], [1], [0, 0, 1, 1], [], []>} : vector<2x512xf32>, vector<512x8xf32>, vector<2x8xf32> -> vector<2x8xf32>
    %c0_96 = arith.constant 0 : index
    %c0_97 = arith.constant 0 : index
    %275 = vector.load %arg6[%c0_96, %c0_97] : memref<1x8xf32, #tpu.memory_space<vmem>>, vector<1x8xf32>
    %276 = vector.broadcast %275 : vector<1x8xf32> to vector<2x8xf32>
    %277 = arith.addf %274, %276 : vector<2x8xf32>
    %c0_98 = arith.constant 0 : index
    %c0_99 = arith.constant 0 : index
    %278 = vector.load %arg7[%c0_98, %c0_99] : memref<2x8xf32, #tpu.memory_space<vmem>>, vector<2x8xf32>
    tpu.vector_store %arg7[%c0_98, %c0_99], %277 {strides = array<i32>} : memref<2x8xf32, #tpu.memory_space<vmem>>, vector<2x8xf32>,
    return
  }
}

</mosaic_0001>

<llo_original>
// kernel: cnn_imu_forward.1
$region0: #{cnn_imu_forward.1}
  #allocation0 [shape = 'u32[]', space=smem, size = 0x4, offset = 0x4, fixed_abs, tag = 'smem constant byte address 0x4 - core index']
  #allocation1 [shape = 'u32[72,128]{1,0:T(1,128)}', space=vmem, size = 0x9000, scoped, tag = 'internal scratch']
  %s0 = inlined_call_operand.vmem [shape: f32[32,8,8], index: 0, kind: input, shape index: {}]
  %s1 = inlined_call_operand.vmem [shape: f32[4,5,8,8], index: 1, kind: input, shape index: {}]
  %s2 = inlined_call_operand.vmem [shape: f32[4,1,8], index: 2, kind: input, shape index: {}]
  %s3 = inlined_call_operand.vmem [shape: f32[4,2,8,512], index: 3, kind: input, shape index: {}]
  %s4 = inlined_call_operand.vmem [shape: f32[1,512], index: 4, kind: input, shape index: {}]
  %s5 = inlined_call_operand.vmem [shape: f32[512,8], index: 5, kind: input, shape index: {}]
  %s6 = inlined_call_operand.vmem [shape: f32[1,8], index: 6, kind: input, shape index: {}]
  %s7 = inlined_call_operand.hbm [shape: f32[2,8], index: 7, kind: output, shape index: {}]
  %s8 = sld [smem:[#allocation0]]
  $region38: #{cnn_imu_forward.1} parent=0
    _
  %s10 = ssub.s32 1, %s8
  %s11 = scalar_select 0, %s10, %s8
  $region1: #{cnn_imu_forward.1} parent=0
    #allocation2 [shape = 'u8[1024]{0}', space=vmem, size = 0x400, scoped, tag = 'output window, operand 0, single buffered']
    #allocation3 [shape = 's32[1]{0}', space=sflag, size = 0x4, scoped, tag = 'scoped memory for cnn_imu_forward.1']
    %12 = vsyncpa [#allocation3], 0
    // Predicated region
    $region2: #{cnn_imu_forward.1} parent=1 // pred_check
      _
    $region3: #{cnn_imu_forward.1} parent=1 // pred_check_branch
      %14 = sbr.rel (0) target = $region5
    $region4: #{cnn_imu_forward.1} parent=1 // pred_region
      _
    $region5: #{cnn_imu_forward.1} parent=1 // pred_fallthru
      _
    // Predicated region
    $region6: #{cnn_imu_forward.1} parent=1 // pred_check
      _
    $region7: #{cnn_imu_forward.1} parent=1 // pred_check_branch
      %16 = sbr.rel (0) target = $region9
    $region8: #{cnn_imu_forward.1} parent=1 // pred_region
      _
    $region9: #{cnn_imu_forward.1} parent=1 // pred_fallthru
      _
    // Predicated region
    $region10: #{cnn_imu_forward.1} parent=1 // pred_check
      _
    $region11: #{cnn_imu_forward.1} parent=1 // pred_check_branch
      %18 = sbr.rel (0) target = $region13
    $region12: #{cnn_imu_forward.1} parent=1 // pred_region
      _
    $region13: #{cnn_imu_forward.1} parent=1 // pred_fallthru
      _
    // Predicated region
    $region14: #{cnn_imu_forward.1} parent=1 // pred_check
      _
    $region15: #{cnn_imu_forward.1} parent=1 // pred_check_branch
      %20 = sbr.rel (0) target = $region17
    $region16: #{cnn_imu_forward.1} parent=1 // pred_region
      _
    $region17: #{cnn_imu_forward.1} parent=1 // pred_fallthru
      _
    // Predicated region
    $region18: #{cnn_imu_forward.1} parent=1 // pred_check
      _
    $region19: #{cnn_imu_forward.1} parent=1 // pred_check_branch
      %22 = sbr.rel (0) target = $region21
    $region20: #{cnn_imu_forward.1} parent=1 // pred_region
      _
    $region21: #{cnn_imu_forward.1} parent=1 // pred_fallthru
      _
    // Predicated region
    $region22: #{cnn_imu_forward.1} parent=1 // pred_check
      _
    $region23: #{cnn_imu_forward.1} parent=1 // pred_check_branch
      %24 = sbr.rel (0) target = $region25
    $region24: #{cnn_imu_forward.1} parent=1 // pred_region
      _
    $region25: #{cnn_imu_forward.1} parent=1 // pred_fallthru
      _
    // Predicated region
    $region26: #{cnn_imu_forward.1} parent=1 // pred_check
      _
    $region27: #{cnn_imu_forward.1} parent=1 // pred_check_branch
      %26 = sbr.rel (0) target = $region29
    $region28: #{cnn_imu_forward.1} parent=1 // pred_region
      _
    $region29: #{cnn_imu_forward.1} parent=1 // pred_fallthru
      _
    %v27 = vld [vmem:[%s0] sm:$0xff]
    %v28 = vld [vmem:[%s0 + $0x8] sm:$0xff]
    %v29 = vld [vmem:[%s0 + $0x10] sm:$0xff]
    %v30 = vld [vmem:[%s0 + $0x18] sm:$0xff]
    %v31 = vld [vmem:[%s0 + $0x20] sm:$0xff]
    %v32 = vld [vmem:[%s0 + $0x28] sm:$0xff]
    %v33 = vld [vmem:[%s0 + $0x30] sm:$0xff]
    %v34 = vld [vmem:[%s0 + $0x38] sm:$0xff]
    %v35 = vld [vmem:[%s0 + $0x40] sm:$0xff]
    %v36 = vld [vmem:[%s0 + $0x48] sm:$0xff]
    %v37 = vld [vmem:[%s0 + $0x50] sm:$0xff]
    %v38 = vld [vmem:[%s0 + $0x58] sm:$0xff]
    %v39 = vld [vmem:[%s0 + $0x60] sm:$0xff]
    %v40 = vld [vmem:[%s0 + $0x68] sm:$0xff]
    %v41 = vld [vmem:[%s0 + $0x70] sm:$0xff]
    %v42 = vld [vmem:[%s0 + $0x78] sm:$0xff]
    %v43 = vld [vmem:[%s0 + $0x80] sm:$0xff]
    %v44 = vld [vmem:[%s0 + $0x88] sm:$0xff]
    %v45 = vld [vmem:[%s0 + $0x90] sm:$0xff]
    %v46 = vld [vmem:[%s0 + $0x98] sm:$0xff]
    %v47 = vld [vmem:[%s0 + $0xa0] sm:$0xff]
    %v48 = vld [vmem:[%s0 + $0xa8] sm:$0xff]
    %v49 = vld [vmem:[%s0 + $0xb0] sm:$0xff]
    %v50 = vld [vmem:[%s0 + $0xb8] sm:$0xff]
    %v51 = vld [vmem:[%s0 + $0xc0] sm:$0xff]
    %v52 = vld [vmem:[%s0 + $0xc8] sm:$0xff]
    %v53 = vld [vmem:[%s0 + $0xd0] sm:$0xff]
    %v54 = vld [vmem:[%s0 + $0xd8] sm:$0xff]
    %v55 = vld [vmem:[%s0 + $0xe0] sm:$0xff]
    %v56 = vld [vmem:[%s0 + $0xe8] sm:$0xff]
    %v57 = vld [vmem:[%s0 + $0xf0] sm:$0xff]
    %v58 = vld [vmem:[%s0 + $0xf8] sm:$0xff]
    %v59 = vld [vmem:[%s1] sm:$0xff]
    %v60 = vld [vmem:[%s1 + $0x8] sm:$0xff]
    %v61 = vld [vmem:[%s1 + $0x10] sm:$0xff]
    %v62 = vld [vmem:[%s1 + $0x18] sm:$0xff]
    %v63 = vld [vmem:[%s1 + $0x20] sm:$0xff]
    %vm64 = vcmask 64512
    %v66 = vsel %vm64, %v28, 0
    %v69 = vsel %vm64, %v29, 0
    %v72 = vsel %vm64, %v30, 0
    %v75 = vsel %vm64, %v31, 0
    %v78 = vsel %vm64, %v32, 0
    %v81 = vsel %vm64, %v33, 0
    %v84 = vsel %vm64, %v34, 0
    %v87 = vsel %vm64, %v35, 0
    %v90 = vsel %vm64, %v36, 0
    %v93 = vsel %vm64, %v37, 0
    %v96 = vsel %vm64, %v38, 0
    %v99 = vsel %vm64, %v39, 0
    %v102 = vsel %vm64, %v40, 0
    %v105 = vsel %vm64, %v41, 0
    %v108 = vsel %vm64, %v42, 0
    %v111 = vsel %vm64, %v43, 0
    %v114 = vsel %vm64, %v44, 0
    %v117 = vsel %vm64, %v45, 0
    %v120 = vsel %vm64, %v46, 0
    %v123 = vsel %vm64, %v47, 0
    %v126 = vsel %vm64, %v48, 0
    %v129 = vsel %vm64, %v49, 0
    %v132 = vsel %vm64, %v50, 0
    %v135 = vsel %vm64, %v51, 0
    %v138 = vsel %vm64, %v52, 0
    %v141 = vsel %vm64, %v53, 0
    %v144 = vsel %vm64, %v54, 0
    %v147 = vsel %vm64, %v55, 0
    %149 = vmatpush.msra.mxu0 0.0
    %150 = vmatpush.msra.mxu0 0.0
    %151 = vmatpush.msra.mxu0 0.0
    %152 = vmatpush.msra.mxu0 0.0
    %153 = vmatpush.msra.mxu0 0.0
    %154 = vmatpush.msra.mxu0 0.0
    %155 = vmatpush.msra.mxu0 0.0
    %156 = vmatpush.msra.mxu0 0.0
    %157 = vmatpush.msra.mxu0 0.0
    %158 = vmatpush.msra.mxu0 0.0
    %159 = vmatpush.msra.mxu0 0.0
    %160 = vmatpush.msra.mxu0 0.0
    %161 = vmatpush.msra.mxu0 0.0
    %162 = vmatpush.msra.mxu0 0.0
    %163 = vmatpush.msra.mxu0 0.0
    %164 = vmatpush.msra.mxu0 %v60
    %165 = vmatmul.f32.gmra.mxu0 %v66
    %v166 = vpop.f32.mrf.mxu0
    %v167 = vadd.f32 0.0, %v166
    %168 = vmatmul.f32.gmra.mxu0 %v69
    %v169 = vpop.f32.mrf.mxu0
    %v170 = vadd.f32 0.0, %v169
    %171 = vmatmul.f32.gmra.mxu0 %v72
    %v172 = vpop.f32.mrf.mxu0
    %v173 = vadd.f32 0.0, %v172
    %174 = vmatmul.f32.gmra.mxu0 %v75
    %v175 = vpop.f32.mrf.mxu0
    %v176 = vadd.f32 0.0, %v175
    %177 = vmatmul.f32.gmra.mxu0 %v78
    %v178 = vpop.f32.mrf.mxu0
    %v179 = vadd.f32 0.0, %v178
    %180 = vmatmul.f32.gmra.mxu0 %v81
    %v181 = vpop.f32.mrf.mxu0
    %v182 = vadd.f32 0.0, %v181
    %183 = vmatmul.f32.gmra.mxu0 %v84
    %v184 = vpop.f32.mrf.mxu0
    %v185 = vadd.f32 0.0, %v184
    %186 = vmatmul.f32.gmra.mxu0 %v87
    %v187 = vpop.f32.mrf.mxu0
    %v188 = vadd.f32 0.0, %v187
    %189 = vmatmul.f32.gmra.mxu0 %v90
    %v190 = vpop.f32.mrf.mxu0
    %v191 = vadd.f32 0.0, %v190
    %192 = vmatmul.f32.gmra.mxu0 %v93
    %v193 = vpop.f32.mrf.mxu0
    %v194 = vadd.f32 0.0, %v193
    %195 = vmatmul.f32.gmra.mxu0 %v96
    %v196 = vpop.f32.mrf.mxu0
    %v197 = vadd.f32 0.0, %v196
    %198 = vmatmul.f32.gmra.mxu0 %v99
    %v199 = vpop.f32.mrf.mxu0
    %v200 = vadd.f32 0.0, %v199
    %201 = vmatmul.f32.gmra.mxu0 %v102
    %v202 = vpop.f32.mrf.mxu0
    %v203 = vadd.f32 0.0, %v202
    %204 = vmatmul.f32.gmra.mxu0 %v105
    %v205 = vpop.f32.mrf.mxu0
    %v206 = vadd.f32 0.0, %v205
    %207 = vmatmul.f32.gmra.mxu0 %v108
    %v208 = vpop.f32.mrf.mxu0
    %v209 = vadd.f32 0.0, %v208
    %210 = vmatmul.f32.gmra.mxu0 %v111
    %v211 = vpop.f32.mrf.mxu0
    %v212 = vadd.f32 0.0, %v211
    %213 = vmatmul.f32.gmra.mxu0 %v114
    %v214 = vpop.f32.mrf.mxu0
    %v215 = vadd.f32 0.0, %v214
    %216 = vmatmul.f32.gmra.mxu0 %v117
    %v217 = vpop.f32.mrf.mxu0
    %v218 = vadd.f32 0.0, %v217
    %219 = vmatmul.f32.gmra.mxu0 %v120
    %v220 = vpop.f32.mrf.mxu0
    %v221 = vadd.f32 0.0, %v220
    %222 = vmatmul.f32.gmra.mxu0 %v123
    %v223 = vpop.f32.mrf.mxu0
    %v224 = vadd.f32 0.0, %v223
    %225 = vmatmul.f32.gmra.mxu0 %v126
    %v226 = vpop.f32.mrf.mxu0
    %v227 = vadd.f32 0.0, %v226
    %228 = vmatmul.f32.gmra.mxu0 %v129
    %v229 = vpop.f32.mrf.mxu0
    %v230 = vadd.f32 0.0, %v229
    %231 = vmatmul.f32.gmra.mxu0 %v132
    %v232 = vpop.f32.mrf.mxu0
    %v233 = vadd.f32 0.0, %v232
    %234 = vmatmul.f32.gmra.mxu0 %v135
    %v235 = vpop.f32.mrf.mxu0
    %v236 = vadd.f32 0.0, %v235
    %237 = vmatmul.f32.gmra.mxu0 %v138
    %v238 = vpop.f32.mrf.mxu0
    %v239 = vadd.f32 0.0, %v238
    %240 = vmatmul.f32.gmra.mxu0 %v141
    %v241 = vpop.f32.mrf.mxu0
    %v242 = vadd.f32 0.0, %v241
    %243 = vmatmul.f32.gmra.mxu0 %v144
    %v244 = vpop.f32.mrf.mxu0
    %v245 = vadd.f32 0.0, %v244
    %246 = vmatmul.f32.gmra.mxu0 %v147
    %v247 = vpop.f32.mrf.mxu0
    %v248 = vadd.f32 0.0, %v247
    %249 = vdwg.mxu0
    %v251 = vsel %vm64, %v27, 0
    %253 = vmatpush.msra.mxu0 0.0
    %254 = vmatpush.msra.mxu0 0.0
    %255 = vmatpush.msra.mxu0 0.0
    %256 = vmatpush.msra.mxu0 0.0
    %257 = vmatpush.msra.mxu0 0.0
    %258 = vmatpush.msra.mxu0 0.0
    %259 = vmatpush.msra.mxu0 0.0
    %260 = vmatpush.msra.mxu0 0.0
    %261 = vmatpush.msra.mxu0 0.0
    %262 = vmatpush.msra.mxu0 0.0
    %263 = vmatpush.msra.mxu0 0.0
    %264 = vmatpush.msra.mxu0 0.0
    %265 = vmatpush.msra.mxu0 0.0
    %266 = vmatpush.msra.mxu0 0.0
    %267 = vmatpush.msra.mxu0 0.0
    %268 = vmatpush.msra.mxu0 %v59
    %269 = vmatmul.f32.gmra.mxu0 %v251
    %v270 = vpop.f32.mrf.mxu0
    %v271 = vadd.f32 %v167, %v270
    %272 = vmatmul.f32.gmra.mxu0 %v66
    %v273 = vpop.f32.mrf.mxu0
    %v274 = vadd.f32 %v170, %v273
    %275 = vmatmul.f32.gmra.mxu0 %v69
    %v276 = vpop.f32.mrf.mxu0
    %v277 = vadd.f32 %v173, %v276
    %278 = vmatmul.f32.gmra.mxu0 %v72
    %v279 = vpop.f32.mrf.mxu0
    %v280 = vadd.f32 %v176, %v279
    %281 = vmatmul.f32.gmra.mxu0 %v75
    %v282 = vpop.f32.mrf.mxu0
    %v283 = vadd.f32 %v179, %v282
    %284 = vmatmul.f32.gmra.mxu0 %v78
    %v285 = vpop.f32.mrf.mxu0
    %v286 = vadd.f32 %v182, %v285
    %287 = vmatmul.f32.gmra.mxu0 %v81
    %v288 = vpop.f32.mrf.mxu0
    %v289 = vadd.f32 %v185, %v288
    %290 = vmatmul.f32.gmra.mxu0 %v84
    %v291 = vpop.f32.mrf.mxu0
    %v292 = vadd.f32 %v188, %v291
    %293 = vmatmul.f32.gmra.mxu0 %v87
    %v294 = vpop.f32.mrf.mxu0
    %v295 = vadd.f32 %v191, %v294
    %296 = vmatmul.f32.gmra.mxu0 %v90
    %v297 = vpop.f32.mrf.mxu0
    %v298 = vadd.f32 %v194, %v297
    %299 = vmatmul.f32.gmra.mxu0 %v93
    %v300 = vpop.f32.mrf.mxu0
    %v301 = vadd.f32 %v197, %v300
    %302 = vmatmul.f32.gmra.mxu0 %v96
    %v303 = vpop.f32.mrf.mxu0
    %v304 = vadd.f32 %v200, %v303
    %305 = vmatmul.f32.gmra.mxu0 %v99
    %v306 = vpop.f32.mrf.mxu0
    %v307 = vadd.f32 %v203, %v306
    %308 = vmatmul.f32.gmra.mxu0 %v102
    %v309 = vpop.f32.mrf.mxu0
    %v310 = vadd.f32 %v206, %v309
    %311 = vmatmul.f32.gmra.mxu0 %v105
    %v312 = vpop.f32.mrf.mxu0
    %v313 = vadd.f32 %v209, %v312
    %314 = vmatmul.f32.gmra.mxu0 %v108
    %v315 = vpop.f32.mrf.mxu0
    %v316 = vadd.f32 %v212, %v315
    %317 = vmatmul.f32.gmra.mxu0 %v111
    %v318 = vpop.f32.mrf.mxu0
    %v319 = vadd.f32 %v215, %v318
    %320 = vmatmul.f32.gmra.mxu0 %v114
    %v321 = vpop.f32.mrf.mxu0
    %v322 = vadd.f32 %v218, %v321
    %323 = vmatmul.f32.gmra.mxu0 %v117
    %v324 = vpop.f32.mrf.mxu0
    %v325 = vadd.f32 %v221, %v324
    %326 = vmatmul.f32.gmra.mxu0 %v120
    %v327 = vpop.f32.mrf.mxu0
    %v328 = vadd.f32 %v224, %v327
    %329 = vmatmul.f32.gmra.mxu0 %v123
    %v330 = vpop.f32.mrf.mxu0
    %v331 = vadd.f32 %v227, %v330
    %332 = vmatmul.f32.gmra.mxu0 %v126
    %v333 = vpop.f32.mrf.mxu0
    %v334 = vadd.f32 %v230, %v333
    %335 = vmatmul.f32.gmra.mxu0 %v129
    %v336 = vpop.f32.mrf.mxu0
    %v337 = vadd.f32 %v233, %v336
    %338 = vmatmul.f32.gmra.mxu0 %v132
    %v339 = vpop.f32.mrf.mxu0
    %v340 = vadd.f32 %v236, %v339
    %341 = vmatmul.f32.gmra.mxu0 %v135
    %v342 = vpop.f32.mrf.mxu0
    %v343 = vadd.f32 %v239, %v342
    %344 = vmatmul.f32.gmra.mxu0 %v138
    %v345 = vpop.f32.mrf.mxu0
    %v346 = vadd.f32 %v242, %v345
    %347 = vmatmul.f32.gmra.mxu0 %v141
    %v348 = vpop.f32.mrf.mxu0
    %v349 = vadd.f32 %v245, %v348
    %350 = vmatmul.f32.gmra.mxu0 %v144
    %v351 = vpop.f32.mrf.mxu0
    %v352 = vadd.f32 %v248, %v351
    %353 = vdwg.mxu0
    %v355 = vsel %vm64, %v56, 0
    %357 = vmatpush.msra.mxu0 0.0
    %358 = vmatpush.msra.mxu0 0.0
    %359 = vmatpush.msra.mxu0 0.0
    %360 = vmatpush.msra.mxu0 0.0
    %361 = vmatpush.msra.mxu0 0.0
    %362 = vmatpush.msra.mxu0 0.0
    %363 = vmatpush.msra.mxu0 0.0
    %364 = vmatpush.msra.mxu0 0.0
    %365 = vmatpush.msra.mxu0 0.0
    %366 = vmatpush.msra.mxu0 0.0
    %367 = vmatpush.msra.mxu0 0.0
    %368 = vmatpush.msra.mxu0 0.0
    %369 = vmatpush.msra.mxu0 0.0
    %370 = vmatpush.msra.mxu0 0.0
    %371 = vmatpush.msra.mxu0 0.0
    %372 = vmatpush.msra.mxu0 %v61
    %373 = vmatmul.f32.gmra.mxu0 %v69
    %v374 = vpop.f32.mrf.mxu0
    %v375 = vadd.f32 0.0, %v374
    %376 = vmatmul.f32.gmra.mxu0 %v72
    %v377 = vpop.f32.mrf.mxu0
    %v378 = vadd.f32 0.0, %v377
    %379 = vmatmul.f32.gmra.mxu0 %v75
    %v380 = vpop.f32.mrf.mxu0
    %v381 = vadd.f32 0.0, %v380
    %382 = vmatmul.f32.gmra.mxu0 %v78
    %v383 = vpop.f32.mrf.mxu0
    %v384 = vadd.f32 0.0, %v383
    %385 = vmatmul.f32.gmra.mxu0 %v81
    %v386 = vpop.f32.mrf.mxu0
    %v387 = vadd.f32 0.0, %v386
    %388 = vmatmul.f32.gmra.mxu0 %v84
    %v389 = vpop.f32.mrf.mxu0
    %v390 = vadd.f32 0.0, %v389
    %391 = vmatmul.f32.gmra.mxu0 %v87
    %v392 = vpop.f32.mrf.mxu0
    %v393 = vadd.f32 0.0, %v392
    %394 = vmatmul.f32.gmra.mxu0 %v90
    %v395 = vpop.f32.mrf.mxu0
    %v396 = vadd.f32 0.0, %v395
    %397 = vmatmul.f32.gmra.mxu0 %v93
    %v398 = vpop.f32.mrf.mxu0
    %v399 = vadd.f32 0.0, %v398
    %400 = vmatmul.f32.gmra.mxu0 %v96
    %v401 = vpop.f32.mrf.mxu0
    %v402 = vadd.f32 0.0, %v401
    %403 = vmatmul.f32.gmra.mxu0 %v99
    %v404 = vpop.f32.mrf.mxu0
    %v405 = vadd.f32 0.0, %v404
    %406 = vmatmul.f32.gmra.mxu0 %v102
    %v407 = vpop.f32.mrf.mxu0
    %v408 = vadd.f32 0.0, %v407
    %409 = vmatmul.f32.gmra.mxu0 %v105
    %v410 = vpop.f32.mrf.mxu0
    %v411 = vadd.f32 0.0, %v410
    %412 = vmatmul.f32.gmra.mxu0 %v108
    %v413 = vpop.f32.mrf.mxu0
    %v414 = vadd.f32 0.0, %v413
    %415 = vmatmul.f32.gmra.mxu0 %v111
    %v416 = vpop.f32.mrf.mxu0
    %v417 = vadd.f32 0.0, %v416
    %418 = vmatmul.f32.gmra.mxu0 %v114
    %v419 = vpop.f32.mrf.mxu0
    %v420 = vadd.f32 0.0, %v419
    %421 = vmatmul.f32.gmra.mxu0 %v117
    %v422 = vpop.f32.mrf.mxu0
    %v423 = vadd.f32 0.0, %v422
    %424 = vmatmul.f32.gmra.mxu0 %v120
    %v425 = vpop.f32.mrf.mxu0
    %v426 = vadd.f32 0.0, %v425
    %427 = vmatmul.f32.gmra.mxu0 %v123
    %v428 = vpop.f32.mrf.mxu0
    %v429 = vadd.f32 0.0, %v428
    %430 = vmatmul.f32.gmra.mxu0 %v126
    %v431 = vpop.f32.mrf.mxu0
    %v432 = vadd.f32 0.0, %v431
    %433 = vmatmul.f32.gmra.mxu0 %v129
    %v434 = vpop.f32.mrf.mxu0
    %v435 = vadd.f32 0.0, %v434
    %436 = vmatmul.f32.gmra.mxu0 %v132
    %v437 = vpop.f32.mrf.mxu0
    %v438 = vadd.f32 0.0, %v437
    %439 = vmatmul.f32.gmra.mxu0 %v135
    %v440 = vpop.f32.mrf.mxu0
    %v441 = vadd.f32 0.0, %v440
    %442 = vmatmul.f32.gmra.mxu0 %v138
    %v443 = vpop.f32.mrf.mxu0
    %v444 = vadd.f32 0.0, %v443
    %445 = vmatmul.f32.gmra.mxu0 %v141
    %v446 = vpop.f32.mrf.mxu0
    %v447 = vadd.f32 0.0, %v446
    %448 = vmatmul.f32.gmra.mxu0 %v144
    %v449 = vpop.f32.mrf.mxu0
    %v450 = vadd.f32 0.0, %v449
    %451 = vmatmul.f32.gmra.mxu0 %v147
    %v452 = vpop.f32.mrf.mxu0
    %v453 = vadd.f32 0.0, %v452
    %454 = vmatmul.f32.gmra.mxu0 %v355
    %v455 = vpop.f32.mrf.mxu0
    %v456 = vadd.f32 0.0, %v455
    %457 = vdwg.mxu0
    %v458 = vadd.f32 %v271, %v375
    %v459 = vadd.f32 %v274, %v378
    %v460 = vadd.f32 %v277, %v381
    %v461 = vadd.f32 %v280, %v384
    %v462 = vadd.f32 %v283, %v387
    %v463 = vadd.f32 %v286, %v390
    %v464 = vadd.f32 %v289, %v393
    %v465 = vadd.f32 %v292, %v396
    %v466 = vadd.f32 %v295, %v399
    %v467 = vadd.f32 %v298, %v402
    %v468 = vadd.f32 %v301, %v405
    %v469 = vadd.f32 %v304, %v408
    %v470 = vadd.f32 %v307, %v411
    %v471 = vadd.f32 %v310, %v414
    %v472 = vadd.f32 %v313, %v417
    %v473 = vadd.f32 %v316, %v420
    %v474 = vadd.f32 %v319, %v423
    %v475 = vadd.f32 %v322, %v426
    %v476 = vadd.f32 %v325, %v429
    %v477 = vadd.f32 %v328, %v432
    %v478 = vadd.f32 %v331, %v435
    %v479 = vadd.f32 %v334, %v438
    %v480 = vadd.f32 %v337, %v441
    %v481 = vadd.f32 %v340, %v444
    %v482 = vadd.f32 %v343, %v447
    %v483 = vadd.f32 %v346, %v450
    %v484 = vadd.f32 %v349, %v453
    %v485 = vadd.f32 %v352, %v456
    %v487 = vsel %vm64, %v57, 0
    %489 = vmatpush.msra.mxu0 0.0
    %490 = vmatpush.msra.mxu0 0.0
    %491 = vmatpush.msra.mxu0 0.0
    %492 = vmatpush.msra.mxu0 0.0
    %493 = vmatpush.msra.mxu0 0.0
    %494 = vmatpush.msra.mxu0 0.0
    %495 = vmatpush.msra.mxu0 0.0
    %496 = vmatpush.msra.mxu0 0.0
    %497 = vmatpush.msra.mxu0 0.0
    %498 = vmatpush.msra.mxu0 0.0
    %499 = vmatpush.msra.mxu0 0.0
    %500 = vmatpush.msra.mxu0 0.0
    %501 = vmatpush.msra.mxu0 0.0
    %502 = vmatpush.msra.mxu0 0.0
    %503 = vmatpush.msra.mxu0 0.0
    %504 = vmatpush.msra.mxu0 %v62
    %505 = vmatmul.f32.gmra.mxu0 %v72
    %v506 = vpop.f32.mrf.mxu0
    %v507 = vadd.f32 0.0, %v506
    %508 = vmatmul.f32.gmra.mxu0 %v75
    %v509 = vpop.f32.mrf.mxu0
    %v510 = vadd.f32 0.0, %v509
    %511 = vmatmul.f32.gmra.mxu0 %v78
    %v512 = vpop.f32.mrf.mxu0
    %v513 = vadd.f32 0.0, %v512
    %514 = vmatmul.f32.gmra.mxu0 %v81
    %v515 = vpop.f32.mrf.mxu0
    %v516 = vadd.f32 0.0, %v515
    %517 = vmatmul.f32.gmra.mxu0 %v84
    %v518 = vpop.f32.mrf.mxu0
    %v519 = vadd.f32 0.0, %v518
    %520 = vmatmul.f32.gmra.mxu0 %v87
    %v521 = vpop.f32.mrf.mxu0
    %v522 = vadd.f32 0.0, %v521
    %523 = vmatmul.f32.gmra.mxu0 %v90
    %v524 = vpop.f32.mrf.mxu0
    %v525 = vadd.f32 0.0, %v524
    %526 = vmatmul.f32.gmra.mxu0 %v93
    %v527 = vpop.f32.mrf.mxu0
    %v528 = vadd.f32 0.0, %v527
    %529 = vmatmul.f32.gmra.mxu0 %v96
    %v530 = vpop.f32.mrf.mxu0
    %v531 = vadd.f32 0.0, %v530
    %532 = vmatmul.f32.gmra.mxu0 %v99
    %v533 = vpop.f32.mrf.mxu0
    %v534 = vadd.f32 0.0, %v533
    %535 = vmatmul.f32.gmra.mxu0 %v102
    %v536 = vpop.f32.mrf.mxu0
    %v537 = vadd.f32 0.0, %v536
    %538 = vmatmul.f32.gmra.mxu0 %v105
    %v539 = vpop.f32.mrf.mxu0
    %v540 = vadd.f32 0.0, %v539
    %541 = vmatmul.f32.gmra.mxu0 %v108
    %v542 = vpop.f32.mrf.mxu0
    %v543 = vadd.f32 0.0, %v542
    %544 = vmatmul.f32.gmra.mxu0 %v111
    %v545 = vpop.f32.mrf.mxu0
    %v546 = vadd.f32 0.0, %v545
    %547 = vmatmul.f32.gmra.mxu0 %v114
    %v548 = vpop.f32.mrf.mxu0
    %v549 = vadd.f32 0.0, %v548
    %550 = vmatmul.f32.gmra.mxu0 %v117
    %v551 = vpop.f32.mrf.mxu0
    %v552 = vadd.f32 0.0, %v551
    %553 = vmatmul.f32.gmra.mxu0 %v120
    %v554 = vpop.f32.mrf.mxu0
    %v555 = vadd.f32 0.0, %v554
    %556 = vmatmul.f32.gmra.mxu0 %v123
    %v557 = vpop.f32.mrf.mxu0
    %v558 = vadd.f32 0.0, %v557
    %559 = vmatmul.f32.gmra.mxu0 %v126
    %v560 = vpop.f32.mrf.mxu0
    %v561 = vadd.f32 0.0, %v560
    %562 = vmatmul.f32.gmra.mxu0 %v129
    %v563 = vpop.f32.mrf.mxu0
    %v564 = vadd.f32 0.0, %v563
    %565 = vmatmul.f32.gmra.mxu0 %v132
    %v566 = vpop.f32.mrf.mxu0
    %v567 = vadd.f32 0.0, %v566
    %568 = vmatmul.f32.gmra.mxu0 %v135
    %v569 = vpop.f32.mrf.mxu0
    %v570 = vadd.f32 0.0, %v569
    %571 = vmatmul.f32.gmra.mxu0 %v138
    %v572 = vpop.f32.mrf.mxu0
    %v573 = vadd.f32 0.0, %v572
    %574 = vmatmul.f32.gmra.mxu0 %v141
    %v575 = vpop.f32.mrf.mxu0
    %v576 = vadd.f32 0.0, %v575
    %577 = vmatmul.f32.gmra.mxu0 %v144
    %v578 = vpop.f32.mrf.mxu0
    %v579 = vadd.f32 0.0, %v578
    %580 = vmatmul.f32.gmra.mxu0 %v147
    %v581 = vpop.f32.mrf.mxu0
    %v582 = vadd.f32 0.0, %v581
    %583 = vmatmul.f32.gmra.mxu0 %v355
    %v584 = vpop.f32.mrf.mxu0
    %v585 = vadd.f32 0.0, %v584
    %586 = vmatmul.f32.gmra.mxu0 %v487
    %v587 = vpop.f32.mrf.mxu0
    %v588 = vadd.f32 0.0, %v587
    %589 = vdwg.mxu0
    %v590 = vadd.f32 %v458, %v507
    %v591 = vadd.f32 %v459, %v510
    %v592 = vadd.f32 %v460, %v513
    %v593 = vadd.f32 %v461, %v516
    %v594 = vadd.f32 %v462, %v519
    %v595 = vadd.f32 %v463, %v522
    %v596 = vadd.f32 %v464, %v525
    %v597 = vadd.f32 %v465, %v528
    %v598 = vadd.f32 %v466, %v531
    %v599 = vadd.f32 %v467, %v534
    %v600 = vadd.f32 %v468, %v537
    %v601 = vadd.f32 %v469, %v540
    %v602 = vadd.f32 %v470, %v543
    %v603 = vadd.f32 %v471, %v546
    %v604 = vadd.f32 %v472, %v549
    %v605 = vadd.f32 %v473, %v552
    %v606 = vadd.f32 %v474, %v555
    %v607 = vadd.f32 %v475, %v558
    %v608 = vadd.f32 %v476, %v561
    %v609 = vadd.f32 %v477, %v564
    %v610 = vadd.f32 %v478, %v567
    %v611 = vadd.f32 %v479, %v570
    %v612 = vadd.f32 %v480, %v573
    %v613 = vadd.f32 %v481, %v576
    %v614 = vadd.f32 %v482, %v579
    %v615 = vadd.f32 %v483, %v582
    %v616 = vadd.f32 %v484, %v585
    %v617 = vadd.f32 %v485, %v588
    %v619 = vsel %vm64, %v58, 0
    %621 = vmatpush.msra.mxu0 0.0
    %622 = vmatpush.msra.mxu0 0.0
    %623 = vmatpush.msra.mxu0 0.0
    %624 = vmatpush.msra.mxu0 0.0
    %625 = vmatpush.msra.mxu0 0.0
    %626 = vmatpush.msra.mxu0 0.0
    %627 = vmatpush.msra.mxu0 0.0
    %628 = vmatpush.msra.mxu0 0.0
    %629 = vmatpush.msra.mxu0 0.0
    %630 = vmatpush.msra.mxu0 0.0
    %631 = vmatpush.msra.mxu0 0.0
    %632 = vmatpush.msra.mxu0 0.0
    %633 = vmatpush.msra.mxu0 0.0
    %634 = vmatpush.msra.mxu0 0.0
    %635 = vmatpush.msra.mxu0 0.0
    %636 = vmatpush.msra.mxu0 %v63
    %637 = vmatmul.f32.gmra.mxu0 %v75
    %v638 = vpop.f32.mrf.mxu0
    %v639 = vadd.f32 0.0, %v638
    %640 = vmatmul.f32.gmra.mxu0 %v78
    %v641 = vpop.f32.mrf.mxu0
    %v642 = vadd.f32 0.0, %v641
    %643 = vmatmul.f32.gmra.mxu0 %v81
    %v644 = vpop.f32.mrf.mxu0
    %v645 = vadd.f32 0.0, %v644
    %646 = vmatmul.f32.gmra.mxu0 %v84
    %v647 = vpop.f32.mrf.mxu0
    %v648 = vadd.f32 0.0, %v647
    %649 = vmatmul.f32.gmra.mxu0 %v87
    %v650 = vpop.f32.mrf.mxu0
    %v651 = vadd.f32 0.0, %v650
    %652 = vmatmul.f32.gmra.mxu0 %v90
    %v653 = vpop.f32.mrf.mxu0
    %v654 = vadd.f32 0.0, %v653
    %655 = vmatmul.f32.gmra.mxu0 %v93
    %v656 = vpop.f32.mrf.mxu0
    %v657 = vadd.f32 0.0, %v656
    %658 = vmatmul.f32.gmra.mxu0 %v96
    %v659 = vpop.f32.mrf.mxu0
    %v660 = vadd.f32 0.0, %v659
    %661 = vmatmul.f32.gmra.mxu0 %v99
    %v662 = vpop.f32.mrf.mxu0
    %v663 = vadd.f32 0.0, %v662
    %664 = vmatmul.f32.gmra.mxu0 %v102
    %v665 = vpop.f32.mrf.mxu0
    %v666 = vadd.f32 0.0, %v665
    %667 = vmatmul.f32.gmra.mxu0 %v105
    %v668 = vpop.f32.mrf.mxu0
    %v669 = vadd.f32 0.0, %v668
    %670 = vmatmul.f32.gmra.mxu0 %v108
    %v671 = vpop.f32.mrf.mxu0
    %v672 = vadd.f32 0.0, %v671
    %673 = vmatmul.f32.gmra.mxu0 %v111
    %v674 = vpop.f32.mrf.mxu0
    %v675 = vadd.f32 0.0, %v674
    %676 = vmatmul.f32.gmra.mxu0 %v114
    %v677 = vpop.f32.mrf.mxu0
    %v678 = vadd.f32 0.0, %v677
    %679 = vmatmul.f32.gmra.mxu0 %v117
    %v680 = vpop.f32.mrf.mxu0
    %v681 = vadd.f32 0.0, %v680
    %682 = vmatmul.f32.gmra.mxu0 %v120
    %v683 = vpop.f32.mrf.mxu0
    %v684 = vadd.f32 0.0, %v683
    %685 = vmatmul.f32.gmra.mxu0 %v123
    %v686 = vpop.f32.mrf.mxu0
    %v687 = vadd.f32 0.0, %v686
    %688 = vmatmul.f32.gmra.mxu0 %v126
    %v689 = vpop.f32.mrf.mxu0
    %v690 = vadd.f32 0.0, %v689
    %691 = vmatmul.f32.gmra.mxu0 %v129
    %v692 = vpop.f32.mrf.mxu0
    %v693 = vadd.f32 0.0, %v692
    %694 = vmatmul.f32.gmra.mxu0 %v132
    %v695 = vpop.f32.mrf.mxu0
    %v696 = vadd.f32 0.0, %v695
    %697 = vmatmul.f32.gmra.mxu0 %v135
    %v698 = vpop.f32.mrf.mxu0
    %v699 = vadd.f32 0.0, %v698
    %700 = vmatmul.f32.gmra.mxu0 %v138
    %v701 = vpop.f32.mrf.mxu0
    %v702 = vadd.f32 0.0, %v701
    %703 = vmatmul.f32.gmra.mxu0 %v141
    %v704 = vpop.f32.mrf.mxu0
    %v705 = vadd.f32 0.0, %v704
    %706 = vmatmul.f32.gmra.mxu0 %v144
    %v707 = vpop.f32.mrf.mxu0
    %v708 = vadd.f32 0.0, %v707
    %709 = vmatmul.f32.gmra.mxu0 %v147
    %v710 = vpop.f32.mrf.mxu0
    %v711 = vadd.f32 0.0, %v710
    %712 = vmatmul.f32.gmra.mxu0 %v355
    %v713 = vpop.f32.mrf.mxu0
    %v714 = vadd.f32 0.0, %v713
    %715 = vmatmul.f32.gmra.mxu0 %v487
    %v716 = vpop.f32.mrf.mxu0
    %v717 = vadd.f32 0.0, %v716
    %718 = vmatmul.f32.gmra.mxu0 %v619
    %v719 = vpop.f32.mrf.mxu0
    %v720 = vadd.f32 0.0, %v719
    %721 = vdwg.mxu0
    %v722 = vadd.f32 %v590, %v639
    %v723 = vadd.f32 %v591, %v642
    %v724 = vadd.f32 %v592, %v645
    %v725 = vadd.f32 %v593, %v648
    %v726 = vadd.f32 %v594, %v651
    %v727 = vadd.f32 %v595, %v654
    %v728 = vadd.f32 %v596, %v657
    %v729 = vadd.f32 %v597, %v660
    %v730 = vadd.f32 %v598, %v663
    %v731 = vadd.f32 %v599, %v666
    %v732 = vadd.f32 %v600, %v669
    %v733 = vadd.f32 %v601, %v672
    %v734 = vadd.f32 %v602, %v675
    %v735 = vadd.f32 %v603, %v678
    %v736 = vadd.f32 %v604, %v681
    %v737 = vadd.f32 %v605, %v684
    %v738 = vadd.f32 %v606, %v687
    %v739 = vadd.f32 %v607, %v690
    %v740 = vadd.f32 %v608, %v693
    %v741 = vadd.f32 %v609, %v696
    %v742 = vadd.f32 %v610, %v699
    %v743 = vadd.f32 %v611, %v702
    %v744 = vadd.f32 %v612, %v705
    %v745 = vadd.f32 %v613, %v708
    %v746 = vadd.f32 %v614, %v711
    %v747 = vadd.f32 %v615, %v714
    %v748 = vadd.f32 %v616, %v717
    %v749 = vadd.f32 %v617, %v720
    %v750 = vld [vmem:[%s2] sm:$0x1]
    %v752 = vperm.slane %v750, 0
    %v754 = vadd.f32 %v722, %v752
    %v755 = vadd.f32 %v723, %v752
    %v756 = vadd.f32 %v724, %v752
    %v757 = vadd.f32 %v725, %v752
    %v758 = vadd.f32 %v726, %v752
    %v759 = vadd.f32 %v727, %v752
    %v760 = vadd.f32 %v728, %v752
    %v761 = vadd.f32 %v729, %v752
    %v762 = vadd.f32 %v730, %v752
    %v763 = vadd.f32 %v731, %v752
    %v764 = vadd.f32 %v732, %v752
    %v765 = vadd.f32 %v733, %v752
    %v766 = vadd.f32 %v734, %v752
    %v767 = vadd.f32 %v735, %v752
    %v768 = vadd.f32 %v736, %v752
    %v769 = vadd.f32 %v737, %v752
    %v770 = vadd.f32 %v738, %v752
    %v771 = vadd.f32 %v739, %v752
    %v772 = vadd.f32 %v740, %v752
    %v773 = vadd.f32 %v741, %v752
    %v774 = vadd.f32 %v742, %v752
    %v775 = vadd.f32 %v743, %v752
    %v776 = vadd.f32 %v744, %v752
    %v777 = vadd.f32 %v745, %v752
    %v778 = vadd.f32 %v746, %v752
    %v779 = vadd.f32 %v747, %v752
    %v780 = vadd.f32 %v748, %v752
    %v781 = vadd.f32 %v749, %v752
    %v782 = vmax.f32 %v754, 0.0
    %v783 = vmax.f32 %v755, 0.0
    %v784 = vmax.f32 %v756, 0.0
    %v785 = vmax.f32 %v757, 0.0
    %v786 = vmax.f32 %v758, 0.0
    %v787 = vmax.f32 %v759, 0.0
    %v788 = vmax.f32 %v760, 0.0
    %v789 = vmax.f32 %v761, 0.0
    %v790 = vmax.f32 %v762, 0.0
    %v791 = vmax.f32 %v763, 0.0
    %v792 = vmax.f32 %v764, 0.0
    %v793 = vmax.f32 %v765, 0.0
    %v794 = vmax.f32 %v766, 0.0
    %v795 = vmax.f32 %v767, 0.0
    %v796 = vmax.f32 %v768, 0.0
    %v797 = vmax.f32 %v769, 0.0
    %v798 = vmax.f32 %v770, 0.0
    %v799 = vmax.f32 %v771, 0.0
    %v800 = vmax.f32 %v772, 0.0
    %v801 = vmax.f32 %v773, 0.0
    %v802 = vmax.f32 %v774, 0.0
    %v803 = vmax.f32 %v775, 0.0
    %v804 = vmax.f32 %v776, 0.0
    %v805 = vmax.f32 %v777, 0.0
    %v806 = vmax.f32 %v778, 0.0
    %v807 = vmax.f32 %v779, 0.0
    %v808 = vmax.f32 %v780, 0.0
    %v809 = vmax.f32 %v781, 0.0
    %s810 = scalar_lea.vmem %s1, 40
    %v811 = vld [vmem:[%s810] sm:$0xff]
    %v812 = vld [vmem:[%s810 + $0x8] sm:$0xff]
    %v813 = vld [vmem:[%s810 + $0x10] sm:$0xff]
    %v814 = vld [vmem:[%s810 + $0x18] sm:$0xff]
    %v815 = vld [vmem:[%s810 + $0x20] sm:$0xff]
    %v817 = vsel %vm64, %v783, 0
    %v820 = vsel %vm64, %v784, 0
    %v823 = vsel %vm64, %v785, 0
    %v826 = vsel %vm64, %v786, 0
    %v829 = vsel %vm64, %v787, 0
    %v832 = vsel %vm64, %v788, 0
    %v835 = vsel %vm64, %v789, 0
    %v838 = vsel %vm64, %v790, 0
    %v841 = vsel %vm64, %v791, 0
    %v844 = vsel %vm64, %v792, 0
    %v847 = vsel %vm64, %v793, 0
    %v850 = vsel %vm64, %v794, 0
    %v853 = vsel %vm64, %v795, 0
    %v856 = vsel %vm64, %v796, 0
    %v859 = vsel %vm64, %v797, 0
    %v862 = vsel %vm64, %v798, 0
    %v865 = vsel %vm64, %v799, 0
    %v868 = vsel %vm64, %v800, 0
    %v871 = vsel %vm64, %v801, 0
    %v874 = vsel %vm64, %v802, 0
    %v877 = vsel %vm64, %v803, 0
    %v880 = vsel %vm64, %v804, 0
    %v883 = vsel %vm64, %v805, 0
    %v886 = vsel %vm64, %v806, 0
    %888 = vmatpush.msra.mxu0 0.0
    %889 = vmatpush.msra.mxu0 0.0
    %890 = vmatpush.msra.mxu0 0.0
    %891 = vmatpush.msra.mxu0 0.0
    %892 = vmatpush.msra.mxu0 0.0
    %893 = vmatpush.msra.mxu0 0.0
    %894 = vmatpush.msra.mxu0 0.0
    %895 = vmatpush.msra.mxu0 0.0
    %896 = vmatpush.msra.mxu0 0.0
    %897 = vmatpush.msra.mxu0 0.0
    %898 = vmatpush.msra.mxu0 0.0
    %899 = vmatpush.msra.mxu0 0.0
    %900 = vmatpush.msra.mxu0 0.0
    %901 = vmatpush.msra.mxu0 0.0
    %902 = vmatpush.msra.mxu0 0.0
    %903 = vmatpush.msra.mxu0 %v812
    %904 = vmatmul.f32.gmra.mxu0 %v817
    %v905 = vpop.f32.mrf.mxu0
    %v906 = vadd.f32 0.0, %v905
    %907 = vmatmul.f32.gmra.mxu0 %v820
    %v908 = vpop.f32.mrf.mxu0
    %v909 = vadd.f32 0.0, %v908
    %910 = vmatmul.f32.gmra.mxu0 %v823
    %v911 = vpop.f32.mrf.mxu0
    %v912 = vadd.f32 0.0, %v911
    %913 = vmatmul.f32.gmra.mxu0 %v826
    %v914 = vpop.f32.mrf.mxu0
    %v915 = vadd.f32 0.0, %v914
    %916 = vmatmul.f32.gmra.mxu0 %v829
    %v917 = vpop.f32.mrf.mxu0
    %v918 = vadd.f32 0.0, %v917
    %919 = vmatmul.f32.gmra.mxu0 %v832
    %v920 = vpop.f32.mrf.mxu0
    %v921 = vadd.f32 0.0, %v920
    %922 = vmatmul.f32.gmra.mxu0 %v835
    %v923 = vpop.f32.mrf.mxu0
    %v924 = vadd.f32 0.0, %v923
    %925 = vmatmul.f32.gmra.mxu0 %v838
    %v926 = vpop.f32.mrf.mxu0
    %v927 = vadd.f32 0.0, %v926
    %928 = vmatmul.f32.gmra.mxu0 %v841
    %v929 = vpop.f32.mrf.mxu0
    %v930 = vadd.f32 0.0, %v929
    %931 = vmatmul.f32.gmra.mxu0 %v844
    %v932 = vpop.f32.mrf.mxu0
    %v933 = vadd.f32 0.0, %v932
    %934 = vmatmul.f32.gmra.mxu0 %v847
    %v935 = vpop.f32.mrf.mxu0
    %v936 = vadd.f32 0.0, %v935
    %937 = vmatmul.f32.gmra.mxu0 %v850
    %v938 = vpop.f32.mrf.mxu0
    %v939 = vadd.f32 0.0, %v938
    %940 = vmatmul.f32.gmra.mxu0 %v853
    %v941 = vpop.f32.mrf.mxu0
    %v942 = vadd.f32 0.0, %v941
    %943 = vmatmul.f32.gmra.mxu0 %v856
    %v944 = vpop.f32.mrf.mxu0
    %v945 = vadd.f32 0.0, %v944
    %946 = vmatmul.f32.gmra.mxu0 %v859
    %v947 = vpop.f32.mrf.mxu0
    %v948 = vadd.f32 0.0, %v947
    %949 = vmatmul.f32.gmra.mxu0 %v862
    %v950 = vpop.f32.mrf.mxu0
    %v951 = vadd.f32 0.0, %v950
    %952 = vmatmul.f32.gmra.mxu0 %v865
    %v953 = vpop.f32.mrf.mxu0
    %v954 = vadd.f32 0.0, %v953
    %955 = vmatmul.f32.gmra.mxu0 %v868
    %v956 = vpop.f32.mrf.mxu0
    %v957 = vadd.f32 0.0, %v956
    %958 = vmatmul.f32.gmra.mxu0 %v871
    %v959 = vpop.f32.mrf.mxu0
    %v960 = vadd.f32 0.0, %v959
    %961 = vmatmul.f32.gmra.mxu0 %v874
    %v962 = vpop.f32.mrf.mxu0
    %v963 = vadd.f32 0.0, %v962
    %964 = vmatmul.f32.gmra.mxu0 %v877
    %v965 = vpop.f32.mrf.mxu0
    %v966 = vadd.f32 0.0, %v965
    %967 = vmatmul.f32.gmra.mxu0 %v880
    %v968 = vpop.f32.mrf.mxu0
    %v969 = vadd.f32 0.0, %v968
    %970 = vmatmul.f32.gmra.mxu0 %v883
    %v971 = vpop.f32.mrf.mxu0
    %v972 = vadd.f32 0.0, %v971
    %973 = vmatmul.f32.gmra.mxu0 %v886
    %v974 = vpop.f32.mrf.mxu0
    %v975 = vadd.f32 0.0, %v974
    %976 = vdwg.mxu0
    %v978 = vsel %vm64, %v782, 0
    %980 = vmatpush.msra.mxu0 0.0
    %981 = vmatpush.msra.mxu0 0.0
    %982 = vmatpush.msra.mxu0 0.0
    %983 = vmatpush.msra.mxu0 0.0
    %984 = vmatpush.msra.mxu0 0.0
    %985 = vmatpush.msra.mxu0 0.0
    %986 = vmatpush.msra.mxu0 0.0
    %987 = vmatpush.msra.mxu0 0.0
    %988 = vmatpush.msra.mxu0 0.0
    %989 = vmatpush.msra.mxu0 0.0
    %990 = vmatpush.msra.mxu0 0.0
    %991 = vmatpush.msra.mxu0 0.0
    %992 = vmatpush.msra.mxu0 0.0
    %993 = vmatpush.msra.mxu0 0.0
    %994 = vmatpush.msra.mxu0 0.0
    %995 = vmatpush.msra.mxu0 %v811
    %996 = vmatmul.f32.gmra.mxu0 %v978
    %v997 = vpop.f32.mrf.mxu0
    %v998 = vadd.f32 %v906, %v997
    %999 = vmatmul.f32.gmra.mxu0 %v817
    %v1000 = vpop.f32.mrf.mxu0
    %v1001 = vadd.f32 %v909, %v1000
    %1002 = vmatmul.f32.gmra.mxu0 %v820
    %v1003 = vpop.f32.mrf.mxu0
    %v1004 = vadd.f32 %v912, %v1003
    %1005 = vmatmul.f32.gmra.mxu0 %v823
    %v1006 = vpop.f32.mrf.mxu0
    %v1007 = vadd.f32 %v915, %v1006
    %1008 = vmatmul.f32.gmra.mxu0 %v826
    %v1009 = vpop.f32.mrf.mxu0
    %v1010 = vadd.f32 %v918, %v1009
    %1011 = vmatmul.f32.gmra.mxu0 %v829
    %v1012 = vpop.f32.mrf.mxu0
    %v1013 = vadd.f32 %v921, %v1012
    %1014 = vmatmul.f32.gmra.mxu0 %v832
    %v1015 = vpop.f32.mrf.mxu0
    %v1016 = vadd.f32 %v924, %v1015
    %1017 = vmatmul.f32.gmra.mxu0 %v835
    %v1018 = vpop.f32.mrf.mxu0
    %v1019 = vadd.f32 %v927, %v1018
    %1020 = vmatmul.f32.gmra.mxu0 %v838
    %v1021 = vpop.f32.mrf.mxu0
    %v1022 = vadd.f32 %v930, %v1021
    %1023 = vmatmul.f32.gmra.mxu0 %v841
    %v1024 = vpop.f32.mrf.mxu0
    %v1025 = vadd.f32 %v933, %v1024
    %1026 = vmatmul.f32.gmra.mxu0 %v844
    %v1027 = vpop.f32.mrf.mxu0
    %v1028 = vadd.f32 %v936, %v1027
    %1029 = vmatmul.f32.gmra.mxu0 %v847
    %v1030 = vpop.f32.mrf.mxu0
    %v1031 = vadd.f32 %v939, %v1030
    %1032 = vmatmul.f32.gmra.mxu0 %v850
    %v1033 = vpop.f32.mrf.mxu0
    %v1034 = vadd.f32 %v942, %v1033
    %1035 = vmatmul.f32.gmra.mxu0 %v853
    %v1036 = vpop.f32.mrf.mxu0
    %v1037 = vadd.f32 %v945, %v1036
    %1038 = vmatmul.f32.gmra.mxu0 %v856
    %v1039 = vpop.f32.mrf.mxu0
    %v1040 = vadd.f32 %v948, %v1039
    %1041 = vmatmul.f32.gmra.mxu0 %v859
    %v1042 = vpop.f32.mrf.mxu0
    %v1043 = vadd.f32 %v951, %v1042
    %1044 = vmatmul.f32.gmra.mxu0 %v862
    %v1045 = vpop.f32.mrf.mxu0
    %v1046 = vadd.f32 %v954, %v1045
    %1047 = vmatmul.f32.gmra.mxu0 %v865
    %v1048 = vpop.f32.mrf.mxu0
    %v1049 = vadd.f32 %v957, %v1048
    %1050 = vmatmul.f32.gmra.mxu0 %v868
    %v1051 = vpop.f32.mrf.mxu0
    %v1052 = vadd.f32 %v960, %v1051
    %1053 = vmatmul.f32.gmra.mxu0 %v871
    %v1054 = vpop.f32.mrf.mxu0
    %v1055 = vadd.f32 %v963, %v1054
    %1056 = vmatmul.f32.gmra.mxu0 %v874
    %v1057 = vpop.f32.mrf.mxu0
    %v1058 = vadd.f32 %v966, %v1057
    %1059 = vmatmul.f32.gmra.mxu0 %v877
    %v1060 = vpop.f32.mrf.mxu0
    %v1061 = vadd.f32 %v969, %v1060
    %1062 = vmatmul.f32.gmra.mxu0 %v880
    %v1063 = vpop.f32.mrf.mxu0
    %v1064 = vadd.f32 %v972, %v1063
    %1065 = vmatmul.f32.gmra.mxu0 %v883
    %v1066 = vpop.f32.mrf.mxu0
    %v1067 = vadd.f32 %v975, %v1066
    %1068 = vdwg.mxu0
    %v1070 = vsel %vm64, %v807, 0
    %1072 = vmatpush.msra.mxu0 0.0
    %1073 = vmatpush.msra.mxu0 0.0
    %1074 = vmatpush.msra.mxu0 0.0
    %1075 = vmatpush.msra.mxu0 0.0
    %1076 = vmatpush.msra.mxu0 0.0
    %1077 = vmatpush.msra.mxu0 0.0
    %1078 = vmatpush.msra.mxu0 0.0
    %1079 = vmatpush.msra.mxu0 0.0
    %1080 = vmatpush.msra.mxu0 0.0
    %1081 = vmatpush.msra.mxu0 0.0
    %1082 = vmatpush.msra.mxu0 0.0
    %1083 = vmatpush.msra.mxu0 0.0
    %1084 = vmatpush.msra.mxu0 0.0
    %1085 = vmatpush.msra.mxu0 0.0
    %1086 = vmatpush.msra.mxu0 0.0
    %1087 = vmatpush.msra.mxu0 %v813
    %1088 = vmatmul.f32.gmra.mxu0 %v820
    %v1089 = vpop.f32.mrf.mxu0
    %v1090 = vadd.f32 0.0, %v1089
    %1091 = vmatmul.f32.gmra.mxu0 %v823
    %v1092 = vpop.f32.mrf.mxu0
    %v1093 = vadd.f32 0.0, %v1092
    %1094 = vmatmul.f32.gmra.mxu0 %v826
    %v1095 = vpop.f32.mrf.mxu0
    %v1096 = vadd.f32 0.0, %v1095
    %1097 = vmatmul.f32.gmra.mxu0 %v829
    %v1098 = vpop.f32.mrf.mxu0
    %v1099 = vadd.f32 0.0, %v1098
    %1100 = vmatmul.f32.gmra.mxu0 %v832
    %v1101 = vpop.f32.mrf.mxu0
    %v1102 = vadd.f32 0.0, %v1101
    %1103 = vmatmul.f32.gmra.mxu0 %v835
    %v1104 = vpop.f32.mrf.mxu0
    %v1105 = vadd.f32 0.0, %v1104
    %1106 = vmatmul.f32.gmra.mxu0 %v838
    %v1107 = vpop.f32.mrf.mxu0
    %v1108 = vadd.f32 0.0, %v1107
    %1109 = vmatmul.f32.gmra.mxu0 %v841
    %v1110 = vpop.f32.mrf.mxu0
    %v1111 = vadd.f32 0.0, %v1110
    %1112 = vmatmul.f32.gmra.mxu0 %v844
    %v1113 = vpop.f32.mrf.mxu0
    %v1114 = vadd.f32 0.0, %v1113
    %1115 = vmatmul.f32.gmra.mxu0 %v847
    %v1116 = vpop.f32.mrf.mxu0
    %v1117 = vadd.f32 0.0, %v1116
    %1118 = vmatmul.f32.gmra.mxu0 %v850
    %v1119 = vpop.f32.mrf.mxu0
    %v1120 = vadd.f32 0.0, %v1119
    %1121 = vmatmul.f32.gmra.mxu0 %v853
    %v1122 = vpop.f32.mrf.mxu0
    %v1123 = vadd.f32 0.0, %v1122
    %1124 = vmatmul.f32.gmra.mxu0 %v856
    %v1125 = vpop.f32.mrf.mxu0
    %v1126 = vadd.f32 0.0, %v1125
    %1127 = vmatmul.f32.gmra.mxu0 %v859
    %v1128 = vpop.f32.mrf.mxu0
    %v1129 = vadd.f32 0.0, %v1128
    %1130 = vmatmul.f32.gmra.mxu0 %v862
    %v1131 = vpop.f32.mrf.mxu0
    %v1132 = vadd.f32 0.0, %v1131
    %1133 = vmatmul.f32.gmra.mxu0 %v865
    %v1134 = vpop.f32.mrf.mxu0
    %v1135 = vadd.f32 0.0, %v1134
    %1136 = vmatmul.f32.gmra.mxu0 %v868
    %v1137 = vpop.f32.mrf.mxu0
    %v1138 = vadd.f32 0.0, %v1137
    %1139 = vmatmul.f32.gmra.mxu0 %v871
    %v1140 = vpop.f32.mrf.mxu0
    %v1141 = vadd.f32 0.0, %v1140
    %1142 = vmatmul.f32.gmra.mxu0 %v874
    %v1143 = vpop.f32.mrf.mxu0
    %v1144 = vadd.f32 0.0, %v1143
    %1145 = vmatmul.f32.gmra.mxu0 %v877
    %v1146 = vpop.f32.mrf.mxu0
    %v1147 = vadd.f32 0.0, %v1146
    %1148 = vmatmul.f32.gmra.mxu0 %v880
    %v1149 = vpop.f32.mrf.mxu0
    %v1150 = vadd.f32 0.0, %v1149
    %1151 = vmatmul.f32.gmra.mxu0 %v883
    %v1152 = vpop.f32.mrf.mxu0
    %v1153 = vadd.f32 0.0, %v1152
    %1154 = vmatmul.f32.gmra.mxu0 %v886
    %v1155 = vpop.f32.mrf.mxu0
    %v1156 = vadd.f32 0.0, %v1155
    %1157 = vmatmul.f32.gmra.mxu0 %v1070
    %v1158 = vpop.f32.mrf.mxu0
    %v1159 = vadd.f32 0.0, %v1158
    %1160 = vdwg.mxu0
    %v1161 = vadd.f32 %v998, %v1090
    %v1162 = vadd.f32 %v1001, %v1093
    %v1163 = vadd.f32 %v1004, %v1096
    %v1164 = vadd.f32 %v1007, %v1099
    %v1165 = vadd.f32 %v1010, %v1102
    %v1166 = vadd.f32 %v1013, %v1105
    %v1167 = vadd.f32 %v1016, %v1108
    %v1168 = vadd.f32 %v1019, %v1111
    %v1169 = vadd.f32 %v1022, %v1114
    %v1170 = vadd.f32 %v1025, %v1117
    %v1171 = vadd.f32 %v1028, %v1120
    %v1172 = vadd.f32 %v1031, %v1123
    %v1173 = vadd.f32 %v1034, %v1126
    %v1174 = vadd.f32 %v1037, %v1129
    %v1175 = vadd.f32 %v1040, %v1132
    %v1176 = vadd.f32 %v1043, %v1135
    %v1177 = vadd.f32 %v1046, %v1138
    %v1178 = vadd.f32 %v1049, %v1141
    %v1179 = vadd.f32 %v1052, %v1144
    %v1180 = vadd.f32 %v1055, %v1147
    %v1181 = vadd.f32 %v1058, %v1150
    %v1182 = vadd.f32 %v1061, %v1153
    %v1183 = vadd.f32 %v1064, %v1156
    %v1184 = vadd.f32 %v1067, %v1159
    %v1186 = vsel %vm64, %v808, 0
    %1188 = vmatpush.msra.mxu0 0.0
    %1189 = vmatpush.msra.mxu0 0.0
    %1190 = vmatpush.msra.mxu0 0.0
    %1191 = vmatpush.msra.mxu0 0.0
    %1192 = vmatpush.msra.mxu0 0.0
    %1193 = vmatpush.msra.mxu0 0.0
    %1194 = vmatpush.msra.mxu0 0.0
    %1195 = vmatpush.msra.mxu0 0.0
    %1196 = vmatpush.msra.mxu0 0.0
    %1197 = vmatpush.msra.mxu0 0.0
    %1198 = vmatpush.msra.mxu0 0.0
    %1199 = vmatpush.msra.mxu0 0.0
    %1200 = vmatpush.msra.mxu0 0.0
    %1201 = vmatpush.msra.mxu0 0.0
    %1202 = vmatpush.msra.mxu0 0.0
    %1203 = vmatpush.msra.mxu0 %v814
    %1204 = vmatmul.f32.gmra.mxu0 %v823
    %v1205 = vpop.f32.mrf.mxu0
    %v1206 = vadd.f32 0.0, %v1205
    %1207 = vmatmul.f32.gmra.mxu0 %v826
    %v1208 = vpop.f32.mrf.mxu0
    %v1209 = vadd.f32 0.0, %v1208
    %1210 = vmatmul.f32.gmra.mxu0 %v829
    %v1211 = vpop.f32.mrf.mxu0
    %v1212 = vadd.f32 0.0, %v1211
    %1213 = vmatmul.f32.gmra.mxu0 %v832
    %v1214 = vpop.f32.mrf.mxu0
    %v1215 = vadd.f32 0.0, %v1214
    %1216 = vmatmul.f32.gmra.mxu0 %v835
    %v1217 = vpop.f32.mrf.mxu0
    %v1218 = vadd.f32 0.0, %v1217
    %1219 = vmatmul.f32.gmra.mxu0 %v838
    %v1220 = vpop.f32.mrf.mxu0
    %v1221 = vadd.f32 0.0, %v1220
    %1222 = vmatmul.f32.gmra.mxu0 %v841
    %v1223 = vpop.f32.mrf.mxu0
    %v1224 = vadd.f32 0.0, %v1223
    %1225 = vmatmul.f32.gmra.mxu0 %v844
    %v1226 = vpop.f32.mrf.mxu0
    %v1227 = vadd.f32 0.0, %v1226
    %1228 = vmatmul.f32.gmra.mxu0 %v847
    %v1229 = vpop.f32.mrf.mxu0
    %v1230 = vadd.f32 0.0, %v1229
    %1231 = vmatmul.f32.gmra.mxu0 %v850
    %v1232 = vpop.f32.mrf.mxu0
    %v1233 = vadd.f32 0.0, %v1232
    %1234 = vmatmul.f32.gmra.mxu0 %v853
    %v1235 = vpop.f32.mrf.mxu0
    %v1236 = vadd.f32 0.0, %v1235
    %1237 = vmatmul.f32.gmra.mxu0 %v856
    %v1238 = vpop.f32.mrf.mxu0
    %v1239 = vadd.f32 0.0, %v1238
    %1240 = vmatmul.f32.gmra.mxu0 %v859
    %v1241 = vpop.f32.mrf.mxu0
    %v1242 = vadd.f32 0.0, %v1241
    %1243 = vmatmul.f32.gmra.mxu0 %v862
    %v1244 = vpop.f32.mrf.mxu0
    %v1245 = vadd.f32 0.0, %v1244
    %1246 = vmatmul.f32.gmra.mxu0 %v865
    %v1247 = vpop.f32.mrf.mxu0
    %v1248 = vadd.f32 0.0, %v1247
    %1249 = vmatmul.f32.gmra.mxu0 %v868
    %v1250 = vpop.f32.mrf.mxu0
    %v1251 = vadd.f32 0.0, %v1250
    %1252 = vmatmul.f32.gmra.mxu0 %v871
    %v1253 = vpop.f32.mrf.mxu0
    %v1254 = vadd.f32 0.0, %v1253
    %1255 = vmatmul.f32.gmra.mxu0 %v874
    %v1256 = vpop.f32.mrf.mxu0
    %v1257 = vadd.f32 0.0, %v1256
    %1258 = vmatmul.f32.gmra.mxu0 %v877
    %v1259 = vpop.f32.mrf.mxu0
    %v1260 = vadd.f32 0.0, %v1259
    %1261 = vmatmul.f32.gmra.mxu0 %v880
    %v1262 = vpop.f32.mrf.mxu0
    %v1263 = vadd.f32 0.0, %v1262
    %1264 = vmatmul.f32.gmra.mxu0 %v883
    %v1265 = vpop.f32.mrf.mxu0
    %v1266 = vadd.f32 0.0, %v1265
    %1267 = vmatmul.f32.gmra.mxu0 %v886
    %v1268 = vpop.f32.mrf.mxu0
    %v1269 = vadd.f32 0.0, %v1268
    %1270 = vmatmul.f32.gmra.mxu0 %v1070
    %v1271 = vpop.f32.mrf.mxu0
    %v1272 = vadd.f32 0.0, %v1271
    %1273 = vmatmul.f32.gmra.mxu0 %v1186
    %v1274 = vpop.f32.mrf.mxu0
    %v1275 = vadd.f32 0.0, %v1274
    %1276 = vdwg.mxu0
    %v1277 = vadd.f32 %v1161, %v1206
    %v1278 = vadd.f32 %v1162, %v1209
    %v1279 = vadd.f32 %v1163, %v1212
    %v1280 = vadd.f32 %v1164, %v1215
    %v1281 = vadd.f32 %v1165, %v1218
    %v1282 = vadd.f32 %v1166, %v1221
    %v1283 = vadd.f32 %v1167, %v1224
    %v1284 = vadd.f32 %v1168, %v1227
    %v1285 = vadd.f32 %v1169, %v1230
    %v1286 = vadd.f32 %v1170, %v1233
    %v1287 = vadd.f32 %v1171, %v1236
    %v1288 = vadd.f32 %v1172, %v1239
    %v1289 = vadd.f32 %v1173, %v1242
    %v1290 = vadd.f32 %v1174, %v1245
    %v1291 = vadd.f32 %v1175, %v1248
    %v1292 = vadd.f32 %v1176, %v1251
    %v1293 = vadd.f32 %v1177, %v1254
    %v1294 = vadd.f32 %v1178, %v1257
    %v1295 = vadd.f32 %v1179, %v1260
    %v1296 = vadd.f32 %v1180, %v1263
    %v1297 = vadd.f32 %v1181, %v1266
    %v1298 = vadd.f32 %v1182, %v1269
    %v1299 = vadd.f32 %v1183, %v1272
    %v1300 = vadd.f32 %v1184, %v1275
    %v1302 = vsel %vm64, %v809, 0
    %1304 = vmatpush.msra.mxu0 0.0
    %1305 = vmatpush.msra.mxu0 0.0
    %1306 = vmatpush.msra.mxu0 0.0
    %1307 = vmatpush.msra.mxu0 0.0
    %1308 = vmatpush.msra.mxu0 0.0
    %1309 = vmatpush.msra.mxu0 0.0
    %1310 = vmatpush.msra.mxu0 0.0
    %1311 = vmatpush.msra.mxu0 0.0
    %1312 = vmatpush.msra.mxu0 0.0
    %1313 = vmatpush.msra.mxu0 0.0
    %1314 = vmatpush.msra.mxu0 0.0
    %1315 = vmatpush.msra.mxu0 0.0
    %1316 = vmatpush.msra.mxu0 0.0
    %1317 = vmatpush.msra.mxu0 0.0
    %1318 = vmatpush.msra.mxu0 0.0
    %1319 = vmatpush.msra.mxu0 %v815
    %1320 = vmatmul.f32.gmra.mxu0 %v826
    %v1321 = vpop.f32.mrf.mxu0
    %v1322 = vadd.f32 0.0, %v1321
    %1323 = vmatmul.f32.gmra.mxu0 %v829
    %v1324 = vpop.f32.mrf.mxu0
    %v1325 = vadd.f32 0.0, %v1324
    %1326 = vmatmul.f32.gmra.mxu0 %v832
    %v1327 = vpop.f32.mrf.mxu0
    %v1328 = vadd.f32 0.0, %v1327
    %1329 = vmatmul.f32.gmra.mxu0 %v835
    %v1330 = vpop.f32.mrf.mxu0
    %v1331 = vadd.f32 0.0, %v1330
    %1332 = vmatmul.f32.gmra.mxu0 %v838
    %v1333 = vpop.f32.mrf.mxu0
    %v1334 = vadd.f32 0.0, %v1333
    %1335 = vmatmul.f32.gmra.mxu0 %v841
    %v1336 = vpop.f32.mrf.mxu0
    %v1337 = vadd.f32 0.0, %v1336
    %1338 = vmatmul.f32.gmra.mxu0 %v844
    %v1339 = vpop.f32.mrf.mxu0
    %v1340 = vadd.f32 0.0, %v1339
    %1341 = vmatmul.f32.gmra.mxu0 %v847
    %v1342 = vpop.f32.mrf.mxu0
    %v1343 = vadd.f32 0.0, %v1342
    %1344 = vmatmul.f32.gmra.mxu0 %v850
    %v1345 = vpop.f32.mrf.mxu0
    %v1346 = vadd.f32 0.0, %v1345
    %1347 = vmatmul.f32.gmra.mxu0 %v853
    %v1348 = vpop.f32.mrf.mxu0
    %v1349 = vadd.f32 0.0, %v1348
    %1350 = vmatmul.f32.gmra.mxu0 %v856
    %v1351 = vpop.f32.mrf.mxu0
    %v1352 = vadd.f32 0.0, %v1351
    %1353 = vmatmul.f32.gmra.mxu0 %v859
    %v1354 = vpop.f32.mrf.mxu0
    %v1355 = vadd.f32 0.0, %v1354
    %1356 = vmatmul.f32.gmra.mxu0 %v862
    %v1357 = vpop.f32.mrf.mxu0
    %v1358 = vadd.f32 0.0, %v1357
    %1359 = vmatmul.f32.gmra.mxu0 %v865
    %v1360 = vpop.f32.mrf.mxu0
    %v1361 = vadd.f32 0.0, %v1360
    %1362 = vmatmul.f32.gmra.mxu0 %v868
    %v1363 = vpop.f32.mrf.mxu0
    %v1364 = vadd.f32 0.0, %v1363
    %1365 = vmatmul.f32.gmra.mxu0 %v871
    %v1366 = vpop.f32.mrf.mxu0
    %v1367 = vadd.f32 0.0, %v1366
    %1368 = vmatmul.f32.gmra.mxu0 %v874
    %v1369 = vpop.f32.mrf.mxu0
    %v1370 = vadd.f32 0.0, %v1369
    %1371 = vmatmul.f32.gmra.mxu0 %v877
    %v1372 = vpop.f32.mrf.mxu0
    %v1373 = vadd.f32 0.0, %v1372
    %1374 = vmatmul.f32.gmra.mxu0 %v880
    %v1375 = vpop.f32.mrf.mxu0
    %v1376 = vadd.f32 0.0, %v1375
    %1377 = vmatmul.f32.gmra.mxu0 %v883
    %v1378 = vpop.f32.mrf.mxu0
    %v1379 = vadd.f32 0.0, %v1378
    %1380 = vmatmul.f32.gmra.mxu0 %v886
    %v1381 = vpop.f32.mrf.mxu0
    %v1382 = vadd.f32 0.0, %v1381
    %1383 = vmatmul.f32.gmra.mxu0 %v1070
    %v1384 = vpop.f32.mrf.mxu0
    %v1385 = vadd.f32 0.0, %v1384
    %1386 = vmatmul.f32.gmra.mxu0 %v1186
    %v1387 = vpop.f32.mrf.mxu0
    %v1388 = vadd.f32 0.0, %v1387
    %1389 = vmatmul.f32.gmra.mxu0 %v1302
    %v1390 = vpop.f32.mrf.mxu0
    %v1391 = vadd.f32 0.0, %v1390
    %1392 = vdwg.mxu0
    %v1393 = vadd.f32 %v1277, %v1322
    %v1394 = vadd.f32 %v1278, %v1325
    %v1395 = vadd.f32 %v1279, %v1328
    %v1396 = vadd.f32 %v1280, %v1331
    %v1397 = vadd.f32 %v1281, %v1334
    %v1398 = vadd.f32 %v1282, %v1337
    %v1399 = vadd.f32 %v1283, %v1340
    %v1400 = vadd.f32 %v1284, %v1343
    %v1401 = vadd.f32 %v1285, %v1346
    %v1402 = vadd.f32 %v1286, %v1349
    %v1403 = vadd.f32 %v1287, %v1352
    %v1404 = vadd.f32 %v1288, %v1355
    %v1405 = vadd.f32 %v1289, %v1358
    %v1406 = vadd.f32 %v1290, %v1361
    %v1407 = vadd.f32 %v1291, %v1364
    %v1408 = vadd.f32 %v1292, %v1367
    %v1409 = vadd.f32 %v1293, %v1370
    %v1410 = vadd.f32 %v1294, %v1373
    %v1411 = vadd.f32 %v1295, %v1376
    %v1412 = vadd.f32 %v1296, %v1379
    %v1413 = vadd.f32 %v1297, %v1382
    %v1414 = vadd.f32 %v1298, %v1385
    %v1415 = vadd.f32 %v1299, %v1388
    %v1416 = vadd.f32 %v1300, %v1391
    %s1417 = scalar_lea.vmem %s2, 1
    %v1418 = vld [vmem:[%s1417] sm:$0x1]
    %v1420 = vperm.slane %v1418, 0
    %v1422 = vadd.f32 %v1393, %v1420
    %v1423 = vadd.f32 %v1394, %v1420
    %v1424 = vadd.f32 %v1395, %v1420
    %v1425 = vadd.f32 %v1396, %v1420
    %v1426 = vadd.f32 %v1397, %v1420
    %v1427 = vadd.f32 %v1398, %v1420
    %v1428 = vadd.f32 %v1399, %v1420
    %v1429 = vadd.f32 %v1400, %v1420
    %v1430 = vadd.f32 %v1401, %v1420
    %v1431 = vadd.f32 %v1402, %v1420
    %v1432 = vadd.f32 %v1403, %v1420
    %v1433 = vadd.f32 %v1404, %v1420
    %v1434 = vadd.f32 %v1405, %v1420
    %v1435 = vadd.f32 %v1406, %v1420
    %v1436 = vadd.f32 %v1407, %v1420
    %v1437 = vadd.f32 %v1408, %v1420
    %v1438 = vadd.f32 %v1409, %v1420
    %v1439 = vadd.f32 %v1410, %v1420
    %v1440 = vadd.f32 %v1411, %v1420
    %v1441 = vadd.f32 %v1412, %v1420
    %v1442 = vadd.f32 %v1413, %v1420
    %v1443 = vadd.f32 %v1414, %v1420
    %v1444 = vadd.f32 %v1415, %v1420
    %v1445 = vadd.f32 %v1416, %v1420
    %v1446 = vmax.f32 %v1422, 0.0
    %v1447 = vmax.f32 %v1423, 0.0
    %v1448 = vmax.f32 %v1424, 0.0
    %v1449 = vmax.f32 %v1425, 0.0
    %v1450 = vmax.f32 %v1426, 0.0
    %v1451 = vmax.f32 %v1427, 0.0
    %v1452 = vmax.f32 %v1428, 0.0
    %v1453 = vmax.f32 %v1429, 0.0
    %v1454 = vmax.f32 %v1430, 0.0
    %v1455 = vmax.f32 %v1431, 0.0
    %v1456 = vmax.f32 %v1432, 0.0
    %v1457 = vmax.f32 %v1433, 0.0
    %v1458 = vmax.f32 %v1434, 0.0
    %v1459 = vmax.f32 %v1435, 0.0
    %v1460 = vmax.f32 %v1436, 0.0
    %v1461 = vmax.f32 %v1437, 0.0
    %v1462 = vmax.f32 %v1438, 0.0
    %v1463 = vmax.f32 %v1439, 0.0
    %v1464 = vmax.f32 %v1440, 0.0
    %v1465 = vmax.f32 %v1441, 0.0
    %v1466 = vmax.f32 %v1442, 0.0
    %v1467 = vmax.f32 %v1443, 0.0
    %v1468 = vmax.f32 %v1444, 0.0
    %v1469 = vmax.f32 %v1445, 0.0
    %v1470 = vmax.f32 %v1446, %v1447
    %v1471 = vmax.f32 %v1448, %v1449
    %v1472 = vmax.f32 %v1450, %v1451
    %v1473 = vmax.f32 %v1452, %v1453
    %v1474 = vmax.f32 %v1454, %v1455
    %v1475 = vmax.f32 %v1456, %v1457
    %v1476 = vmax.f32 %v1458, %v1459
    %v1477 = vmax.f32 %v1460, %v1461
    %v1478 = vmax.f32 %v1462, %v1463
    %v1479 = vmax.f32 %v1464, %v1465
    %v1480 = vmax.f32 %v1466, %v1467
    %v1481 = vmax.f32 %v1468, %v1469
    %s1482 = scalar_lea.vmem %s1, 80
    %v1483 = vld [vmem:[%s1482] sm:$0xff]
    %v1484 = vld [vmem:[%s1482 + $0x8] sm:$0xff]
    %v1485 = vld [vmem:[%s1482 + $0x10] sm:$0xff]
    %v1486 = vld [vmem:[%s1482 + $0x18] sm:$0xff]
    %v1487 = vld [vmem:[%s1482 + $0x20] sm:$0xff]
    %v1489 = vsel %vm64, %v1471, 0
    %v1492 = vsel %vm64, %v1472, 0
    %v1495 = vsel %vm64, %v1473, 0
    %v1498 = vsel %vm64, %v1474, 0
    %v1501 = vsel %vm64, %v1475, 0
    %v1504 = vsel %vm64, %v1476, 0
    %v1507 = vsel %vm64, %v1477, 0
    %v1510 = vsel %vm64, %v1478, 0
    %1512 = vmatpush.msra.mxu0 0.0
    %1513 = vmatpush.msra.mxu0 0.0
    %1514 = vmatpush.msra.mxu0 0.0
    %1515 = vmatpush.msra.mxu0 0.0
    %1516 = vmatpush.msra.mxu0 0.0
    %1517 = vmatpush.msra.mxu0 0.0
    %1518 = vmatpush.msra.mxu0 0.0
    %1519 = vmatpush.msra.mxu0 0.0
    %1520 = vmatpush.msra.mxu0 0.0
    %1521 = vmatpush.msra.mxu0 0.0
    %1522 = vmatpush.msra.mxu0 0.0
    %1523 = vmatpush.msra.mxu0 0.0
    %1524 = vmatpush.msra.mxu0 0.0
    %1525 = vmatpush.msra.mxu0 0.0
    %1526 = vmatpush.msra.mxu0 0.0
    %1527 = vmatpush.msra.mxu0 %v1484
    %1528 = vmatmul.f32.gmra.mxu0 %v1489
    %v1529 = vpop.f32.mrf.mxu0
    %v1530 = vadd.f32 0.0, %v1529
    %1531 = vmatmul.f32.gmra.mxu0 %v1492
    %v1532 = vpop.f32.mrf.mxu0
    %v1533 = vadd.f32 0.0, %v1532
    %1534 = vmatmul.f32.gmra.mxu0 %v1495
    %v1535 = vpop.f32.mrf.mxu0
    %v1536 = vadd.f32 0.0, %v1535
    %1537 = vmatmul.f32.gmra.mxu0 %v1498
    %v1538 = vpop.f32.mrf.mxu0
    %v1539 = vadd.f32 0.0, %v1538
    %1540 = vmatmul.f32.gmra.mxu0 %v1501
    %v1541 = vpop.f32.mrf.mxu0
    %v1542 = vadd.f32 0.0, %v1541
    %1543 = vmatmul.f32.gmra.mxu0 %v1504
    %v1544 = vpop.f32.mrf.mxu0
    %v1545 = vadd.f32 0.0, %v1544
    %1546 = vmatmul.f32.gmra.mxu0 %v1507
    %v1547 = vpop.f32.mrf.mxu0
    %v1548 = vadd.f32 0.0, %v1547
    %1549 = vmatmul.f32.gmra.mxu0 %v1510
    %v1550 = vpop.f32.mrf.mxu0
    %v1551 = vadd.f32 0.0, %v1550
    %1552 = vdwg.mxu0
    %v1554 = vsel %vm64, %v1470, 0
    %1556 = vmatpush.msra.mxu0 0.0
    %1557 = vmatpush.msra.mxu0 0.0
    %1558 = vmatpush.msra.mxu0 0.0
    %1559 = vmatpush.msra.mxu0 0.0
    %1560 = vmatpush.msra.mxu0 0.0
    %1561 = vmatpush.msra.mxu0 0.0
    %1562 = vmatpush.msra.mxu0 0.0
    %1563 = vmatpush.msra.mxu0 0.0
    %1564 = vmatpush.msra.mxu0 0.0
    %1565 = vmatpush.msra.mxu0 0.0
    %1566 = vmatpush.msra.mxu0 0.0
    %1567 = vmatpush.msra.mxu0 0.0
    %1568 = vmatpush.msra.mxu0 0.0
    %1569 = vmatpush.msra.mxu0 0.0
    %1570 = vmatpush.msra.mxu0 0.0
    %1571 = vmatpush.msra.mxu0 %v1483
    %1572 = vmatmul.f32.gmra.mxu0 %v1554
    %v1573 = vpop.f32.mrf.mxu0
    %v1574 = vadd.f32 %v1530, %v1573
    %1575 = vmatmul.f32.gmra.mxu0 %v1489
    %v1576 = vpop.f32.mrf.mxu0
    %v1577 = vadd.f32 %v1533, %v1576
    %1578 = vmatmul.f32.gmra.mxu0 %v1492
    %v1579 = vpop.f32.mrf.mxu0
    %v1580 = vadd.f32 %v1536, %v1579
    %1581 = vmatmul.f32.gmra.mxu0 %v1495
    %v1582 = vpop.f32.mrf.mxu0
    %v1583 = vadd.f32 %v1539, %v1582
    %1584 = vmatmul.f32.gmra.mxu0 %v1498
    %v1585 = vpop.f32.mrf.mxu0
    %v1586 = vadd.f32 %v1542, %v1585
    %1587 = vmatmul.f32.gmra.mxu0 %v1501
    %v1588 = vpop.f32.mrf.mxu0
    %v1589 = vadd.f32 %v1545, %v1588
    %1590 = vmatmul.f32.gmra.mxu0 %v1504
    %v1591 = vpop.f32.mrf.mxu0
    %v1592 = vadd.f32 %v1548, %v1591
    %1593 = vmatmul.f32.gmra.mxu0 %v1507
    %v1594 = vpop.f32.mrf.mxu0
    %v1595 = vadd.f32 %v1551, %v1594
    %1596 = vdwg.mxu0
    %v1598 = vsel %vm64, %v1479, 0
    %1600 = vmatpush.msra.mxu0 0.0
    %1601 = vmatpush.msra.mxu0 0.0
    %1602 = vmatpush.msra.mxu0 0.0
    %1603 = vmatpush.msra.mxu0 0.0
    %1604 = vmatpush.msra.mxu0 0.0
    %1605 = vmatpush.msra.mxu0 0.0
    %1606 = vmatpush.msra.mxu0 0.0
    %1607 = vmatpush.msra.mxu0 0.0
    %1608 = vmatpush.msra.mxu0 0.0
    %1609 = vmatpush.msra.mxu0 0.0
    %1610 = vmatpush.msra.mxu0 0.0
    %1611 = vmatpush.msra.mxu0 0.0
    %1612 = vmatpush.msra.mxu0 0.0
    %1613 = vmatpush.msra.mxu0 0.0
    %1614 = vmatpush.msra.mxu0 0.0
    %1615 = vmatpush.msra.mxu0 %v1485
    %1616 = vmatmul.f32.gmra.mxu0 %v1492
    %v1617 = vpop.f32.mrf.mxu0
    %v1618 = vadd.f32 0.0, %v1617
    %1619 = vmatmul.f32.gmra.mxu0 %v1495
    %v1620 = vpop.f32.mrf.mxu0
    %v1621 = vadd.f32 0.0, %v1620
    %1622 = vmatmul.f32.gmra.mxu0 %v1498
    %v1623 = vpop.f32.mrf.mxu0
    %v1624 = vadd.f32 0.0, %v1623
    %1625 = vmatmul.f32.gmra.mxu0 %v1501
    %v1626 = vpop.f32.mrf.mxu0
    %v1627 = vadd.f32 0.0, %v1626
    %1628 = vmatmul.f32.gmra.mxu0 %v1504
    %v1629 = vpop.f32.mrf.mxu0
    %v1630 = vadd.f32 0.0, %v1629
    %1631 = vmatmul.f32.gmra.mxu0 %v1507
    %v1632 = vpop.f32.mrf.mxu0
    %v1633 = vadd.f32 0.0, %v1632
    %1634 = vmatmul.f32.gmra.mxu0 %v1510
    %v1635 = vpop.f32.mrf.mxu0
    %v1636 = vadd.f32 0.0, %v1635
    %1637 = vmatmul.f32.gmra.mxu0 %v1598
    %v1638 = vpop.f32.mrf.mxu0
    %v1639 = vadd.f32 0.0, %v1638
    %1640 = vdwg.mxu0
    %v1641 = vadd.f32 %v1574, %v1618
    %v1642 = vadd.f32 %v1577, %v1621
    %v1643 = vadd.f32 %v1580, %v1624
    %v1644 = vadd.f32 %v1583, %v1627
    %v1645 = vadd.f32 %v1586, %v1630
    %v1646 = vadd.f32 %v1589, %v1633
    %v1647 = vadd.f32 %v1592, %v1636
    %v1648 = vadd.f32 %v1595, %v1639
    %v1650 = vsel %vm64, %v1480, 0
    %1652 = vmatpush.msra.mxu0 0.0
    %1653 = vmatpush.msra.mxu0 0.0
    %1654 = vmatpush.msra.mxu0 0.0
    %1655 = vmatpush.msra.mxu0 0.0
    %1656 = vmatpush.msra.mxu0 0.0
    %1657 = vmatpush.msra.mxu0 0.0
    %1658 = vmatpush.msra.mxu0 0.0
    %1659 = vmatpush.msra.mxu0 0.0
    %1660 = vmatpush.msra.mxu0 0.0
    %1661 = vmatpush.msra.mxu0 0.0
    %1662 = vmatpush.msra.mxu0 0.0
    %1663 = vmatpush.msra.mxu0 0.0
    %1664 = vmatpush.msra.mxu0 0.0
    %1665 = vmatpush.msra.mxu0 0.0
    %1666 = vmatpush.msra.mxu0 0.0
    %1667 = vmatpush.msra.mxu0 %v1486
    %1668 = vmatmul.f32.gmra.mxu0 %v1495
    %v1669 = vpop.f32.mrf.mxu0
    %v1670 = vadd.f32 0.0, %v1669
    %1671 = vmatmul.f32.gmra.mxu0 %v1498
    %v1672 = vpop.f32.mrf.mxu0
    %v1673 = vadd.f32 0.0, %v1672
    %1674 = vmatmul.f32.gmra.mxu0 %v1501
    %v1675 = vpop.f32.mrf.mxu0
    %v1676 = vadd.f32 0.0, %v1675
    %1677 = vmatmul.f32.gmra.mxu0 %v1504
    %v1678 = vpop.f32.mrf.mxu0
    %v1679 = vadd.f32 0.0, %v1678
    %1680 = vmatmul.f32.gmra.mxu0 %v1507
    %v1681 = vpop.f32.mrf.mxu0
    %v1682 = vadd.f32 0.0, %v1681
    %1683 = vmatmul.f32.gmra.mxu0 %v1510
    %v1684 = vpop.f32.mrf.mxu0
    %v1685 = vadd.f32 0.0, %v1684
    %1686 = vmatmul.f32.gmra.mxu0 %v1598
    %v1687 = vpop.f32.mrf.mxu0
    %v1688 = vadd.f32 0.0, %v1687
    %1689 = vmatmul.f32.gmra.mxu0 %v1650
    %v1690 = vpop.f32.mrf.mxu0
    %v1691 = vadd.f32 0.0, %v1690
    %1692 = vdwg.mxu0
    %v1693 = vadd.f32 %v1641, %v1670
    %v1694 = vadd.f32 %v1642, %v1673
    %v1695 = vadd.f32 %v1643, %v1676
    %v1696 = vadd.f32 %v1644, %v1679
    %v1697 = vadd.f32 %v1645, %v1682
    %v1698 = vadd.f32 %v1646, %v1685
    %v1699 = vadd.f32 %v1647, %v1688
    %v1700 = vadd.f32 %v1648, %v1691
    %v1702 = vsel %vm64, %v1481, 0
    %1704 = vmatpush.msra.mxu0 0.0
    %1705 = vmatpush.msra.mxu0 0.0
    %1706 = vmatpush.msra.mxu0 0.0
    %1707 = vmatpush.msra.mxu0 0.0
    %1708 = vmatpush.msra.mxu0 0.0
    %1709 = vmatpush.msra.mxu0 0.0
    %1710 = vmatpush.msra.mxu0 0.0
    %1711 = vmatpush.msra.mxu0 0.0
    %1712 = vmatpush.msra.mxu0 0.0
    %1713 = vmatpush.msra.mxu0 0.0
    %1714 = vmatpush.msra.mxu0 0.0
    %1715 = vmatpush.msra.mxu0 0.0
    %1716 = vmatpush.msra.mxu0 0.0
    %1717 = vmatpush.msra.mxu0 0.0
    %1718 = vmatpush.msra.mxu0 0.0
    %1719 = vmatpush.msra.mxu0 %v1487
    %1720 = vmatmul.f32.gmra.mxu0 %v1498
    %v1721 = vpop.f32.mrf.mxu0
    %v1722 = vadd.f32 0.0, %v1721
    %1723 = vmatmul.f32.gmra.mxu0 %v1501
    %v1724 = vpop.f32.mrf.mxu0
    %v1725 = vadd.f32 0.0, %v1724
    %1726 = vmatmul.f32.gmra.mxu0 %v1504
    %v1727 = vpop.f32.mrf.mxu0
    %v1728 = vadd.f32 0.0, %v1727
    %1729 = vmatmul.f32.gmra.mxu0 %v1507
    %v1730 = vpop.f32.mrf.mxu0
    %v1731 = vadd.f32 0.0, %v1730
    %1732 = vmatmul.f32.gmra.mxu0 %v1510
    %v1733 = vpop.f32.mrf.mxu0
    %v1734 = vadd.f32 0.0, %v1733
    %1735 = vmatmul.f32.gmra.mxu0 %v1598
    %v1736 = vpop.f32.mrf.mxu0
    %v1737 = vadd.f32 0.0, %v1736
    %1738 = vmatmul.f32.gmra.mxu0 %v1650
    %v1739 = vpop.f32.mrf.mxu0
    %v1740 = vadd.f32 0.0, %v1739
    %1741 = vmatmul.f32.gmra.mxu0 %v1702
    %v1742 = vpop.f32.mrf.mxu0
    %v1743 = vadd.f32 0.0, %v1742
    %1744 = vdwg.mxu0
    %v1745 = vadd.f32 %v1693, %v1722
    %v1746 = vadd.f32 %v1694, %v1725
    %v1747 = vadd.f32 %v1695, %v1728
    %v1748 = vadd.f32 %v1696, %v1731
    %v1749 = vadd.f32 %v1697, %v1734
    %v1750 = vadd.f32 %v1698, %v1737
    %v1751 = vadd.f32 %v1699, %v1740
    %v1752 = vadd.f32 %v1700, %v1743
    %s1753 = scalar_lea.vmem %s2, 2
    %v1754 = vld [vmem:[%s1753] sm:$0x1]
    %v1756 = vperm.slane %v1754, 0
    %v1758 = vadd.f32 %v1745, %v1756
    %v1759 = vadd.f32 %v1746, %v1756
    %v1760 = vadd.f32 %v1747, %v1756
    %v1761 = vadd.f32 %v1748, %v1756
    %v1762 = vadd.f32 %v1749, %v1756
    %v1763 = vadd.f32 %v1750, %v1756
    %v1764 = vadd.f32 %v1751, %v1756
    %v1765 = vadd.f32 %v1752, %v1756
    %v1766 = vmax.f32 %v1758, 0.0
    %v1767 = vmax.f32 %v1759, 0.0
    %v1768 = vmax.f32 %v1760, 0.0
    %v1769 = vmax.f32 %v1761, 0.0
    %v1770 = vmax.f32 %v1762, 0.0
    %v1771 = vmax.f32 %v1763, 0.0
    %v1772 = vmax.f32 %v1764, 0.0
    %v1773 = vmax.f32 %v1765, 0.0
    %s1774 = scalar_lea.vmem %s1, 120
    %v1775 = vld [vmem:[%s1774] sm:$0xff]
    %v1776 = vld [vmem:[%s1774 + $0x8] sm:$0xff]
    %v1777 = vld [vmem:[%s1774 + $0x10] sm:$0xff]
    %v1778 = vld [vmem:[%s1774 + $0x18] sm:$0xff]
    %v1779 = vld [vmem:[%s1774 + $0x20] sm:$0xff]
    %v1781 = vsel %vm64, %v1767, 0
    %v1784 = vsel %vm64, %v1768, 0
    %v1787 = vsel %vm64, %v1769, 0
    %v1790 = vsel %vm64, %v1770, 0
    %1792 = vmatpush.msra.mxu0 0.0
    %1793 = vmatpush.msra.mxu0 0.0
    %1794 = vmatpush.msra.mxu0 0.0
    %1795 = vmatpush.msra.mxu0 0.0
    %1796 = vmatpush.msra.mxu0 0.0
    %1797 = vmatpush.msra.mxu0 0.0
    %1798 = vmatpush.msra.mxu0 0.0
    %1799 = vmatpush.msra.mxu0 0.0
    %1800 = vmatpush.msra.mxu0 0.0
    %1801 = vmatpush.msra.mxu0 0.0
    %1802 = vmatpush.msra.mxu0 0.0
    %1803 = vmatpush.msra.mxu0 0.0
    %1804 = vmatpush.msra.mxu0 0.0
    %1805 = vmatpush.msra.mxu0 0.0
    %1806 = vmatpush.msra.mxu0 0.0
    %1807 = vmatpush.msra.mxu0 %v1776
    %1808 = vmatmul.f32.gmra.mxu0 %v1781
    %v1809 = vpop.f32.mrf.mxu0
    %v1810 = vadd.f32 0.0, %v1809
    %1811 = vmatmul.f32.gmra.mxu0 %v1784
    %v1812 = vpop.f32.mrf.mxu0
    %v1813 = vadd.f32 0.0, %v1812
    %1814 = vmatmul.f32.gmra.mxu0 %v1787
    %v1815 = vpop.f32.mrf.mxu0
    %v1816 = vadd.f32 0.0, %v1815
    %1817 = vmatmul.f32.gmra.mxu0 %v1790
    %v1818 = vpop.f32.mrf.mxu0
    %v1819 = vadd.f32 0.0, %v1818
    %1820 = vdwg.mxu0
    %v1822 = vsel %vm64, %v1766, 0
    %1824 = vmatpush.msra.mxu0 0.0
    %1825 = vmatpush.msra.mxu0 0.0
    %1826 = vmatpush.msra.mxu0 0.0
    %1827 = vmatpush.msra.mxu0 0.0
    %1828 = vmatpush.msra.mxu0 0.0
    %1829 = vmatpush.msra.mxu0 0.0
    %1830 = vmatpush.msra.mxu0 0.0
    %1831 = vmatpush.msra.mxu0 0.0
    %1832 = vmatpush.msra.mxu0 0.0
    %1833 = vmatpush.msra.mxu0 0.0
    %1834 = vmatpush.msra.mxu0 0.0
    %1835 = vmatpush.msra.mxu0 0.0
    %1836 = vmatpush.msra.mxu0 0.0
    %1837 = vmatpush.msra.mxu0 0.0
    %1838 = vmatpush.msra.mxu0 0.0
    %1839 = vmatpush.msra.mxu0 %v1775
    %1840 = vmatmul.f32.gmra.mxu0 %v1822
    %v1841 = vpop.f32.mrf.mxu0
    %v1842 = vadd.f32 %v1810, %v1841
    %1843 = vmatmul.f32.gmra.mxu0 %v1781
    %v1844 = vpop.f32.mrf.mxu0
    %v1845 = vadd.f32 %v1813, %v1844
    %1846 = vmatmul.f32.gmra.mxu0 %v1784
    %v1847 = vpop.f32.mrf.mxu0
    %v1848 = vadd.f32 %v1816, %v1847
    %1849 = vmatmul.f32.gmra.mxu0 %v1787
    %v1850 = vpop.f32.mrf.mxu0
    %v1851 = vadd.f32 %v1819, %v1850
    %1852 = vdwg.mxu0
    %v1854 = vsel %vm64, %v1771, 0
    %1856 = vmatpush.msra.mxu0 0.0
    %1857 = vmatpush.msra.mxu0 0.0
    %1858 = vmatpush.msra.mxu0 0.0
    %1859 = vmatpush.msra.mxu0 0.0
    %1860 = vmatpush.msra.mxu0 0.0
    %1861 = vmatpush.msra.mxu0 0.0
    %1862 = vmatpush.msra.mxu0 0.0
    %1863 = vmatpush.msra.mxu0 0.0
    %1864 = vmatpush.msra.mxu0 0.0
    %1865 = vmatpush.msra.mxu0 0.0
    %1866 = vmatpush.msra.mxu0 0.0
    %1867 = vmatpush.msra.mxu0 0.0
    %1868 = vmatpush.msra.mxu0 0.0
    %1869 = vmatpush.msra.mxu0 0.0
    %1870 = vmatpush.msra.mxu0 0.0
    %1871 = vmatpush.msra.mxu0 %v1777
    %1872 = vmatmul.f32.gmra.mxu0 %v1784
    %v1873 = vpop.f32.mrf.mxu0
    %v1874 = vadd.f32 0.0, %v1873
    %1875 = vmatmul.f32.gmra.mxu0 %v1787
    %v1876 = vpop.f32.mrf.mxu0
    %v1877 = vadd.f32 0.0, %v1876
    %1878 = vmatmul.f32.gmra.mxu0 %v1790
    %v1879 = vpop.f32.mrf.mxu0
    %v1880 = vadd.f32 0.0, %v1879
    %1881 = vmatmul.f32.gmra.mxu0 %v1854
    %v1882 = vpop.f32.mrf.mxu0
    %v1883 = vadd.f32 0.0, %v1882
    %1884 = vdwg.mxu0
    %v1885 = vadd.f32 %v1842, %v1874
    %v1886 = vadd.f32 %v1845, %v1877
    %v1887 = vadd.f32 %v1848, %v1880
    %v1888 = vadd.f32 %v1851, %v1883
    %v1890 = vsel %vm64, %v1772, 0
    %1892 = vmatpush.msra.mxu0 0.0
    %1893 = vmatpush.msra.mxu0 0.0
    %1894 = vmatpush.msra.mxu0 0.0
    %1895 = vmatpush.msra.mxu0 0.0
    %1896 = vmatpush.msra.mxu0 0.0
    %1897 = vmatpush.msra.mxu0 0.0
    %1898 = vmatpush.msra.mxu0 0.0
    %1899 = vmatpush.msra.mxu0 0.0
    %1900 = vmatpush.msra.mxu0 0.0
    %1901 = vmatpush.msra.mxu0 0.0
    %1902 = vmatpush.msra.mxu0 0.0
    %1903 = vmatpush.msra.mxu0 0.0
    %1904 = vmatpush.msra.mxu0 0.0
    %1905 = vmatpush.msra.mxu0 0.0
    %1906 = vmatpush.msra.mxu0 0.0
    %1907 = vmatpush.msra.mxu0 %v1778
    %1908 = vmatmul.f32.gmra.mxu0 %v1787
    %v1909 = vpop.f32.mrf.mxu0
    %v1910 = vadd.f32 0.0, %v1909
    %1911 = vmatmul.f32.gmra.mxu0 %v1790
    %v1912 = vpop.f32.mrf.mxu0
    %v1913 = vadd.f32 0.0, %v1912
    %1914 = vmatmul.f32.gmra.mxu0 %v1854
    %v1915 = vpop.f32.mrf.mxu0
    %v1916 = vadd.f32 0.0, %v1915
    %1917 = vmatmul.f32.gmra.mxu0 %v1890
    %v1918 = vpop.f32.mrf.mxu0
    %v1919 = vadd.f32 0.0, %v1918
    %1920 = vdwg.mxu0
    %v1921 = vadd.f32 %v1885, %v1910
    %v1922 = vadd.f32 %v1886, %v1913
    %v1923 = vadd.f32 %v1887, %v1916
    %v1924 = vadd.f32 %v1888, %v1919
    %v1926 = vsel %vm64, %v1773, 0
    %1928 = vmatpush.msra.mxu0 0.0
    %1929 = vmatpush.msra.mxu0 0.0
    %1930 = vmatpush.msra.mxu0 0.0
    %1931 = vmatpush.msra.mxu0 0.0
    %1932 = vmatpush.msra.mxu0 0.0
    %1933 = vmatpush.msra.mxu0 0.0
    %1934 = vmatpush.msra.mxu0 0.0
    %1935 = vmatpush.msra.mxu0 0.0
    %1936 = vmatpush.msra.mxu0 0.0
    %1937 = vmatpush.msra.mxu0 0.0
    %1938 = vmatpush.msra.mxu0 0.0
    %1939 = vmatpush.msra.mxu0 0.0
    %1940 = vmatpush.msra.mxu0 0.0
    %1941 = vmatpush.msra.mxu0 0.0
    %1942 = vmatpush.msra.mxu0 0.0
    %1943 = vmatpush.msra.mxu0 %v1779
    %1944 = vmatmul.f32.gmra.mxu0 %v1790
    %v1945 = vpop.f32.mrf.mxu0
    %v1946 = vadd.f32 0.0, %v1945
    %1947 = vmatmul.f32.gmra.mxu0 %v1854
    %v1948 = vpop.f32.mrf.mxu0
    %v1949 = vadd.f32 0.0, %v1948
    %1950 = vmatmul.f32.gmra.mxu0 %v1890
    %v1951 = vpop.f32.mrf.mxu0
    %v1952 = vadd.f32 0.0, %v1951
    %1953 = vmatmul.f32.gmra.mxu0 %v1926
    %v1954 = vpop.f32.mrf.mxu0
    %v1955 = vadd.f32 0.0, %v1954
    %1956 = vdwg.mxu0
    %v1957 = vadd.f32 %v1921, %v1946
    %v1958 = vadd.f32 %v1922, %v1949
    %v1959 = vadd.f32 %v1923, %v1952
    %v1960 = vadd.f32 %v1924, %v1955
    %s1961 = scalar_lea.vmem %s2, 3
    %v1962 = vld [vmem:[%s1961] sm:$0x1]
    %v1964 = vperm.slane %v1962, 0
    %v1966 = vadd.f32 %v1957, %v1964
    %v1967 = vadd.f32 %v1958, %v1964
    %v1968 = vadd.f32 %v1959, %v1964
    %v1969 = vadd.f32 %v1960, %v1964
    %v1970 = vmax.f32 %v1966, 0.0
    %v1971 = vmax.f32 %v1967, 0.0
    %v1972 = vmax.f32 %v1968, 0.0
    %v1973 = vmax.f32 %v1969, 0.0
    %v1974 = vmax.f32 %v1970, %v1971
    %v1975 = vmax.f32 %v1972, %v1973
    %v1976 = vlaneseq
    %v1977 = vshrl.u32 %v1976, 7
    %v1978 = vlaneseq
    %v1979 = vand.u32 %v1978, 127
    %v1980 = vmul.u32 %v1977, 4
    %vm1981 = vcmp.eq.s32.totalorder %v1979, %v1980
    %v1982 = vsel %vm1981, 1, 0
    %v1983 = vcvt.s32.f32 %v1982
    %v1984 = vld [vmem:[%s3] sm:$0xff]
    %v1985 = vld [vmem:[%s3 + $0x8] sm:$0xff]
    %v1986 = vld [vmem:[%s3 + $0x10] sm:$0xff]
    %v1987 = vld [vmem:[%s3 + $0x18] sm:$0xff]
    %v1988 = vld [vmem:[%s3 + $0x20] sm:$0xff]
    %v1989 = vld [vmem:[%s3 + $0x28] sm:$0xff]
    %v1990 = vld [vmem:[%s3 + $0x30] sm:$0xff]
    %v1991 = vld [vmem:[%s3 + $0x38] sm:$0xff]
    %v1993 = vsel %vm64, %v1983, 0
    %1995 = vmatpush.msra.mxu0 0.0
    %1996 = vmatpush.msra.mxu0 0.0
    %1997 = vmatpush.msra.mxu0 0.0
    %1998 = vmatpush.msra.mxu0 0.0
    %1999 = vmatpush.msra.mxu0 0.0
    %2000 = vmatpush.msra.mxu0 0.0
    %2001 = vmatpush.msra.mxu0 0.0
    %2002 = vmatpush.msra.mxu0 0.0
    %2003 = vmatpush.msra.mxu0 0.0
    %2004 = vmatpush.msra.mxu0 0.0
    %2005 = vmatpush.msra.mxu0 0.0
    %2006 = vmatpush.msra.mxu0 0.0
    %2007 = vmatpush.msra.mxu0 0.0
    %2008 = vmatpush.msra.mxu0 0.0
    %2009 = vmatpush.msra.mxu0 0.0
    %2010 = vmatpush.msra.mxu0 %v1974
    %2011 = vmatmul.f32.gmra.mxu0 %v1993
    %v2012 = vpop.f32.mrf.mxu0
    %v2013 = vadd.f32 0.0, %v2012
    %2014 = vdwg.mxu0
    %2015 = vmatpush.msra.mxu0 0.0
    %2016 = vmatpush.msra.mxu0 0.0
    %2017 = vmatpush.msra.mxu0 0.0
    %2018 = vmatpush.msra.mxu0 0.0
    %2019 = vmatpush.msra.mxu0 0.0
    %2020 = vmatpush.msra.mxu0 0.0
    %2021 = vmatpush.msra.mxu0 0.0
    %2022 = vmatpush.msra.mxu0 0.0
    %2023 = vmatpush.msra.mxu0 0.0
    %2024 = vmatpush.msra.mxu0 0.0
    %2025 = vmatpush.msra.mxu0 0.0
    %2026 = vmatpush.msra.mxu0 0.0
    %2027 = vmatpush.msra.mxu0 0.0
    %2028 = vmatpush.msra.mxu0 0.0
    %2029 = vmatpush.msra.mxu0 0.0
    %2030 = vmatpush.msra.mxu0 %v1975
    %2031 = vmatmul.f32.gmra.mxu0 %v1993
    %v2032 = vpop.f32.mrf.mxu0
    %v2033 = vadd.f32 0.0, %v2032
    %2034 = vdwg.mxu0
    %v2036 = vsel %vm64, %v2033, 0
    %2038 = vmatpush.msra.mxu0 0.0
    %2039 = vmatpush.msra.mxu0 0.0
    %2040 = vmatpush.msra.mxu0 0.0
    %2041 = vmatpush.msra.mxu0 0.0
    %2042 = vmatpush.msra.mxu0 0.0
    %2043 = vmatpush.msra.mxu0 0.0
    %2044 = vmatpush.msra.mxu0 0.0
    %2045 = vmatpush.msra.mxu0 0.0
    %2046 = vmatpush.msra.mxu0 0.0
    %2047 = vmatpush.msra.mxu0 0.0
    %2048 = vmatpush.msra.mxu0 0.0
    %2049 = vmatpush.msra.mxu0 0.0
    %2050 = vmatpush.msra.mxu0 0.0
    %2051 = vmatpush.msra.mxu0 0.0
    %2052 = vmatpush.msra.mxu0 0.0
    %2053 = vmatpush.msra.mxu0 %v1988
    %2054 = vmatmul.f32.gmra.mxu0 %v2036
    %v2055 = vpop.f32.mrf.mxu0
    %v2056 = vadd.f32 0.0, %v2055
    %2057 = vdwg.mxu0
    %2058 = vmatpush.msra.mxu0 0.0
    %2059 = vmatpush.msra.mxu0 0.0
    %2060 = vmatpush.msra.mxu0 0.0
    %2061 = vmatpush.msra.mxu0 0.0
    %2062 = vmatpush.msra.mxu0 0.0
    %2063 = vmatpush.msra.mxu0 0.0
    %2064 = vmatpush.msra.mxu0 0.0
    %2065 = vmatpush.msra.mxu0 0.0
    %2066 = vmatpush.msra.mxu0 0.0
    %2067 = vmatpush.msra.mxu0 0.0
    %2068 = vmatpush.msra.mxu0 0.0
    %2069 = vmatpush.msra.mxu0 0.0
    %2070 = vmatpush.msra.mxu0 0.0
    %2071 = vmatpush.msra.mxu0 0.0
    %2072 = vmatpush.msra.mxu0 0.0
    %2073 = vmatpush.msra.mxu0 %v1989
    %2074 = vmatmul.f32.gmra.mxu0 %v2036
    %v2075 = vpop.f32.mrf.mxu0
    %v2076 = vadd.f32 0.0, %v2075
    %2077 = vdwg.mxu0
    %2078 = vmatpush.msra.mxu0 0.0
    %2079 = vmatpush.msra.mxu0 0.0
    %2080 = vmatpush.msra.mxu0 0.0
    %2081 = vmatpush.msra.mxu0 0.0
    %2082 = vmatpush.msra.mxu0 0.0
    %2083 = vmatpush.msra.mxu0 0.0
    %2084 = vmatpush.msra.mxu0 0.0
    %2085 = vmatpush.msra.mxu0 0.0
    %2086 = vmatpush.msra.mxu0 0.0
    %2087 = vmatpush.msra.mxu0 0.0
    %2088 = vmatpush.msra.mxu0 0.0
    %2089 = vmatpush.msra.mxu0 0.0
    %2090 = vmatpush.msra.mxu0 0.0
    %2091 = vmatpush.msra.mxu0 0.0
    %2092 = vmatpush.msra.mxu0 0.0
    %2093 = vmatpush.msra.mxu0 %v1990
    %2094 = vmatmul.f32.gmra.mxu0 %v2036
    %v2095 = vpop.f32.mrf.mxu0
    %v2096 = vadd.f32 0.0, %v2095
    %2097 = vdwg.mxu0
    %2098 = vmatpush.msra.mxu0 0.0
    %2099 = vmatpush.msra.mxu0 0.0
    %2100 = vmatpush.msra.mxu0 0.0
    %2101 = vmatpush.msra.mxu0 0.0
    %2102 = vmatpush.msra.mxu0 0.0
    %2103 = vmatpush.msra.mxu0 0.0
    %2104 = vmatpush.msra.mxu0 0.0
    %2105 = vmatpush.msra.mxu0 0.0
    %2106 = vmatpush.msra.mxu0 0.0
    %2107 = vmatpush.msra.mxu0 0.0
    %2108 = vmatpush.msra.mxu0 0.0
    %2109 = vmatpush.msra.mxu0 0.0
    %2110 = vmatpush.msra.mxu0 0.0
    %2111 = vmatpush.msra.mxu0 0.0
    %2112 = vmatpush.msra.mxu0 0.0
    %2113 = vmatpush.msra.mxu0 %v1991
    %2114 = vmatmul.f32.gmra.mxu0 %v2036
    %v2115 = vpop.f32.mrf.mxu0
    %v2116 = vadd.f32 0.0, %v2115
    %2117 = vdwg.mxu0
    %v2119 = vsel %vm64, %v2013, 0
    %2121 = vmatpush.msra.mxu0 0.0
    %2122 = vmatpush.msra.mxu0 0.0
    %2123 = vmatpush.msra.mxu0 0.0
    %2124 = vmatpush.msra.mxu0 0.0
    %2125 = vmatpush.msra.mxu0 0.0
    %2126 = vmatpush.msra.mxu0 0.0
    %2127 = vmatpush.msra.mxu0 0.0
    %2128 = vmatpush.msra.mxu0 0.0
    %2129 = vmatpush.msra.mxu0 0.0
    %2130 = vmatpush.msra.mxu0 0.0
    %2131 = vmatpush.msra.mxu0 0.0
    %2132 = vmatpush.msra.mxu0 0.0
    %2133 = vmatpush.msra.mxu0 0.0
    %2134 = vmatpush.msra.mxu0 0.0
    %2135 = vmatpush.msra.mxu0 0.0
    %2136 = vmatpush.msra.mxu0 %v1984
    %2137 = vmatmul.f32.gmra.mxu0 %v2119
    %v2138 = vpop.f32.mrf.mxu0
    %v2139 = vadd.f32 %v2056, %v2138
    %2140 = vdwg.mxu0
    %2141 = vmatpush.msra.mxu0 0.0
    %2142 = vmatpush.msra.mxu0 0.0
    %2143 = vmatpush.msra.mxu0 0.0
    %2144 = vmatpush.msra.mxu0 0.0
    %2145 = vmatpush.msra.mxu0 0.0
    %2146 = vmatpush.msra.mxu0 0.0
    %2147 = vmatpush.msra.mxu0 0.0
    %2148 = vmatpush.msra.mxu0 0.0
    %2149 = vmatpush.msra.mxu0 0.0
    %2150 = vmatpush.msra.mxu0 0.0
    %2151 = vmatpush.msra.mxu0 0.0
    %2152 = vmatpush.msra.mxu0 0.0
    %2153 = vmatpush.msra.mxu0 0.0
    %2154 = vmatpush.msra.mxu0 0.0
    %2155 = vmatpush.msra.mxu0 0.0
    %2156 = vmatpush.msra.mxu0 %v1985
    %2157 = vmatmul.f32.gmra.mxu0 %v2119
    %v2158 = vpop.f32.mrf.mxu0
    %v2159 = vadd.f32 %v2076, %v2158
    %2160 = vdwg.mxu0
    %2161 = vmatpush.msra.mxu0 0.0
    %2162 = vmatpush.msra.mxu0 0.0
    %2163 = vmatpush.msra.mxu0 0.0
    %2164 = vmatpush.msra.mxu0 0.0
    %2165 = vmatpush.msra.mxu0 0.0
    %2166 = vmatpush.msra.mxu0 0.0
    %2167 = vmatpush.msra.mxu0 0.0
    %2168 = vmatpush.msra.mxu0 0.0
    %2169 = vmatpush.msra.mxu0 0.0
    %2170 = vmatpush.msra.mxu0 0.0
    %2171 = vmatpush.msra.mxu0 0.0
    %2172 = vmatpush.msra.mxu0 0.0
    %2173 = vmatpush.msra.mxu0 0.0
    %2174 = vmatpush.msra.mxu0 0.0
    %2175 = vmatpush.msra.mxu0 0.0
    %2176 = vmatpush.msra.mxu0 %v1986
    %2177 = vmatmul.f32.gmra.mxu0 %v2119
    %v2178 = vpop.f32.mrf.mxu0
    %v2179 = vadd.f32 %v2096, %v2178
    %2180 = vdwg.mxu0
    %2181 = vmatpush.msra.mxu0 0.0
    %2182 = vmatpush.msra.mxu0 0.0
    %2183 = vmatpush.msra.mxu0 0.0
    %2184 = vmatpush.msra.mxu0 0.0
    %2185 = vmatpush.msra.mxu0 0.0
    %2186 = vmatpush.msra.mxu0 0.0
    %2187 = vmatpush.msra.mxu0 0.0
    %2188 = vmatpush.msra.mxu0 0.0
    %2189 = vmatpush.msra.mxu0 0.0
    %2190 = vmatpush.msra.mxu0 0.0
    %2191 = vmatpush.msra.mxu0 0.0
    %2192 = vmatpush.msra.mxu0 0.0
    %2193 = vmatpush.msra.mxu0 0.0
    %2194 = vmatpush.msra.mxu0 0.0
    %2195 = vmatpush.msra.mxu0 0.0
    %2196 = vmatpush.msra.mxu0 %v1987
    %2197 = vmatmul.f32.gmra.mxu0 %v2119
    %v2198 = vpop.f32.mrf.mxu0
    %v2199 = vadd.f32 %v2116, %v2198
    %2200 = vdwg.mxu0
    %v2201 = vadd.s32 %v1980, 1
    %vm2202 = vcmp.eq.s32.totalorder %v1979, %v2201
    %v2203 = vsel %vm2202, 1, 0
    %v2204 = vcvt.s32.f32 %v2203
    %s2205 = scalar_lea.vmem %s3, 64
    %v2206 = vld [vmem:[%s2205] sm:$0xff]
    %v2207 = vld [vmem:[%s2205 + $0x8] sm:$0xff]
    %v2208 = vld [vmem:[%s2205 + $0x10] sm:$0xff]
    %v2209 = vld [vmem:[%s2205 + $0x18] sm:$0xff]
    %v2210 = vld [vmem:[%s2205 + $0x20] sm:$0xff]
    %v2211 = vld [vmem:[%s2205 + $0x28] sm:$0xff]
    %v2212 = vld [vmem:[%s2205 + $0x30] sm:$0xff]
    %v2213 = vld [vmem:[%s2205 + $0x38] sm:$0xff]
    %v2215 = vsel %vm64, %v2204, 0
    %2217 = vmatpush.msra.mxu0 0.0
    %2218 = vmatpush.msra.mxu0 0.0
    %2219 = vmatpush.msra.mxu0 0.0
    %2220 = vmatpush.msra.mxu0 0.0
    %2221 = vmatpush.msra.mxu0 0.0
    %2222 = vmatpush.msra.mxu0 0.0
    %2223 = vmatpush.msra.mxu0 0.0
    %2224 = vmatpush.msra.mxu0 0.0
    %2225 = vmatpush.msra.mxu0 0.0
    %2226 = vmatpush.msra.mxu0 0.0
    %2227 = vmatpush.msra.mxu0 0.0
    %2228 = vmatpush.msra.mxu0 0.0
    %2229 = vmatpush.msra.mxu0 0.0
    %2230 = vmatpush.msra.mxu0 0.0
    %2231 = vmatpush.msra.mxu0 0.0
    %2232 = vmatpush.msra.mxu0 %v1974
    %2233 = vmatmul.f32.gmra.mxu0 %v2215
    %v2234 = vpop.f32.mrf.mxu0
    %v2235 = vadd.f32 0.0, %v2234
    %2236 = vdwg.mxu0
    %v2238 = vsel %vm64, %v2235, 0
    %2240 = vmatpush.msra.mxu0 0.0
    %2241 = vmatpush.msra.mxu0 0.0
    %2242 = vmatpush.msra.mxu0 0.0
    %2243 = vmatpush.msra.mxu0 0.0
    %2244 = vmatpush.msra.mxu0 0.0
    %2245 = vmatpush.msra.mxu0 0.0
    %2246 = vmatpush.msra.mxu0 0.0
    %2247 = vmatpush.msra.mxu0 0.0
    %2248 = vmatpush.msra.mxu0 0.0
    %2249 = vmatpush.msra.mxu0 0.0
    %2250 = vmatpush.msra.mxu0 0.0
    %2251 = vmatpush.msra.mxu0 0.0
    %2252 = vmatpush.msra.mxu0 0.0
    %2253 = vmatpush.msra.mxu0 0.0
    %2254 = vmatpush.msra.mxu0 0.0
    %2255 = vmatpush.msra.mxu0 %v2206
    %2256 = vmatmul.f32.gmra.mxu0 %v2238
    %v2257 = vpop.f32.mrf.mxu0
    %v2258 = vadd.f32 0.0, %v2257
    %2259 = vdwg.mxu0
    %2260 = vmatpush.msra.mxu0 0.0
    %2261 = vmatpush.msra.mxu0 0.0
    %2262 = vmatpush.msra.mxu0 0.0
    %2263 = vmatpush.msra.mxu0 0.0
    %2264 = vmatpush.msra.mxu0 0.0
    %2265 = vmatpush.msra.mxu0 0.0
    %2266 = vmatpush.msra.mxu0 0.0
    %2267 = vmatpush.msra.mxu0 0.0
    %2268 = vmatpush.msra.mxu0 0.0
    %2269 = vmatpush.msra.mxu0 0.0
    %2270 = vmatpush.msra.mxu0 0.0
    %2271 = vmatpush.msra.mxu0 0.0
    %2272 = vmatpush.msra.mxu0 0.0
    %2273 = vmatpush.msra.mxu0 0.0
    %2274 = vmatpush.msra.mxu0 0.0
    %2275 = vmatpush.msra.mxu0 %v2207
    %2276 = vmatmul.f32.gmra.mxu0 %v2238
    %v2277 = vpop.f32.mrf.mxu0
    %v2278 = vadd.f32 0.0, %v2277
    %2279 = vdwg.mxu0
    %2280 = vmatpush.msra.mxu0 0.0
    %2281 = vmatpush.msra.mxu0 0.0
    %2282 = vmatpush.msra.mxu0 0.0
    %2283 = vmatpush.msra.mxu0 0.0
    %2284 = vmatpush.msra.mxu0 0.0
    %2285 = vmatpush.msra.mxu0 0.0
    %2286 = vmatpush.msra.mxu0 0.0
    %2287 = vmatpush.msra.mxu0 0.0
    %2288 = vmatpush.msra.mxu0 0.0
    %2289 = vmatpush.msra.mxu0 0.0
    %2290 = vmatpush.msra.mxu0 0.0
    %2291 = vmatpush.msra.mxu0 0.0
    %2292 = vmatpush.msra.mxu0 0.0
    %2293 = vmatpush.msra.mxu0 0.0
    %2294 = vmatpush.msra.mxu0 0.0
    %2295 = vmatpush.msra.mxu0 %v2208
    %2296 = vmatmul.f32.gmra.mxu0 %v2238
    %v2297 = vpop.f32.mrf.mxu0
    %v2298 = vadd.f32 0.0, %v2297
    %2299 = vdwg.mxu0
    %2300 = vmatpush.msra.mxu0 0.0
    %2301 = vmatpush.msra.mxu0 0.0
    %2302 = vmatpush.msra.mxu0 0.0
    %2303 = vmatpush.msra.mxu0 0.0
    %2304 = vmatpush.msra.mxu0 0.0
    %2305 = vmatpush.msra.mxu0 0.0
    %2306 = vmatpush.msra.mxu0 0.0
    %2307 = vmatpush.msra.mxu0 0.0
    %2308 = vmatpush.msra.mxu0 0.0
    %2309 = vmatpush.msra.mxu0 0.0
    %2310 = vmatpush.msra.mxu0 0.0
    %2311 = vmatpush.msra.mxu0 0.0
    %2312 = vmatpush.msra.mxu0 0.0
    %2313 = vmatpush.msra.mxu0 0.0
    %2314 = vmatpush.msra.mxu0 0.0
    %2315 = vmatpush.msra.mxu0 %v2209
    %2316 = vmatmul.f32.gmra.mxu0 %v2238
    %v2317 = vpop.f32.mrf.mxu0
    %v2318 = vadd.f32 0.0, %v2317
    %2319 = vdwg.mxu0
    %v2320 = vadd.f32 %v2139, %v2258
    %v2321 = vadd.f32 %v2159, %v2278
    %v2322 = vadd.f32 %v2179, %v2298
    %v2323 = vadd.f32 %v2199, %v2318
    %2324 = vmatpush.msra.mxu0 0.0
    %2325 = vmatpush.msra.mxu0 0.0
    %2326 = vmatpush.msra.mxu0 0.0
    %2327 = vmatpush.msra.mxu0 0.0
    %2328 = vmatpush.msra.mxu0 0.0
    %2329 = vmatpush.msra.mxu0 0.0
    %2330 = vmatpush.msra.mxu0 0.0
    %2331 = vmatpush.msra.mxu0 0.0
    %2332 = vmatpush.msra.mxu0 0.0
    %2333 = vmatpush.msra.mxu0 0.0
    %2334 = vmatpush.msra.mxu0 0.0
    %2335 = vmatpush.msra.mxu0 0.0
    %2336 = vmatpush.msra.mxu0 0.0
    %2337 = vmatpush.msra.mxu0 0.0
    %2338 = vmatpush.msra.mxu0 0.0
    %2339 = vmatpush.msra.mxu0 %v1975
    %2340 = vmatmul.f32.gmra.mxu0 %v2215
    %v2341 = vpop.f32.mrf.mxu0
    %v2342 = vadd.f32 0.0, %v2341
    %2343 = vdwg.mxu0
    %v2345 = vsel %vm64, %v2342, 0
    %2347 = vmatpush.msra.mxu0 0.0
    %2348 = vmatpush.msra.mxu0 0.0
    %2349 = vmatpush.msra.mxu0 0.0
    %2350 = vmatpush.msra.mxu0 0.0
    %2351 = vmatpush.msra.mxu0 0.0
    %2352 = vmatpush.msra.mxu0 0.0
    %2353 = vmatpush.msra.mxu0 0.0
    %2354 = vmatpush.msra.mxu0 0.0
    %2355 = vmatpush.msra.mxu0 0.0
    %2356 = vmatpush.msra.mxu0 0.0
    %2357 = vmatpush.msra.mxu0 0.0
    %2358 = vmatpush.msra.mxu0 0.0
    %2359 = vmatpush.msra.mxu0 0.0
    %2360 = vmatpush.msra.mxu0 0.0
    %2361 = vmatpush.msra.mxu0 0.0
    %2362 = vmatpush.msra.mxu0 %v2210
    %2363 = vmatmul.f32.gmra.mxu0 %v2345
    %v2364 = vpop.f32.mrf.mxu0
    %v2365 = vadd.f32 0.0, %v2364
    %2366 = vdwg.mxu0
    %2367 = vmatpush.msra.mxu0 0.0
    %2368 = vmatpush.msra.mxu0 0.0
    %2369 = vmatpush.msra.mxu0 0.0
    %2370 = vmatpush.msra.mxu0 0.0
    %2371 = vmatpush.msra.mxu0 0.0
    %2372 = vmatpush.msra.mxu0 0.0
    %2373 = vmatpush.msra.mxu0 0.0
    %2374 = vmatpush.msra.mxu0 0.0
    %2375 = vmatpush.msra.mxu0 0.0
    %2376 = vmatpush.msra.mxu0 0.0
    %2377 = vmatpush.msra.mxu0 0.0
    %2378 = vmatpush.msra.mxu0 0.0
    %2379 = vmatpush.msra.mxu0 0.0
    %2380 = vmatpush.msra.mxu0 0.0
    %2381 = vmatpush.msra.mxu0 0.0
    %2382 = vmatpush.msra.mxu0 %v2211
    %2383 = vmatmul.f32.gmra.mxu0 %v2345
    %v2384 = vpop.f32.mrf.mxu0
    %v2385 = vadd.f32 0.0, %v2384
    %2386 = vdwg.mxu0
    %2387 = vmatpush.msra.mxu0 0.0
    %2388 = vmatpush.msra.mxu0 0.0
    %2389 = vmatpush.msra.mxu0 0.0
    %2390 = vmatpush.msra.mxu0 0.0
    %2391 = vmatpush.msra.mxu0 0.0
    %2392 = vmatpush.msra.mxu0 0.0
    %2393 = vmatpush.msra.mxu0 0.0
    %2394 = vmatpush.msra.mxu0 0.0
    %2395 = vmatpush.msra.mxu0 0.0
    %2396 = vmatpush.msra.mxu0 0.0
    %2397 = vmatpush.msra.mxu0 0.0
    %2398 = vmatpush.msra.mxu0 0.0
    %2399 = vmatpush.msra.mxu0 0.0
    %2400 = vmatpush.msra.mxu0 0.0
    %2401 = vmatpush.msra.mxu0 0.0
    %2402 = vmatpush.msra.mxu0 %v2212
    %2403 = vmatmul.f32.gmra.mxu0 %v2345
    %v2404 = vpop.f32.mrf.mxu0
    %v2405 = vadd.f32 0.0, %v2404
    %2406 = vdwg.mxu0
    %2407 = vmatpush.msra.mxu0 0.0
    %2408 = vmatpush.msra.mxu0 0.0
    %2409 = vmatpush.msra.mxu0 0.0
    %2410 = vmatpush.msra.mxu0 0.0
    %2411 = vmatpush.msra.mxu0 0.0
    %2412 = vmatpush.msra.mxu0 0.0
    %2413 = vmatpush.msra.mxu0 0.0
    %2414 = vmatpush.msra.mxu0 0.0
    %2415 = vmatpush.msra.mxu0 0.0
    %2416 = vmatpush.msra.mxu0 0.0
    %2417 = vmatpush.msra.mxu0 0.0
    %2418 = vmatpush.msra.mxu0 0.0
    %2419 = vmatpush.msra.mxu0 0.0
    %2420 = vmatpush.msra.mxu0 0.0
    %2421 = vmatpush.msra.mxu0 0.0
    %2422 = vmatpush.msra.mxu0 %v2213
    %2423 = vmatmul.f32.gmra.mxu0 %v2345
    %v2424 = vpop.f32.mrf.mxu0
    %v2425 = vadd.f32 0.0, %v2424
    %2426 = vdwg.mxu0
    %v2427 = vadd.f32 %v2320, %v2365
    %v2428 = vadd.f32 %v2321, %v2385
    %v2429 = vadd.f32 %v2322, %v2405
    %v2430 = vadd.f32 %v2323, %v2425
    %v2431 = vadd.s32 %v1980, 2
    %vm2432 = vcmp.eq.s32.totalorder %v1979, %v2431
    %v2433 = vsel %vm2432, 1, 0
    %v2434 = vcvt.s32.f32 %v2433
    %s2435 = scalar_lea.vmem %s3, 128
    %v2436 = vld [vmem:[%s2435] sm:$0xff]
    %v2437 = vld [vmem:[%s2435 + $0x8] sm:$0xff]
    %v2438 = vld [vmem:[%s2435 + $0x10] sm:$0xff]
    %v2439 = vld [vmem:[%s2435 + $0x18] sm:$0xff]
    %v2440 = vld [vmem:[%s2435 + $0x20] sm:$0xff]
    %v2441 = vld [vmem:[%s2435 + $0x28] sm:$0xff]
    %v2442 = vld [vmem:[%s2435 + $0x30] sm:$0xff]
    %v2443 = vld [vmem:[%s2435 + $0x38] sm:$0xff]
    %v2445 = vsel %vm64, %v2434, 0
    %2447 = vmatpush.msra.mxu0 0.0
    %2448 = vmatpush.msra.mxu0 0.0
    %2449 = vmatpush.msra.mxu0 0.0
    %2450 = vmatpush.msra.mxu0 0.0
    %2451 = vmatpush.msra.mxu0 0.0
    %2452 = vmatpush.msra.mxu0 0.0
    %2453 = vmatpush.msra.mxu0 0.0
    %2454 = vmatpush.msra.mxu0 0.0
    %2455 = vmatpush.msra.mxu0 0.0
    %2456 = vmatpush.msra.mxu0 0.0
    %2457 = vmatpush.msra.mxu0 0.0
    %2458 = vmatpush.msra.mxu0 0.0
    %2459 = vmatpush.msra.mxu0 0.0
    %2460 = vmatpush.msra.mxu0 0.0
    %2461 = vmatpush.msra.mxu0 0.0
    %2462 = vmatpush.msra.mxu0 %v1974
    %2463 = vmatmul.f32.gmra.mxu0 %v2445
    %v2464 = vpop.f32.mrf.mxu0
    %v2465 = vadd.f32 0.0, %v2464
    %2466 = vdwg.mxu0
    %v2468 = vsel %vm64, %v2465, 0
    %2470 = vmatpush.msra.mxu0 0.0
    %2471 = vmatpush.msra.mxu0 0.0
    %2472 = vmatpush.msra.mxu0 0.0
    %2473 = vmatpush.msra.mxu0 0.0
    %2474 = vmatpush.msra.mxu0 0.0
    %2475 = vmatpush.msra.mxu0 0.0
    %2476 = vmatpush.msra.mxu0 0.0
    %2477 = vmatpush.msra.mxu0 0.0
    %2478 = vmatpush.msra.mxu0 0.0
    %2479 = vmatpush.msra.mxu0 0.0
    %2480 = vmatpush.msra.mxu0 0.0
    %2481 = vmatpush.msra.mxu0 0.0
    %2482 = vmatpush.msra.mxu0 0.0
    %2483 = vmatpush.msra.mxu0 0.0
    %2484 = vmatpush.msra.mxu0 0.0
    %2485 = vmatpush.msra.mxu0 %v2436
    %2486 = vmatmul.f32.gmra.mxu0 %v2468
    %v2487 = vpop.f32.mrf.mxu0
    %v2488 = vadd.f32 0.0, %v2487
    %2489 = vdwg.mxu0
    %2490 = vmatpush.msra.mxu0 0.0
    %2491 = vmatpush.msra.mxu0 0.0
    %2492 = vmatpush.msra.mxu0 0.0
    %2493 = vmatpush.msra.mxu0 0.0
    %2494 = vmatpush.msra.mxu0 0.0
    %2495 = vmatpush.msra.mxu0 0.0
    %2496 = vmatpush.msra.mxu0 0.0
    %2497 = vmatpush.msra.mxu0 0.0
    %2498 = vmatpush.msra.mxu0 0.0
    %2499 = vmatpush.msra.mxu0 0.0
    %2500 = vmatpush.msra.mxu0 0.0
    %2501 = vmatpush.msra.mxu0 0.0
    %2502 = vmatpush.msra.mxu0 0.0
    %2503 = vmatpush.msra.mxu0 0.0
    %2504 = vmatpush.msra.mxu0 0.0
    %2505 = vmatpush.msra.mxu0 %v2437
    %2506 = vmatmul.f32.gmra.mxu0 %v2468
    %v2507 = vpop.f32.mrf.mxu0
    %v2508 = vadd.f32 0.0, %v2507
    %2509 = vdwg.mxu0
    %2510 = vmatpush.msra.mxu0 0.0
    %2511 = vmatpush.msra.mxu0 0.0
    %2512 = vmatpush.msra.mxu0 0.0
    %2513 = vmatpush.msra.mxu0 0.0
    %2514 = vmatpush.msra.mxu0 0.0
    %2515 = vmatpush.msra.mxu0 0.0
    %2516 = vmatpush.msra.mxu0 0.0
    %2517 = vmatpush.msra.mxu0 0.0
    %2518 = vmatpush.msra.mxu0 0.0
    %2519 = vmatpush.msra.mxu0 0.0
    %2520 = vmatpush.msra.mxu0 0.0
    %2521 = vmatpush.msra.mxu0 0.0
    %2522 = vmatpush.msra.mxu0 0.0
    %2523 = vmatpush.msra.mxu0 0.0
    %2524 = vmatpush.msra.mxu0 0.0
    %2525 = vmatpush.msra.mxu0 %v2438
    %2526 = vmatmul.f32.gmra.mxu0 %v2468
    %v2527 = vpop.f32.mrf.mxu0
    %v2528 = vadd.f32 0.0, %v2527
    %2529 = vdwg.mxu0
    %2530 = vmatpush.msra.mxu0 0.0
    %2531 = vmatpush.msra.mxu0 0.0
    %2532 = vmatpush.msra.mxu0 0.0
    %2533 = vmatpush.msra.mxu0 0.0
    %2534 = vmatpush.msra.mxu0 0.0
    %2535 = vmatpush.msra.mxu0 0.0
    %2536 = vmatpush.msra.mxu0 0.0
    %2537 = vmatpush.msra.mxu0 0.0
    %2538 = vmatpush.msra.mxu0 0.0
    %2539 = vmatpush.msra.mxu0 0.0
    %2540 = vmatpush.msra.mxu0 0.0
    %2541 = vmatpush.msra.mxu0 0.0
    %2542 = vmatpush.msra.mxu0 0.0
    %2543 = vmatpush.msra.mxu0 0.0
    %2544 = vmatpush.msra.mxu0 0.0
    %2545 = vmatpush.msra.mxu0 %v2439
    %2546 = vmatmul.f32.gmra.mxu0 %v2468
    %v2547 = vpop.f32.mrf.mxu0
    %v2548 = vadd.f32 0.0, %v2547
    %2549 = vdwg.mxu0
    %v2550 = vadd.f32 %v2427, %v2488
    %v2551 = vadd.f32 %v2428, %v2508
    %v2552 = vadd.f32 %v2429, %v2528
    %v2553 = vadd.f32 %v2430, %v2548
    %2554 = vmatpush.msra.mxu0 0.0
    %2555 = vmatpush.msra.mxu0 0.0
    %2556 = vmatpush.msra.mxu0 0.0
    %2557 = vmatpush.msra.mxu0 0.0
    %2558 = vmatpush.msra.mxu0 0.0
    %2559 = vmatpush.msra.mxu0 0.0
    %2560 = vmatpush.msra.mxu0 0.0
    %2561 = vmatpush.msra.mxu0 0.0
    %2562 = vmatpush.msra.mxu0 0.0
    %2563 = vmatpush.msra.mxu0 0.0
    %2564 = vmatpush.msra.mxu0 0.0
    %2565 = vmatpush.msra.mxu0 0.0
    %2566 = vmatpush.msra.mxu0 0.0
    %2567 = vmatpush.msra.mxu0 0.0
    %2568 = vmatpush.msra.mxu0 0.0
    %2569 = vmatpush.msra.mxu0 %v1975
    %2570 = vmatmul.f32.gmra.mxu0 %v2445
    %v2571 = vpop.f32.mrf.mxu0
    %v2572 = vadd.f32 0.0, %v2571
    %2573 = vdwg.mxu0
    %v2575 = vsel %vm64, %v2572, 0
    %2577 = vmatpush.msra.mxu0 0.0
    %2578 = vmatpush.msra.mxu0 0.0
    %2579 = vmatpush.msra.mxu0 0.0
    %2580 = vmatpush.msra.mxu0 0.0
    %2581 = vmatpush.msra.mxu0 0.0
    %2582 = vmatpush.msra.mxu0 0.0
    %2583 = vmatpush.msra.mxu0 0.0
    %2584 = vmatpush.msra.mxu0 0.0
    %2585 = vmatpush.msra.mxu0 0.0
    %2586 = vmatpush.msra.mxu0 0.0
    %2587 = vmatpush.msra.mxu0 0.0
    %2588 = vmatpush.msra.mxu0 0.0
    %2589 = vmatpush.msra.mxu0 0.0
    %2590 = vmatpush.msra.mxu0 0.0
    %2591 = vmatpush.msra.mxu0 0.0
    %2592 = vmatpush.msra.mxu0 %v2440
    %2593 = vmatmul.f32.gmra.mxu0 %v2575
    %v2594 = vpop.f32.mrf.mxu0
    %v2595 = vadd.f32 0.0, %v2594
    %2596 = vdwg.mxu0
    %2597 = vmatpush.msra.mxu0 0.0
    %2598 = vmatpush.msra.mxu0 0.0
    %2599 = vmatpush.msra.mxu0 0.0
    %2600 = vmatpush.msra.mxu0 0.0
    %2601 = vmatpush.msra.mxu0 0.0
    %2602 = vmatpush.msra.mxu0 0.0
    %2603 = vmatpush.msra.mxu0 0.0
    %2604 = vmatpush.msra.mxu0 0.0
    %2605 = vmatpush.msra.mxu0 0.0
    %2606 = vmatpush.msra.mxu0 0.0
    %2607 = vmatpush.msra.mxu0 0.0
    %2608 = vmatpush.msra.mxu0 0.0
    %2609 = vmatpush.msra.mxu0 0.0
    %2610 = vmatpush.msra.mxu0 0.0
    %2611 = vmatpush.msra.mxu0 0.0
    %2612 = vmatpush.msra.mxu0 %v2441
    %2613 = vmatmul.f32.gmra.mxu0 %v2575
    %v2614 = vpop.f32.mrf.mxu0
    %v2615 = vadd.f32 0.0, %v2614
    %2616 = vdwg.mxu0
    %2617 = vmatpush.msra.mxu0 0.0
    %2618 = vmatpush.msra.mxu0 0.0
    %2619 = vmatpush.msra.mxu0 0.0
    %2620 = vmatpush.msra.mxu0 0.0
    %2621 = vmatpush.msra.mxu0 0.0
    %2622 = vmatpush.msra.mxu0 0.0
    %2623 = vmatpush.msra.mxu0 0.0
    %2624 = vmatpush.msra.mxu0 0.0
    %2625 = vmatpush.msra.mxu0 0.0
    %2626 = vmatpush.msra.mxu0 0.0
    %2627 = vmatpush.msra.mxu0 0.0
    %2628 = vmatpush.msra.mxu0 0.0
    %2629 = vmatpush.msra.mxu0 0.0
    %2630 = vmatpush.msra.mxu0 0.0
    %2631 = vmatpush.msra.mxu0 0.0
    %2632 = vmatpush.msra.mxu0 %v2442
    %2633 = vmatmul.f32.gmra.mxu0 %v2575
    %v2634 = vpop.f32.mrf.mxu0
    %v2635 = vadd.f32 0.0, %v2634
    %2636 = vdwg.mxu0
    %2637 = vmatpush.msra.mxu0 0.0
    %2638 = vmatpush.msra.mxu0 0.0
    %2639 = vmatpush.msra.mxu0 0.0
    %2640 = vmatpush.msra.mxu0 0.0
    %2641 = vmatpush.msra.mxu0 0.0
    %2642 = vmatpush.msra.mxu0 0.0
    %2643 = vmatpush.msra.mxu0 0.0
    %2644 = vmatpush.msra.mxu0 0.0
    %2645 = vmatpush.msra.mxu0 0.0
    %2646 = vmatpush.msra.mxu0 0.0
    %2647 = vmatpush.msra.mxu0 0.0
    %2648 = vmatpush.msra.mxu0 0.0
    %2649 = vmatpush.msra.mxu0 0.0
    %2650 = vmatpush.msra.mxu0 0.0
    %2651 = vmatpush.msra.mxu0 0.0
    %2652 = vmatpush.msra.mxu0 %v2443
    %2653 = vmatmul.f32.gmra.mxu0 %v2575
    %v2654 = vpop.f32.mrf.mxu0
    %v2655 = vadd.f32 0.0, %v2654
    %2656 = vdwg.mxu0
    %v2657 = vadd.f32 %v2550, %v2595
    %v2658 = vadd.f32 %v2551, %v2615
    %v2659 = vadd.f32 %v2552, %v2635
    %v2660 = vadd.f32 %v2553, %v2655
    %v2661 = vadd.s32 %v1980, 3
    %vm2662 = vcmp.eq.s32.totalorder %v1979, %v2661
    %v2663 = vsel %vm2662, 1, 0
    %v2664 = vcvt.s32.f32 %v2663
    %s2665 = scalar_lea.vmem %s3, 192
    %v2666 = vld [vmem:[%s2665] sm:$0xff]
    %v2667 = vld [vmem:[%s2665 + $0x8] sm:$0xff]
    %v2668 = vld [vmem:[%s2665 + $0x10] sm:$0xff]
    %v2669 = vld [vmem:[%s2665 + $0x18] sm:$0xff]
    %v2670 = vld [vmem:[%s2665 + $0x20] sm:$0xff]
    %v2671 = vld [vmem:[%s2665 + $0x28] sm:$0xff]
    %v2672 = vld [vmem:[%s2665 + $0x30] sm:$0xff]
    %v2673 = vld [vmem:[%s2665 + $0x38] sm:$0xff]
    %v2675 = vsel %vm64, %v2664, 0
    %2677 = vmatpush.msra.mxu0 0.0
    %2678 = vmatpush.msra.mxu0 0.0
    %2679 = vmatpush.msra.mxu0 0.0
    %2680 = vmatpush.msra.mxu0 0.0
    %2681 = vmatpush.msra.mxu0 0.0
    %2682 = vmatpush.msra.mxu0 0.0
    %2683 = vmatpush.msra.mxu0 0.0
    %2684 = vmatpush.msra.mxu0 0.0
    %2685 = vmatpush.msra.mxu0 0.0
    %2686 = vmatpush.msra.mxu0 0.0
    %2687 = vmatpush.msra.mxu0 0.0
    %2688 = vmatpush.msra.mxu0 0.0
    %2689 = vmatpush.msra.mxu0 0.0
    %2690 = vmatpush.msra.mxu0 0.0
    %2691 = vmatpush.msra.mxu0 0.0
    %2692 = vmatpush.msra.mxu0 %v1974
    %2693 = vmatmul.f32.gmra.mxu0 %v2675
    %v2694 = vpop.f32.mrf.mxu0
    %v2695 = vadd.f32 0.0, %v2694
    %2696 = vdwg.mxu0
    %v2698 = vsel %vm64, %v2695, 0
    %2700 = vmatpush.msra.mxu0 0.0
    %2701 = vmatpush.msra.mxu0 0.0
    %2702 = vmatpush.msra.mxu0 0.0
    %2703 = vmatpush.msra.mxu0 0.0
    %2704 = vmatpush.msra.mxu0 0.0
    %2705 = vmatpush.msra.mxu0 0.0
    %2706 = vmatpush.msra.mxu0 0.0
    %2707 = vmatpush.msra.mxu0 0.0
    %2708 = vmatpush.msra.mxu0 0.0
    %2709 = vmatpush.msra.mxu0 0.0
    %2710 = vmatpush.msra.mxu0 0.0
    %2711 = vmatpush.msra.mxu0 0.0
    %2712 = vmatpush.msra.mxu0 0.0
    %2713 = vmatpush.msra.mxu0 0.0
    %2714 = vmatpush.msra.mxu0 0.0
    %2715 = vmatpush.msra.mxu0 %v2666
    %2716 = vmatmul.f32.gmra.mxu0 %v2698
    %v2717 = vpop.f32.mrf.mxu0
    %v2718 = vadd.f32 0.0, %v2717
    %2719 = vdwg.mxu0
    %2720 = vmatpush.msra.mxu0 0.0
    %2721 = vmatpush.msra.mxu0 0.0
    %2722 = vmatpush.msra.mxu0 0.0
    %2723 = vmatpush.msra.mxu0 0.0
    %2724 = vmatpush.msra.mxu0 0.0
    %2725 = vmatpush.msra.mxu0 0.0
    %2726 = vmatpush.msra.mxu0 0.0
    %2727 = vmatpush.msra.mxu0 0.0
    %2728 = vmatpush.msra.mxu0 0.0
    %2729 = vmatpush.msra.mxu0 0.0
    %2730 = vmatpush.msra.mxu0 0.0
    %2731 = vmatpush.msra.mxu0 0.0
    %2732 = vmatpush.msra.mxu0 0.0
    %2733 = vmatpush.msra.mxu0 0.0
    %2734 = vmatpush.msra.mxu0 0.0
    %2735 = vmatpush.msra.mxu0 %v2667
    %2736 = vmatmul.f32.gmra.mxu0 %v2698
    %v2737 = vpop.f32.mrf.mxu0
    %v2738 = vadd.f32 0.0, %v2737
    %2739 = vdwg.mxu0
    %2740 = vmatpush.msra.mxu0 0.0
    %2741 = vmatpush.msra.mxu0 0.0
    %2742 = vmatpush.msra.mxu0 0.0
    %2743 = vmatpush.msra.mxu0 0.0
    %2744 = vmatpush.msra.mxu0 0.0
    %2745 = vmatpush.msra.mxu0 0.0
    %2746 = vmatpush.msra.mxu0 0.0
    %2747 = vmatpush.msra.mxu0 0.0
    %2748 = vmatpush.msra.mxu0 0.0
    %2749 = vmatpush.msra.mxu0 0.0
    %2750 = vmatpush.msra.mxu0 0.0
    %2751 = vmatpush.msra.mxu0 0.0
    %2752 = vmatpush.msra.mxu0 0.0
    %2753 = vmatpush.msra.mxu0 0.0
    %2754 = vmatpush.msra.mxu0 0.0
    %2755 = vmatpush.msra.mxu0 %v2668
    %2756 = vmatmul.f32.gmra.mxu0 %v2698
    %v2757 = vpop.f32.mrf.mxu0
    %v2758 = vadd.f32 0.0, %v2757
    %2759 = vdwg.mxu0
    %2760 = vmatpush.msra.mxu0 0.0
    %2761 = vmatpush.msra.mxu0 0.0
    %2762 = vmatpush.msra.mxu0 0.0
    %2763 = vmatpush.msra.mxu0 0.0
    %2764 = vmatpush.msra.mxu0 0.0
    %2765 = vmatpush.msra.mxu0 0.0
    %2766 = vmatpush.msra.mxu0 0.0
    %2767 = vmatpush.msra.mxu0 0.0
    %2768 = vmatpush.msra.mxu0 0.0
    %2769 = vmatpush.msra.mxu0 0.0
    %2770 = vmatpush.msra.mxu0 0.0
    %2771 = vmatpush.msra.mxu0 0.0
    %2772 = vmatpush.msra.mxu0 0.0
    %2773 = vmatpush.msra.mxu0 0.0
    %2774 = vmatpush.msra.mxu0 0.0
    %2775 = vmatpush.msra.mxu0 %v2669
    %2776 = vmatmul.f32.gmra.mxu0 %v2698
    %v2777 = vpop.f32.mrf.mxu0
    %v2778 = vadd.f32 0.0, %v2777
    %2779 = vdwg.mxu0
    %v2780 = vadd.f32 %v2657, %v2718
    %v2781 = vadd.f32 %v2658, %v2738
    %v2782 = vadd.f32 %v2659, %v2758
    %v2783 = vadd.f32 %v2660, %v2778
    %2784 = vmatpush.msra.mxu0 0.0
    %2785 = vmatpush.msra.mxu0 0.0
    %2786 = vmatpush.msra.mxu0 0.0
    %2787 = vmatpush.msra.mxu0 0.0
    %2788 = vmatpush.msra.mxu0 0.0
    %2789 = vmatpush.msra.mxu0 0.0
    %2790 = vmatpush.msra.mxu0 0.0
    %2791 = vmatpush.msra.mxu0 0.0
    %2792 = vmatpush.msra.mxu0 0.0
    %2793 = vmatpush.msra.mxu0 0.0
    %2794 = vmatpush.msra.mxu0 0.0
    %2795 = vmatpush.msra.mxu0 0.0
    %2796 = vmatpush.msra.mxu0 0.0
    %2797 = vmatpush.msra.mxu0 0.0
    %2798 = vmatpush.msra.mxu0 0.0
    %2799 = vmatpush.msra.mxu0 %v1975
    %2800 = vmatmul.f32.gmra.mxu0 %v2675
    %v2801 = vpop.f32.mrf.mxu0
    %v2802 = vadd.f32 0.0, %v2801
    %2803 = vdwg.mxu0
    %v2805 = vsel %vm64, %v2802, 0
    %2807 = vmatpush.msra.mxu0 0.0
    %2808 = vmatpush.msra.mxu0 0.0
    %2809 = vmatpush.msra.mxu0 0.0
    %2810 = vmatpush.msra.mxu0 0.0
    %2811 = vmatpush.msra.mxu0 0.0
    %2812 = vmatpush.msra.mxu0 0.0
    %2813 = vmatpush.msra.mxu0 0.0
    %2814 = vmatpush.msra.mxu0 0.0
    %2815 = vmatpush.msra.mxu0 0.0
    %2816 = vmatpush.msra.mxu0 0.0
    %2817 = vmatpush.msra.mxu0 0.0
    %2818 = vmatpush.msra.mxu0 0.0
    %2819 = vmatpush.msra.mxu0 0.0
    %2820 = vmatpush.msra.mxu0 0.0
    %2821 = vmatpush.msra.mxu0 0.0
    %2822 = vmatpush.msra.mxu0 %v2670
    %2823 = vmatmul.f32.gmra.mxu0 %v2805
    %v2824 = vpop.f32.mrf.mxu0
    %v2825 = vadd.f32 0.0, %v2824
    %2826 = vdwg.mxu0
    %2827 = vmatpush.msra.mxu0 0.0
    %2828 = vmatpush.msra.mxu0 0.0
    %2829 = vmatpush.msra.mxu0 0.0
    %2830 = vmatpush.msra.mxu0 0.0
    %2831 = vmatpush.msra.mxu0 0.0
    %2832 = vmatpush.msra.mxu0 0.0
    %2833 = vmatpush.msra.mxu0 0.0
    %2834 = vmatpush.msra.mxu0 0.0
    %2835 = vmatpush.msra.mxu0 0.0
    %2836 = vmatpush.msra.mxu0 0.0
    %2837 = vmatpush.msra.mxu0 0.0
    %2838 = vmatpush.msra.mxu0 0.0
    %2839 = vmatpush.msra.mxu0 0.0
    %2840 = vmatpush.msra.mxu0 0.0
    %2841 = vmatpush.msra.mxu0 0.0
    %2842 = vmatpush.msra.mxu0 %v2671
    %2843 = vmatmul.f32.gmra.mxu0 %v2805
    %v2844 = vpop.f32.mrf.mxu0
    %v2845 = vadd.f32 0.0, %v2844
    %2846 = vdwg.mxu0
    %2847 = vmatpush.msra.mxu0 0.0
    %2848 = vmatpush.msra.mxu0 0.0
    %2849 = vmatpush.msra.mxu0 0.0
    %2850 = vmatpush.msra.mxu0 0.0
    %2851 = vmatpush.msra.mxu0 0.0
    %2852 = vmatpush.msra.mxu0 0.0
    %2853 = vmatpush.msra.mxu0 0.0
    %2854 = vmatpush.msra.mxu0 0.0
    %2855 = vmatpush.msra.mxu0 0.0
    %2856 = vmatpush.msra.mxu0 0.0
    %2857 = vmatpush.msra.mxu0 0.0
    %2858 = vmatpush.msra.mxu0 0.0
    %2859 = vmatpush.msra.mxu0 0.0
    %2860 = vmatpush.msra.mxu0 0.0
    %2861 = vmatpush.msra.mxu0 0.0
    %2862 = vmatpush.msra.mxu0 %v2672
    %2863 = vmatmul.f32.gmra.mxu0 %v2805
    %v2864 = vpop.f32.mrf.mxu0
    %v2865 = vadd.f32 0.0, %v2864
    %2866 = vdwg.mxu0
    %2867 = vmatpush.msra.mxu0 0.0
    %2868 = vmatpush.msra.mxu0 0.0
    %2869 = vmatpush.msra.mxu0 0.0
    %2870 = vmatpush.msra.mxu0 0.0
    %2871 = vmatpush.msra.mxu0 0.0
    %2872 = vmatpush.msra.mxu0 0.0
    %2873 = vmatpush.msra.mxu0 0.0
    %2874 = vmatpush.msra.mxu0 0.0
    %2875 = vmatpush.msra.mxu0 0.0
    %2876 = vmatpush.msra.mxu0 0.0
    %2877 = vmatpush.msra.mxu0 0.0
    %2878 = vmatpush.msra.mxu0 0.0
    %2879 = vmatpush.msra.mxu0 0.0
    %2880 = vmatpush.msra.mxu0 0.0
    %2881 = vmatpush.msra.mxu0 0.0
    %2882 = vmatpush.msra.mxu0 %v2673
    %2883 = vmatmul.f32.gmra.mxu0 %v2805
    %v2884 = vpop.f32.mrf.mxu0
    %v2885 = vadd.f32 0.0, %v2884
    %2886 = vdwg.mxu0
    %v2887 = vadd.f32 %v2780, %v2825
    %v2888 = vadd.f32 %v2781, %v2845
    %v2889 = vadd.f32 %v2782, %v2865
    %v2890 = vadd.f32 %v2783, %v2885
    %v2891 = vld [vmem:[%s4] sm:$0xf]
    %v2893 = vperm.slane %v2891, 0
    %v2894 = vperm.slane %v2891, 1
    %v2895 = vperm.slane %v2891, 2
    %v2896 = vperm.slane %v2891, 3
    %v2901 = vadd.f32 %v2887, %v2893
    %v2902 = vadd.f32 %v2888, %v2894
    %v2903 = vadd.f32 %v2889, %v2895
    %v2904 = vadd.f32 %v2890, %v2896
    %v2905 = vmax.f32 %v2901, 0.0
    %v2906 = vmax.f32 %v2902, 0.0
    %v2907 = vmax.f32 %v2903, 0.0
    %v2908 = vmax.f32 %v2904, 0.0
    %v2909 = vld [vmem:[%s5] sm:$0xff]
    %v2910 = vld [vmem:[%s5 + $0x8] sm:$0xff]
    %v2911 = vld [vmem:[%s5 + $0x10] sm:$0xff]
    %v2912 = vld [vmem:[%s5 + $0x18] sm:$0xff]
    %v2913 = vld [vmem:[%s5 + $0x20] sm:$0xff]
    %v2914 = vld [vmem:[%s5 + $0x28] sm:$0xff]
    %v2915 = vld [vmem:[%s5 + $0x30] sm:$0xff]
    %v2916 = vld [vmem:[%s5 + $0x38] sm:$0xff]
    %v2917 = vld [vmem:[%s5 + $0x40] sm:$0xff]
    %v2918 = vld [vmem:[%s5 + $0x48] sm:$0xff]
    %v2919 = vld [vmem:[%s5 + $0x50] sm:$0xff]
    %v2920 = vld [vmem:[%s5 + $0x58] sm:$0xff]
    %v2921 = vld [vmem:[%s5 + $0x60] sm:$0xff]
    %v2922 = vld [vmem:[%s5 + $0x68] sm:$0xff]
    %v2923 = vld [vmem:[%s5 + $0x70] sm:$0xff]
    %v2924 = vld [vmem:[%s5 + $0x78] sm:$0xff]
    %v2925 = vld [vmem:[%s5 + $0x80] sm:$0xff]
    %v2926 = vld [vmem:[%s5 + $0x88] sm:$0xff]
    %v2927 = vld [vmem:[%s5 + $0x90] sm:$0xff]
    %v2928 = vld [vmem:[%s5 + $0x98] sm:$0xff]
    %v2929 = vld [vmem:[%s5 + $0xa0] sm:$0xff]
    %v2930 = vld [vmem:[%s5 + $0xa8] sm:$0xff]
    %v2931 = vld [vmem:[%s5 + $0xb0] sm:$0xff]
    %v2932 = vld [vmem:[%s5 + $0xb8] sm:$0xff]
    %v2933 = vld [vmem:[%s5 + $0xc0] sm:$0xff]
    %v2934 = vld [vmem:[%s5 + $0xc8] sm:$0xff]
    %v2935 = vld [vmem:[%s5 + $0xd0] sm:$0xff]
    %v2936 = vld [vmem:[%s5 + $0xd8] sm:$0xff]
    %v2937 = vld [vmem:[%s5 + $0xe0] sm:$0xff]
    %v2938 = vld [vmem:[%s5 + $0xe8] sm:$0xff]
    %v2939 = vld [vmem:[%s5 + $0xf0] sm:$0xff]
    %v2940 = vld [vmem:[%s5 + $0xf8] sm:$0xff]
    %v2941 = vld [vmem:[%s5 + $0x100] sm:$0xff]
    %v2942 = vld [vmem:[%s5 + $0x108] sm:$0xff]
    %v2943 = vld [vmem:[%s5 + $0x110] sm:$0xff]
    %v2944 = vld [vmem:[%s5 + $0x118] sm:$0xff]
    %v2945 = vld [vmem:[%s5 + $0x120] sm:$0xff]
    %v2946 = vld [vmem:[%s5 + $0x128] sm:$0xff]
    %v2947 = vld [vmem:[%s5 + $0x130] sm:$0xff]
    %v2948 = vld [vmem:[%s5 + $0x138] sm:$0xff]
    %v2949 = vld [vmem:[%s5 + $0x140] sm:$0xff]
    %v2950 = vld [vmem:[%s5 + $0x148] sm:$0xff]
    %v2951 = vld [vmem:[%s5 + $0x150] sm:$0xff]
    %v2952 = vld [vmem:[%s5 + $0x158] sm:$0xff]
    %v2953 = vld [vmem:[%s5 + $0x160] sm:$0xff]
    %v2954 = vld [vmem:[%s5 + $0x168] sm:$0xff]
    %v2955 = vld [vmem:[%s5 + $0x170] sm:$0xff]
    %v2956 = vld [vmem:[%s5 + $0x178] sm:$0xff]
    %v2957 = vld [vmem:[%s5 + $0x180] sm:$0xff]
    %v2958 = vld [vmem:[%s5 + $0x188] sm:$0xff]
    %v2959 = vld [vmem:[%s5 + $0x190] sm:$0xff]
    %v2960 = vld [vmem:[%s5 + $0x198] sm:$0xff]
    %v2961 = vld [vmem:[%s5 + $0x1a0] sm:$0xff]
    %v2962 = vld [vmem:[%s5 + $0x1a8] sm:$0xff]
    %v2963 = vld [vmem:[%s5 + $0x1b0] sm:$0xff]
    %v2964 = vld [vmem:[%s5 + $0x1b8] sm:$0xff]
    %v2965 = vld [vmem:[%s5 + $0x1c0] sm:$0xff]
    %v2966 = vld [vmem:[%s5 + $0x1c8] sm:$0xff]
    %v2967 = vld [vmem:[%s5 + $0x1d0] sm:$0xff]
    %v2968 = vld [vmem:[%s5 + $0x1d8] sm:$0xff]
    %v2969 = vld [vmem:[%s5 + $0x1e0] sm:$0xff]
    %v2970 = vld [vmem:[%s5 + $0x1e8] sm:$0xff]
    %v2971 = vld [vmem:[%s5 + $0x1f0] sm:$0xff]
    %v2972 = vld [vmem:[%s5 + $0x1f8] sm:$0xff]
    %v2973 = vld [vmem:[%s6] sm:$0x1]
    %v2975 = vperm.slane %v2973, 0
    %2977 = vmatpush.msra.mxu0 %v2924
    %2978 = vmatpush.msra.mxu0 %v2923
    %2979 = vmatpush.msra.mxu0 %v2922
    %2980 = vmatpush.msra.mxu0 %v2921
    %2981 = vmatpush.msra.mxu0 %v2920
    %2982 = vmatpush.msra.mxu0 %v2919
    %2983 = vmatpush.msra.mxu0 %v2918
    %2984 = vmatpush.msra.mxu0 %v2917
    %2985 = vmatpush.msra.mxu0 %v2916
    %2986 = vmatpush.msra.mxu0 %v2915
    %2987 = vmatpush.msra.mxu0 %v2914
    %2988 = vmatpush.msra.mxu0 %v2913
    %2989 = vmatpush.msra.mxu0 %v2912
    %2990 = vmatpush.msra.mxu0 %v2911
    %2991 = vmatpush.msra.mxu0 %v2910
    %2992 = vmatpush.msra.mxu0 %v2909
    %2993 = vmatmul.f32.gmra.mxu0 %v2905
    %v2994 = vpop.f32.mrf.mxu0
    %v2995 = vadd.f32 %v2975, %v2994
    %2996 = vdwg.mxu0
    %2997 = vmatpush.msra.mxu0 %v2940
    %2998 = vmatpush.msra.mxu0 %v2939
    %2999 = vmatpush.msra.mxu0 %v2938
    %3000 = vmatpush.msra.mxu0 %v2937
    %3001 = vmatpush.msra.mxu0 %v2936
    %3002 = vmatpush.msra.mxu0 %v2935
    %3003 = vmatpush.msra.mxu0 %v2934
    %3004 = vmatpush.msra.mxu0 %v2933
    %3005 = vmatpush.msra.mxu0 %v2932
    %3006 = vmatpush.msra.mxu0 %v2931
    %3007 = vmatpush.msra.mxu0 %v2930
    %3008 = vmatpush.msra.mxu0 %v2929
    %3009 = vmatpush.msra.mxu0 %v2928
    %3010 = vmatpush.msra.mxu0 %v2927
    %3011 = vmatpush.msra.mxu0 %v2926
    %3012 = vmatpush.msra.mxu0 %v2925
    %3013 = vmatmul.f32.gmra.mxu0 %v2906
    %v3014 = vpop.f32.mrf.mxu0
    %v3015 = vadd.f32 %v2995, %v3014
    %3016 = vdwg.mxu0
    %3017 = vmatpush.msra.mxu0 %v2956
    %3018 = vmatpush.msra.mxu0 %v2955
    %3019 = vmatpush.msra.mxu0 %v2954
    %3020 = vmatpush.msra.mxu0 %v2953
    %3021 = vmatpush.msra.mxu0 %v2952
    %3022 = vmatpush.msra.mxu0 %v2951
    %3023 = vmatpush.msra.mxu0 %v2950
    %3024 = vmatpush.msra.mxu0 %v2949
    %3025 = vmatpush.msra.mxu0 %v2948
    %3026 = vmatpush.msra.mxu0 %v2947
    %3027 = vmatpush.msra.mxu0 %v2946
    %3028 = vmatpush.msra.mxu0 %v2945
    %3029 = vmatpush.msra.mxu0 %v2944
    %3030 = vmatpush.msra.mxu0 %v2943
    %3031 = vmatpush.msra.mxu0 %v2942
    %3032 = vmatpush.msra.mxu0 %v2941
    %3033 = vmatmul.f32.gmra.mxu0 %v2907
    %v3034 = vpop.f32.mrf.mxu0
    %v3035 = vadd.f32 %v3015, %v3034
    %3036 = vdwg.mxu0
    %3037 = vmatpush.msra.mxu0 %v2972
    %3038 = vmatpush.msra.mxu0 %v2971
    %3039 = vmatpush.msra.mxu0 %v2970
    %3040 = vmatpush.msra.mxu0 %v2969
    %3041 = vmatpush.msra.mxu0 %v2968
    %3042 = vmatpush.msra.mxu0 %v2967
    %3043 = vmatpush.msra.mxu0 %v2966
    %3044 = vmatpush.msra.mxu0 %v2965
    %3045 = vmatpush.msra.mxu0 %v2964
    %3046 = vmatpush.msra.mxu0 %v2963
    %3047 = vmatpush.msra.mxu0 %v2962
    %3048 = vmatpush.msra.mxu0 %v2961
    %3049 = vmatpush.msra.mxu0 %v2960
    %3050 = vmatpush.msra.mxu0 %v2959
    %3051 = vmatpush.msra.mxu0 %v2958
    %3052 = vmatpush.msra.mxu0 %v2957
    %3053 = vmatmul.f32.gmra.mxu0 %v2908
    %v3054 = vpop.f32.mrf.mxu0
    %v3055 = vadd.f32 %v3035, %v3054
    %3056 = vdwg.mxu0
    %vm3057 = vcmask 58368
    %3058 = vst.msk [vmem:[#allocation2] sm:$0x3] %vm3057, %v3055
    // Predicated region
    $region30: #{cnn_imu_forward.1} parent=1 // pred_check
      _
    $region31: #{cnn_imu_forward.1} parent=1 // pred_check_branch
      %3060 = sbr.rel (0) target = $region33
    $region32: #{cnn_imu_forward.1} parent=1 // pred_region
      %3062 = vsyncadd [#allocation3], 0
      %s3064 = sshll.u32 [#allocation2], 4
      %s3065 = int_to_ptr.vmem [resolvable:$true] %s3064
      %s3066 = sshll.u32 %s7, 4
      %s3067 = int_to_ptr.hbm [resolvable:$true] %s3066
      %3069 = dma.vmem_to_hbm [thread:$0]  %s3065, 32, %s3067, [#allocation3]
    $region33: #{cnn_imu_forward.1} parent=1 // pred_fallthru
      _
    // Predicated region
    $region34: #{cnn_imu_forward.1} parent=1 // pred_check
      _
    $region35: #{cnn_imu_forward.1} parent=1 // pred_check_branch
      %3071 = sbr.rel (0) target = $region37
    $region36: #{cnn_imu_forward.1} parent=1 // pred_region
      %3073 = dma.done [#allocation3], 32
    $region37: #{cnn_imu_forward.1} parent=1 // pred_fallthru
      _
    %3074 = vsyncpa [#allocation3], 1

</llo_original>
